<compile_context>
chip_gen: v6e
topology: v6e:2x2x1
jax: 0.10.0
libtpu: 0.0.40
codegen_flags: <defaults>
</compile_context>

<pallas_src>
import functools

import numpy as np

import jax
import jax.numpy as jnp
from jax.experimental import pallas as pl
from jax.experimental.pallas import tpu as pltpu


# ------------------------------ fused kernel -------------------------------- #

def _decoder_block_kernel(x_ref, skip_ref, wup_ref, bup_ref,
                          w1_ref, t1_ref, w2_ref, t2_ref,
                          se1_ref, se2_ref, o_ref,
                          pad1_ref, pad2_ref,
                          *, H, W, Cout, PADR):
    f32 = jnp.float32
    bf16 = jnp.bfloat16
    HWc = H * W                 # number of coarse pixels (rows of every GEMM)
    C1 = 4 * Cout               # s2d channels of one source (up / skip / conv out)
    C2 = 8 * Cout               # pad1 lane width: [ up (4*Cout) | skip (4*Cout) ]

    # ---- zero the vertical halo rows once; scratch persists across grid steps
    # ---- (grid axis is "arbitrary" i.e. sequential, so program_id==0 runs first).
    @pl.when(pl.program_id(0) == 0)
    def _init():
        pad1_ref[pl.ds(0, PADR), :] = jnp.zeros((PADR, C2), bf16)
        pad1_ref[pl.ds(PADR + HWc, PADR), :] = jnp.zeros((PADR, C2), bf16)
        pad2_ref[pl.ds(0, PADR), :] = jnp.zeros((PADR, C1), bf16)
        pad2_ref[pl.ds(PADR + HWc, PADR), :] = jnp.zeros((PADR, C1), bf16)

    # ---- ConvTranspose2d(k=2, s=2): polyphase == one GEMM, output is already in the
    # ---- space-to-depth layout (HW, 4*Cout) == lane-dense 128.
    up = jnp.dot(x_ref[...], wup_ref[...], preferred_element_type=f32) + bup_ref[...]

    # implicit concat([up, skip]) -> padded scratch, both halves 128-lane aligned.
    pad1_ref[pl.ds(PADR, HWc), pl.ds(0, C1)] = up.astype(bf16)
    pad1_ref[pl.ds(PADR, HWc), pl.ds(C1, C1)] = skip_ref[...]

    # horizontal validity masks on the flattened coarse grid (exact 0/1 in bf16)
    col = jax.lax.broadcasted_iota(jnp.int32, (HWc, 1), 0) % W
    mask_l = (col > 0).astype(bf16)        # 0 where j == 0     (left neighbour = pad)
    mask_r = (col < W - 1).astype(bf16)    # 0 where j == W-1   (right neighbour = pad)

    def conv3x3_bn_relu(pad_ref, w_ref, t_ref):
        # 9 accumulated GEMMs (one per coarse tap), N = 4*Cout = 128, f32 accumulate.
        acc = jnp.zeros((HWc, C1), f32)
        for di in (-1, 0, 1):
            for dj in (-1, 0, 1):
                tap = (di + 1) * 3 + (dj + 1)
                blk = pad_ref[pl.ds(PADR + di * W + dj, HWc), :]
                if dj == -1:
                    blk = blk * mask_l
                elif dj == 1:
                    blk = blk * mask_r
                acc = acc + jnp.dot(blk, w_ref[tap], preferred_element_type=f32)
        return jnp.maximum(acc + t_ref[...], 0.0)

    # conv1 (+ folded BN1 + ReLU), conv2 (+ folded BN2 + ReLU)
    y1 = conv3x3_bn_relu(pad1_ref, w1_ref, t1_ref)            # (HW, 4*Cout) f32
    pad2_ref[pl.ds(PADR, HWc), :] = y1.astype(bf16)
    y2 = conv3x3_bn_relu(pad2_ref, w2_ref, t2_ref)            # (HW, 4*Cout) f32

    # ---- SE epilogue: global average pool over the fine image == sum over coarse
    # ---- rows and over the 4 phase blocks; gate applied at the final store.
    ssum = jnp.sum(y2, axis=0, keepdims=True)                 # (1, 4*Cout)
    mean = (ssum[:, 0 * Cout:1 * Cout] + ssum[:, 1 * Cout:2 * Cout]
            + ssum[:, 2 * Cout:3 * Cout] + ssum[:, 3 * Cout:4 * Cout]) * (1.0 / (4 * HWc))
    h = jnp.maximum(
        jnp.dot(mean.astype(bf16), se1_ref[...], preferred_element_type=f32), 0.0)
    gate = jax.nn.sigmoid(
        jnp.dot(h.astype(bf16), se2_ref[...], preferred_element_type=f32))   # (1, Cout)
    gate4 = jnp.concatenate([gate, gate, gate, gate], axis=1)                # (1, 4*Cout)

    # lane-dense (HW, 128) unmasked store, already in the s2d output layout.
    o_ref[...] = y2 * gate4


# ------------------------ trace-time weight folding ------------------------- #

def _fold_conv3x3_s2d(w_fine, cin_f, cout):
    """Fine-image 3x3 conv weight in torch layout (cout, cin_f, 3, 3) (BN already
    folded) -> polyphase weight (9, 4*cin_f, 4*cout) acting on the space-to-depth
    coarse image.  Canonical channel order: phase-major, fine-channel minor."""
    w9 = jnp.zeros((9, 4 * cin_f, 4 * cout), jnp.float32)
    for po_i in range(2):
        for kh in range(3):
            q = po_i + kh - 1
            di, pi_in = q // 2, q % 2
            for po_j in range(2):
                for kw in range(3):
                    r = po_j + kw - 1
                    dj, pj_in = r // 2, r % 2
                    tap = (di + 1) * 3 + (dj + 1)
                    pin = pi_in * 2 + pj_in
                    pout = po_i * 2 + po_j
                    w9 = w9.at[tap,
                               pin * cin_f:(pin + 1) * cin_f,
                               pout * cout:(pout + 1) * cout].set(
                                   jnp.transpose(w_fine[:, :, kh, kw]))
    return w9


# -------------------------------- wrapper ----------------------------------- #

def decoder_block_forward(inputs_nchw, skip_nchw, p, eps=1e-5):
    B, Cin, H, W = inputs_nchw.shape
    _, Cout, H2, W2 = skip_nchw.shape
    assert H2 == 2 * H and W2 == 2 * W
    HWc = H * W
    Ccat = 2 * Cout
    Cr = p["se_w1"].shape[1]
    PADR = 2 * W                         # >= W + 1 rows of zero halo on each side

    # --- activations: NCHW -> space-to-depth coarse layout, bf16 GEMM operands ---
    x2 = jnp.transpose(inputs_nchw, (0, 2, 3, 1)).astype(jnp.float32)
    x2 = x2.reshape(B, HWc, Cin).astype(jnp.bfloat16)                    # (B, HW, Cin)
    sk = jnp.transpose(skip_nchw, (0, 2, 3, 1)).astype(jnp.float32)      # (B, 2H, 2W, Cout)
    sk = sk.reshape(B, H, 2, W, 2, Cout).transpose(0, 1, 3, 2, 4, 5)
    sk2 = sk.reshape(B, HWc, 4 * Cout).astype(jnp.bfloat16)              # (B, HW, 4*Cout)

    # --- ConvTranspose2d weight (Cin, Cout, 2, 2) -> (Cin, (pi,pj,cout)) ---
    up_wt = jnp.transpose(p["up_w"], (0, 2, 3, 1)).reshape(Cin, 4 * Cout)
    up_wt = up_wt.astype(jnp.bfloat16)
    up_bt = jnp.tile(p["up_b"], 4).reshape(1, 4 * Cout).astype(jnp.float32)

    # --- conv + BN folding: y = (x*w + b)*s + t  ==  x*(w*s) + (b*s + shift) ---
    s1 = p["bn1_gamma"] / jnp.sqrt(p["bn1_var"] + eps)
    w1_fine = p["c1_w"] * s1[:, None, None, None]                        # (Cout, Ccat, 3, 3)
    w1_canon = _fold_conv3x3_s2d(w1_fine, Ccat, Cout)                    # (9, 4*Ccat, 4*Cout)
    # permute input-channel rows from canonical (phase-major, [up|skip] minor) to the
    # data layout used in the kernel scratch: [ up phases (4*Cout) | skip phases ].
    perm = np.empty(4 * Ccat, np.int32)
    for src in range(2):
        for ph in range(4):
            for c in range(Cout):
                perm[src * 4 * Cout + ph * Cout + c] = ph * Ccat + src * Cout + c
    w1f = w1_canon[:, perm, :].astype(jnp.bfloat16)
    t1 = (p["c1_b"] * s1 + p["bn1_beta"] - p["bn1_mean"] * s1)
    t1 = jnp.tile(t1, 4).reshape(1, 4 * Cout).astype(jnp.float32)

    s2 = p["bn2_gamma"] / jnp.sqrt(p["bn2_var"] + eps)
    w2_fine = p["c2_w"] * s2[:, None, None, None]                        # (Cout, Cout, 3, 3)
    w2f = _fold_conv3x3_s2d(w2_fine, Cout, Cout).astype(jnp.bfloat16)    # (9, 4*Cout, 4*Cout)
    t2 = (p["c2_b"] * s2 + p["bn2_beta"] - p["bn2_mean"] * s2)
    t2 = jnp.tile(t2, 4).reshape(1, 4 * Cout).astype(jnp.float32)

    se1 = p["se_w1"].astype(jnp.bfloat16)
    se2 = p["se_w2"].astype(jnp.bfloat16)

    kernel = functools.partial(_decoder_block_kernel, H=H, W=W, Cout=Cout, PADR=PADR)
    out = pl.pallas_call(
        kernel,
        out_shape=jax.ShapeDtypeStruct((B, HWc, 4 * Cout), jnp.float32),
        grid=(B,),
        in_specs=[
            pl.BlockSpec((None, HWc, Cin), lambda b: (b, 0, 0)),          # x (s2d coarse)
            pl.BlockSpec((None, HWc, 4 * Cout), lambda b: (b, 0, 0)),     # skip (s2d)
            pl.BlockSpec((Cin, 4 * Cout), lambda b: (0, 0)),              # upconv weight
            pl.BlockSpec((1, 4 * Cout), lambda b: (0, 0)),                # upconv bias
            pl.BlockSpec((9, 4 * Ccat, 4 * Cout), lambda b: (0, 0, 0)),   # conv1 (BN folded)
            pl.BlockSpec((1, 4 * Cout), lambda b: (0, 0)),                # conv1 shift
            pl.BlockSpec((9, 4 * Cout, 4 * Cout), lambda b: (0, 0, 0)),   # conv2 (BN folded)
            pl.BlockSpec((1, 4 * Cout), lambda b: (0, 0)),                # conv2 shift
            pl.BlockSpec((Cout, Cr), lambda b: (0, 0)),                   # SE fc1
            pl.BlockSpec((Cr, Cout), lambda b: (0, 0)),                   # SE fc2
        ],
        out_specs=pl.BlockSpec((None, HWc, 4 * Cout), lambda b: (b, 0, 0)),
        scratch_shapes=[
            pltpu.VMEM((HWc + 2 * PADR, 8 * Cout), jnp.bfloat16),         # padded [up|skip]
            pltpu.VMEM((HWc + 2 * PADR, 4 * Cout), jnp.bfloat16),         # padded conv1 out
        ],
        # "arbitrary" guarantees sequential grid execution on one core so the
        # zero-once halo init under pl.when(program_id==0) is valid.
        compiler_params=pltpu.CompilerParams(dimension_semantics=("arbitrary",)),
    )(x2, sk2, up_wt, up_bt, w1f, t1, w2f, t2, se1, se2)

    # (B, HW, (pi,pj,c)) -> NCHW (B, Cout, 2H, 2W); single boundary transpose.
    out = out.reshape(B, H, W, 2, 2, Cout)
    out = out.transpose(0, 5, 1, 3, 2, 4).reshape(B, Cout, H2, W2)
    return out


# ----------------------------- parameters ----------------------------------- #

def init_params(key, in_c, out_c, r=16):
    ks = jax.random.split(key, 16)
    n = jax.random.normal
    u = jax.random.uniform
    cr = max(out_c // r, 1)
    p = {
        # ConvTranspose2d(in_c, out_c, 2, stride=2): torch weight (in_c, out_c, 2, 2)
        "up_w": 0.1 * n(ks[0], (in_c, out_c, 2, 2), jnp.float32),
        "up_b": 0.1 * n(ks[1], (out_c,), jnp.float32),
        # conv1: Conv2d(2*out_c, out_c, 3, padding=1): torch weight (out_c, 2*out_c, 3, 3)
        "c1_w": 0.1 * n(ks[2], (out_c, 2 * out_c, 3, 3), jnp.float32),
        "c1_b": 0.1 * n(ks[3], (out_c,), jnp.float32),
        "bn1_gamma": u(ks[4], (out_c,), jnp.float32, 0.5, 1.5),
        "bn1_beta": 0.1 * n(ks[5], (out_c,), jnp.float32),
        "bn1_mean": 0.1 * n(ks[6], (out_c,), jnp.float32),
        "bn1_var": u(ks[7], (out_c,), jnp.float32, 0.5, 1.5),
        # conv2: Conv2d(out_c, out_c, 3, padding=1)
        "c2_w": 0.1 * n(ks[8], (out_c, out_c, 3, 3), jnp.float32),
        "c2_b": 0.1 * n(ks[9], (out_c,), jnp.float32),
        "bn2_gamma": u(ks[10], (out_c,), jnp.float32, 0.5, 1.5),
        "bn2_beta": 0.1 * n(ks[11], (out_c,), jnp.float32),
        "bn2_mean": 0.1 * n(ks[12], (out_c,), jnp.float32),
        "bn2_var": u(ks[13], (out_c,), jnp.float32, 0.5, 1.5),
        # SEBlock fc (bias=False); stored as (in, out) == torch Linear weight transposed
        "se_w1": 0.2 * n(ks[14], (out_c, cr), jnp.float32),
        "se_w2": 0.2 * n(ks[15], (cr, out_c), jnp.float32),
    }
    return p


if __name__ == "__main__":
    key = jax.random.PRNGKey(0)
    k_in, k_skip, k_p = jax.random.split(key, 3)

    B, in_c, out_c, H, W = 2, 64, 32, 8, 8
    inputs = jax.random.normal(k_in, (B, in_c, H, W), jnp.float32)            # (2, 64, 8, 8)
    skip = jax.random.normal(k_skip, (B, out_c, 2 * H, 2 * W), jnp.float32)   # (2, 32, 16, 16)
    params = init_params(k_p, in_c, out_c)

    out = jax.jit(decoder_block_forward)(inputs, skip, params)
    out = jax.block_until_ready(out)
    assert out.shape == (B, out_c, 2 * H, 2 * W)
    assert out.dtype == jnp.float32
    print("KERNEL_OK")
</pallas_src>

<mosaic_0001>
module attributes {stable_mosaic.version = 11 : i64} {
  func.func @_decoder_block_kernel(%arg0: i32, %arg1: memref<1x64x64xbf16, #tpu.memory_space<vmem>>, %arg2: memref<1x64x128xbf16, #tpu.memory_space<vmem>>, %arg3: memref<64x128xbf16, #tpu.memory_space<vmem>>, %arg4: memref<1x128xf32, #tpu.memory_space<vmem>>, %arg5: memref<9x256x128xbf16, #tpu.memory_space<vmem>>, %arg6: memref<1x128xf32, #tpu.memory_space<vmem>>, %arg7: memref<9x128x128xbf16, #tpu.memory_space<vmem>>, %arg8: memref<1x128xf32, #tpu.memory_space<vmem>>, %arg9: memref<32x2xbf16, #tpu.memory_space<vmem>>, %arg10: memref<2x32xbf16, #tpu.memory_space<vmem>>, %arg11: memref<1x64x128xf32, #tpu.memory_space<vmem>>, %arg12: memref<96x256xbf16, #tpu.memory_space<vmem>>, %arg13: memref<96x128xbf16, #tpu.memory_space<vmem>>) attributes {dimension_semantics = [#tpu.dimension_semantics<arbitrary>], iteration_bounds = array<i64: 2>, scalar_prefetch = 0 : i64, scratch_operands = 2 : i64, tpu.core_type = #tpu.core_type<tc>, window_params = [{transform_indices = @transform_0, window_bounds = array<i64: 1, 64, 64>}, {transform_indices = @transform_1, window_bounds = array<i64: 1, 64, 128>}, {pipeline_mode = #tpu.pipeline_mode<synchronous>, transform_indices = @transform_2, window_bounds = array<i64: 64, 128>}, {pipeline_mode = #tpu.pipeline_mode<synchronous>, transform_indices = @transform_3, window_bounds = array<i64: 1, 128>}, {pipeline_mode = #tpu.pipeline_mode<synchronous>, transform_indices = @transform_4, window_bounds = array<i64: 9, 256, 128>}, {pipeline_mode = #tpu.pipeline_mode<synchronous>, transform_indices = @transform_5, window_bounds = array<i64: 1, 128>}, {pipeline_mode = #tpu.pipeline_mode<synchronous>, transform_indices = @transform_6, window_bounds = array<i64: 9, 128, 128>}, {pipeline_mode = #tpu.pipeline_mode<synchronous>, transform_indices = @transform_7, window_bounds = array<i64: 1, 128>}, {pipeline_mode = #tpu.pipeline_mode<synchronous>, transform_indices = @transform_8, window_bounds = array<i64: 32, 2>}, {pipeline_mode = #tpu.pipeline_mode<synchronous>, transform_indices = @transform_9, window_bounds = array<i64: 2, 32>}, {transform_indices = @transform_10, window_bounds = array<i64: 1, 64, 128>}]} {
    %c0_i32 = arith.constant 0 : i32
    %0 = arith.cmpi eq, %arg0, %c0_i32 : i32
    %1 = arith.extui %0 : i1 to i32
    %c0_i32_0 = arith.constant 0 : i32
    %2 = arith.cmpi ne, %1, %c0_i32_0 : i32
    scf.if %2 {
      %cst_134 = arith.constant 0.000000e+00 : bf16
      %200 = vector.broadcast %cst_134 : bf16 to vector<16x256xbf16>
      %c0_135 = arith.constant 0 : index
      %c0_136 = arith.constant 0 : index
      %201 = vector.load %arg12[%c0_135, %c0_136] : memref<96x256xbf16, #tpu.memory_space<vmem>>, vector<16x256xbf16>
      tpu.vector_store %arg12[%c0_135, %c0_136], %200 {strides = array<i32>} : memref<96x256xbf16, #tpu.memory_space<vmem>>, vector<16x256xbf16>,
      %cst_137 = arith.constant 0.000000e+00 : bf16
      %202 = vector.broadcast %cst_137 : bf16 to vector<16x256xbf16>
      %c80 = arith.constant 80 : index
      %c0_138 = arith.constant 0 : index
      %203 = vector.load %arg12[%c80, %c0_138] : memref<96x256xbf16, #tpu.memory_space<vmem>>, vector<16x256xbf16>
      tpu.vector_store %arg12[%c80, %c0_138], %202 {strides = array<i32>} : memref<96x256xbf16, #tpu.memory_space<vmem>>, vector<16x256xbf16>,
      %cst_139 = arith.constant 0.000000e+00 : bf16
      %204 = vector.broadcast %cst_139 : bf16 to vector<16x128xbf16>
      %c0_140 = arith.constant 0 : index
      %c0_141 = arith.constant 0 : index
      %205 = vector.load %arg13[%c0_140, %c0_141] : memref<96x128xbf16, #tpu.memory_space<vmem>>, vector<16x128xbf16>
      tpu.vector_store %arg13[%c0_140, %c0_141], %204 {strides = array<i32>} : memref<96x128xbf16, #tpu.memory_space<vmem>>, vector<16x128xbf16>,
      %cst_142 = arith.constant 0.000000e+00 : bf16
      %206 = vector.broadcast %cst_142 : bf16 to vector<16x128xbf16>
      %c80_143 = arith.constant 80 : index
      %c0_144 = arith.constant 0 : index
      %207 = vector.load %arg13[%c80_143, %c0_144] : memref<96x128xbf16, #tpu.memory_space<vmem>>, vector<16x128xbf16>
      tpu.vector_store %arg13[%c80_143, %c0_144], %206 {strides = array<i32>} : memref<96x128xbf16, #tpu.memory_space<vmem>>, vector<16x128xbf16>,
    } else {
    }
    %c0 = arith.constant 0 : index
    %c0_1 = arith.constant 0 : index
    %c0_2 = arith.constant 0 : index
    %3 = vector.load %arg1[%c0, %c0_1, %c0_2] : memref<1x64x64xbf16, #tpu.memory_space<vmem>>, vector<1x64x64xbf16>
    %4 = vector.shape_cast %3 : vector<1x64x64xbf16> to vector<64x64xbf16>
    %c0_3 = arith.constant 0 : index
    %c0_4 = arith.constant 0 : index
    %5 = vector.load %arg3[%c0_3, %c0_4] : memref<64x128xbf16, #tpu.memory_space<vmem>>, vector<64x128xbf16>
    %cst = arith.constant dense<0.000000e+00> : vector<64x128xf32>
    %6 = tpu.matmul %4, %5, %cst {dimension_numbers = #tpu.dot_dimension_numbers<[1], [0], [0], [1], [0, 0, 1, 1], [], []>} : vector<64x64xbf16>, vector<64x128xbf16>, vector<64x128xf32> -> vector<64x128xf32>
    %c0_5 = arith.constant 0 : index
    %c0_6 = arith.constant 0 : index
    %7 = vector.load %arg4[%c0_5, %c0_6] : memref<1x128xf32, #tpu.memory_space<vmem>>, vector<1x128xf32>
    %8 = vector.broadcast %7 : vector<1x128xf32> to vector<64x128xf32>
    %9 = arith.addf %6, %8 : vector<64x128xf32>
    %10 = arith.truncf %9 : vector<64x128xf32> to vector<64x128xbf16>
    %c16 = arith.constant 16 : index
    %c0_7 = arith.constant 0 : index
    %11 = vector.load %arg12[%c16, %c0_7] : memref<96x256xbf16, #tpu.memory_space<vmem>>, vector<64x128xbf16>
    tpu.vector_store %arg12[%c16, %c0_7], %10 {strides = array<i32>} : memref<96x256xbf16, #tpu.memory_space<vmem>>, vector<64x128xbf16>,
    %c0_8 = arith.constant 0 : index
    %c0_9 = arith.constant 0 : index
    %c0_10 = arith.constant 0 : index
    %12 = vector.load %arg2[%c0_8, %c0_9, %c0_10] : memref<1x64x128xbf16, #tpu.memory_space<vmem>>, vector<1x64x128xbf16>
    %13 = vector.shape_cast %12 : vector<1x64x128xbf16> to vector<64x128xbf16>
    %c16_11 = arith.constant 16 : index
    %c128 = arith.constant 128 : index
    %14 = vector.load %arg12[%c16_11, %c128] : memref<96x256xbf16, #tpu.memory_space<vmem>>, vector<64x128xbf16>
    tpu.vector_store %arg12[%c16_11, %c128], %13 {strides = array<i32>} : memref<96x256xbf16, #tpu.memory_space<vmem>>, vector<64x128xbf16>,
    %15 = tpu.iota {dimensions = array<i32: 0>} : vector<64x1xi32>
    %c8_i32 = arith.constant 8 : i32
    %c0_i32_12 = arith.constant 0 : i32
    %16 = arith.cmpi eq, %c8_i32, %c0_i32_12 : i32
    %c1_i32 = arith.constant 1 : i32
    %17 = arith.select %16, %c1_i32, %c8_i32 : i32
    %18 = vector.broadcast %17 : i32 to vector<64x1xi32>
    %19 = arith.remsi %15, %18 : vector<64x1xi32>
    %c0_i32_13 = arith.constant 0 : i32
    %20 = vector.broadcast %c0_i32_13 : i32 to vector<64x1xi32>
    %21 = arith.cmpi ne, %19, %20 : vector<64x1xi32>
    %c0_i32_14 = arith.constant 0 : i32
    %22 = vector.broadcast %c0_i32_14 : i32 to vector<64x1xi32>
    %23 = arith.cmpi slt, %19, %22 : vector<64x1xi32>
    %c0_i32_15 = arith.constant 0 : i32
    %24 = arith.cmpi slt, %17, %c0_i32_15 : i32
    %25 = vector.broadcast %24 : i1 to vector<64x1xi1>
    %26 = vector.broadcast %25 : vector<64x1xi1> to vector<64x1xi1>
    %27 = arith.xori %23, %26 : vector<64x1xi1>
    %28 = arith.andi %27, %21 : vector<64x1xi1>
    %29 = vector.broadcast %17 : i32 to vector<64x1xi32>
    %30 = arith.addi %19, %29 : vector<64x1xi32>
    %31 = arith.select %28, %30, %19 : vector<64x1xi1>, vector<64x1xi32>
    %c0_i32_16 = arith.constant 0 : i32
    %32 = vector.broadcast %c0_i32_16 : i32 to vector<64x1xi32>
    %33 = arith.cmpi sgt, %31, %32 : vector<64x1xi32>
    %34 = arith.extui %33 : vector<64x1xi1> to vector<64x1xi32>
    %35 = arith.sitofp %34 : vector<64x1xi32> to vector<64x1xf32>
    %36 = arith.truncf %35 : vector<64x1xf32> to vector<64x1xbf16>
    %c7_i32 = arith.constant 7 : i32
    %37 = vector.broadcast %c7_i32 : i32 to vector<64x1xi32>
    %38 = arith.cmpi slt, %31, %37 : vector<64x1xi32>
    %39 = arith.extui %38 : vector<64x1xi1> to vector<64x1xi32>
    %40 = arith.sitofp %39 : vector<64x1xi32> to vector<64x1xf32>
    %41 = arith.truncf %40 : vector<64x1xf32> to vector<64x1xbf16>
    %cst_17 = arith.constant 0.000000e+00 : f32
    %42 = vector.broadcast %cst_17 : f32 to vector<64x128xf32>
    %c7 = arith.constant 7 : index
    %c0_18 = arith.constant 0 : index
    %43 = vector.load %arg12[%c7, %c0_18] : memref<96x256xbf16, #tpu.memory_space<vmem>>, vector<64x256xbf16>
    %44 = vector.broadcast %36 : vector<64x1xbf16> to vector<64x256xbf16>
    %45 = arith.mulf %43, %44 : vector<64x256xbf16>
    %c0_19 = arith.constant 0 : index
    %c0_20 = arith.constant 0 : index
    %c0_21 = arith.constant 0 : index
    %46 = vector.load %arg5[%c0_19, %c0_20, %c0_21] : memref<9x256x128xbf16, #tpu.memory_space<vmem>>, vector<1x256x128xbf16>
    %47 = vector.shape_cast %46 : vector<1x256x128xbf16> to vector<256x128xbf16>
    %cst_22 = arith.constant dense<0.000000e+00> : vector<64x128xf32>
    %48 = tpu.matmul %45, %47, %cst_22 {dimension_numbers = #tpu.dot_dimension_numbers<[1], [0], [0], [1], [0, 0, 1, 1], [], []>} : vector<64x256xbf16>, vector<256x128xbf16>, vector<64x128xf32> -> vector<64x128xf32>
    %49 = arith.addf %42, %48 : vector<64x128xf32>
    %c8 = arith.constant 8 : index
    %c0_23 = arith.constant 0 : index
    %50 = vector.load %arg12[%c8, %c0_23] : memref<96x256xbf16, #tpu.memory_space<vmem>>, vector<64x256xbf16>
    %c1 = arith.constant 1 : index
    %c0_24 = arith.constant 0 : index
    %c0_25 = arith.constant 0 : index
    %51 = vector.load %arg5[%c1, %c0_24, %c0_25] : memref<9x256x128xbf16, #tpu.memory_space<vmem>>, vector<1x256x128xbf16>
    %52 = vector.shape_cast %51 : vector<1x256x128xbf16> to vector<256x128xbf16>
    %cst_26 = arith.constant dense<0.000000e+00> : vector<64x128xf32>
    %53 = tpu.matmul %50, %52, %cst_26 {dimension_numbers = #tpu.dot_dimension_numbers<[1], [0], [0], [1], [0, 0, 1, 1], [], []>} : vector<64x256xbf16>, vector<256x128xbf16>, vector<64x128xf32> -> vector<64x128xf32>
    %54 = arith.addf %49, %53 : vector<64x128xf32>
    %c9 = arith.constant 9 : index
    %c0_27 = arith.constant 0 : index
    %55 = vector.load %arg12[%c9, %c0_27] : memref<96x256xbf16, #tpu.memory_space<vmem>>, vector<64x256xbf16>
    %56 = vector.broadcast %41 : vector<64x1xbf16> to vector<64x256xbf16>
    %57 = arith.mulf %55, %56 : vector<64x256xbf16>
    %c2 = arith.constant 2 : index
    %c0_28 = arith.constant 0 : index
    %c0_29 = arith.constant 0 : index
    %58 = vector.load %arg5[%c2, %c0_28, %c0_29] : memref<9x256x128xbf16, #tpu.memory_space<vmem>>, vector<1x256x128xbf16>
    %59 = vector.shape_cast %58 : vector<1x256x128xbf16> to vector<256x128xbf16>
    %cst_30 = arith.constant dense<0.000000e+00> : vector<64x128xf32>
    %60 = tpu.matmul %57, %59, %cst_30 {dimension_numbers = #tpu.dot_dimension_numbers<[1], [0], [0], [1], [0, 0, 1, 1], [], []>} : vector<64x256xbf16>, vector<256x128xbf16>, vector<64x128xf32> -> vector<64x128xf32>
    %61 = arith.addf %54, %60 : vector<64x128xf32>
    %c15 = arith.constant 15 : index
    %c0_31 = arith.constant 0 : index
    %62 = vector.load %arg12[%c15, %c0_31] : memref<96x256xbf16, #tpu.memory_space<vmem>>, vector<64x256xbf16>
    %63 = vector.broadcast %36 : vector<64x1xbf16> to vector<64x256xbf16>
    %64 = arith.mulf %62, %63 : vector<64x256xbf16>
    %c3 = arith.constant 3 : index
    %c0_32 = arith.constant 0 : index
    %c0_33 = arith.constant 0 : index
    %65 = vector.load %arg5[%c3, %c0_32, %c0_33] : memref<9x256x128xbf16, #tpu.memory_space<vmem>>, vector<1x256x128xbf16>
    %66 = vector.shape_cast %65 : vector<1x256x128xbf16> to vector<256x128xbf16>
    %cst_34 = arith.constant dense<0.000000e+00> : vector<64x128xf32>
    %67 = tpu.matmul %64, %66, %cst_34 {dimension_numbers = #tpu.dot_dimension_numbers<[1], [0], [0], [1], [0, 0, 1, 1], [], []>} : vector<64x256xbf16>, vector<256x128xbf16>, vector<64x128xf32> -> vector<64x128xf32>
    %68 = arith.addf %61, %67 : vector<64x128xf32>
    %c16_35 = arith.constant 16 : index
    %c0_36 = arith.constant 0 : index
    %69 = vector.load %arg12[%c16_35, %c0_36] : memref<96x256xbf16, #tpu.memory_space<vmem>>, vector<64x256xbf16>
    %c4 = arith.constant 4 : index
    %c0_37 = arith.constant 0 : index
    %c0_38 = arith.constant 0 : index
    %70 = vector.load %arg5[%c4, %c0_37, %c0_38] : memref<9x256x128xbf16, #tpu.memory_space<vmem>>, vector<1x256x128xbf16>
    %71 = vector.shape_cast %70 : vector<1x256x128xbf16> to vector<256x128xbf16>
    %cst_39 = arith.constant dense<0.000000e+00> : vector<64x128xf32>
    %72 = tpu.matmul %69, %71, %cst_39 {dimension_numbers = #tpu.dot_dimension_numbers<[1], [0], [0], [1], [0, 0, 1, 1], [], []>} : vector<64x256xbf16>, vector<256x128xbf16>, vector<64x128xf32> -> vector<64x128xf32>
    %73 = arith.addf %68, %72 : vector<64x128xf32>
    %c17 = arith.constant 17 : index
    %c0_40 = arith.constant 0 : index
    %74 = vector.load %arg12[%c17, %c0_40] : memref<96x256xbf16, #tpu.memory_space<vmem>>, vector<64x256xbf16>
    %75 = vector.broadcast %41 : vector<64x1xbf16> to vector<64x256xbf16>
    %76 = arith.mulf %74, %75 : vector<64x256xbf16>
    %c5 = arith.constant 5 : index
    %c0_41 = arith.constant 0 : index
    %c0_42 = arith.constant 0 : index
    %77 = vector.load %arg5[%c5, %c0_41, %c0_42] : memref<9x256x128xbf16, #tpu.memory_space<vmem>>, vector<1x256x128xbf16>
    %78 = vector.shape_cast %77 : vector<1x256x128xbf16> to vector<256x128xbf16>
    %cst_43 = arith.constant dense<0.000000e+00> : vector<64x128xf32>
    %79 = tpu.matmul %76, %78, %cst_43 {dimension_numbers = #tpu.dot_dimension_numbers<[1], [0], [0], [1], [0, 0, 1, 1], [], []>} : vector<64x256xbf16>, vector<256x128xbf16>, vector<64x128xf32> -> vector<64x128xf32>
    %80 = arith.addf %73, %79 : vector<64x128xf32>
    %c23 = arith.constant 23 : index
    %c0_44 = arith.constant 0 : index
    %81 = vector.load %arg12[%c23, %c0_44] : memref<96x256xbf16, #tpu.memory_space<vmem>>, vector<64x256xbf16>
    %82 = vector.broadcast %36 : vector<64x1xbf16> to vector<64x256xbf16>
    %83 = arith.mulf %81, %82 : vector<64x256xbf16>
    %c6 = arith.constant 6 : index
    %c0_45 = arith.constant 0 : index
    %c0_46 = arith.constant 0 : index
    %84 = vector.load %arg5[%c6, %c0_45, %c0_46] : memref<9x256x128xbf16, #tpu.memory_space<vmem>>, vector<1x256x128xbf16>
    %85 = vector.shape_cast %84 : vector<1x256x128xbf16> to vector<256x128xbf16>
    %cst_47 = arith.constant dense<0.000000e+00> : vector<64x128xf32>
    %86 = tpu.matmul %83, %85, %cst_47 {dimension_numbers = #tpu.dot_dimension_numbers<[1], [0], [0], [1], [0, 0, 1, 1], [], []>} : vector<64x256xbf16>, vector<256x128xbf16>, vector<64x128xf32> -> vector<64x128xf32>
    %87 = arith.addf %80, %86 : vector<64x128xf32>
    %c24 = arith.constant 24 : index
    %c0_48 = arith.constant 0 : index
    %88 = vector.load %arg12[%c24, %c0_48] : memref<96x256xbf16, #tpu.memory_space<vmem>>, vector<64x256xbf16>
    %c7_49 = arith.constant 7 : index
    %c0_50 = arith.constant 0 : index
    %c0_51 = arith.constant 0 : index
    %89 = vector.load %arg5[%c7_49, %c0_50, %c0_51] : memref<9x256x128xbf16, #tpu.memory_space<vmem>>, vector<1x256x128xbf16>
    %90 = vector.shape_cast %89 : vector<1x256x128xbf16> to vector<256x128xbf16>
    %cst_52 = arith.constant dense<0.000000e+00> : vector<64x128xf32>
    %91 = tpu.matmul %88, %90, %cst_52 {dimension_numbers = #tpu.dot_dimension_numbers<[1], [0], [0], [1], [0, 0, 1, 1], [], []>} : vector<64x256xbf16>, vector<256x128xbf16>, vector<64x128xf32> -> vector<64x128xf32>
    %92 = arith.addf %87, %91 : vector<64x128xf32>
    %c25 = arith.constant 25 : index
    %c0_53 = arith.constant 0 : index
    %93 = vector.load %arg12[%c25, %c0_53] : memref<96x256xbf16, #tpu.memory_space<vmem>>, vector<64x256xbf16>
    %94 = vector.broadcast %41 : vector<64x1xbf16> to vector<64x256xbf16>
    %95 = arith.mulf %93, %94 : vector<64x256xbf16>
    %c8_54 = arith.constant 8 : index
    %c0_55 = arith.constant 0 : index
    %c0_56 = arith.constant 0 : index
    %96 = vector.load %arg5[%c8_54, %c0_55, %c0_56] : memref<9x256x128xbf16, #tpu.memory_space<vmem>>, vector<1x256x128xbf16>
    %97 = vector.shape_cast %96 : vector<1x256x128xbf16> to vector<256x128xbf16>
    %cst_57 = arith.constant dense<0.000000e+00> : vector<64x128xf32>
    %98 = tpu.matmul %95, %97, %cst_57 {dimension_numbers = #tpu.dot_dimension_numbers<[1], [0], [0], [1], [0, 0, 1, 1], [], []>} : vector<64x256xbf16>, vector<256x128xbf16>, vector<64x128xf32> -> vector<64x128xf32>
    %99 = arith.addf %92, %98 : vector<64x128xf32>
    %c0_58 = arith.constant 0 : index
    %c0_59 = arith.constant 0 : index
    %100 = vector.load %arg6[%c0_58, %c0_59] : memref<1x128xf32, #tpu.memory_space<vmem>>, vector<1x128xf32>
    %101 = vector.broadcast %100 : vector<1x128xf32> to vector<64x128xf32>
    %102 = arith.addf %99, %101 : vector<64x128xf32>
    %cst_60 = arith.constant 0.000000e+00 : f32
    %103 = vector.broadcast %cst_60 : f32 to vector<64x128xf32>
    %104 = arith.maximumf %102, %103 : vector<64x128xf32>
    %105 = arith.truncf %104 : vector<64x128xf32> to vector<64x128xbf16>
    %c16_61 = arith.constant 16 : index
    %c0_62 = arith.constant 0 : index
    %106 = vector.load %arg13[%c16_61, %c0_62] : memref<96x128xbf16, #tpu.memory_space<vmem>>, vector<64x128xbf16>
    tpu.vector_store %arg13[%c16_61, %c0_62], %105 {strides = array<i32>} : memref<96x128xbf16, #tpu.memory_space<vmem>>, vector<64x128xbf16>,
    %cst_63 = arith.constant 0.000000e+00 : f32
    %107 = vector.broadcast %cst_63 : f32 to vector<64x128xf32>
    %c7_64 = arith.constant 7 : index
    %c0_65 = arith.constant 0 : index
    %108 = vector.load %arg13[%c7_64, %c0_65] : memref<96x128xbf16, #tpu.memory_space<vmem>>, vector<64x128xbf16>
    %109 = vector.broadcast %36 : vector<64x1xbf16> to vector<64x128xbf16>
    %110 = arith.mulf %108, %109 : vector<64x128xbf16>
    %c0_66 = arith.constant 0 : index
    %c0_67 = arith.constant 0 : index
    %c0_68 = arith.constant 0 : index
    %111 = vector.load %arg7[%c0_66, %c0_67, %c0_68] : memref<9x128x128xbf16, #tpu.memory_space<vmem>>, vector<1x128x128xbf16>
    %112 = vector.shape_cast %111 : vector<1x128x128xbf16> to vector<128x128xbf16>
    %cst_69 = arith.constant dense<0.000000e+00> : vector<64x128xf32>
    %113 = tpu.matmul %110, %112, %cst_69 {dimension_numbers = #tpu.dot_dimension_numbers<[1], [0], [0], [1], [0, 0, 1, 1], [], []>} : vector<64x128xbf16>, vector<128x128xbf16>, vector<64x128xf32> -> vector<64x128xf32>
    %114 = arith.addf %107, %113 : vector<64x128xf32>
    %c8_70 = arith.constant 8 : index
    %c0_71 = arith.constant 0 : index
    %115 = vector.load %arg13[%c8_70, %c0_71] : memref<96x128xbf16, #tpu.memory_space<vmem>>, vector<64x128xbf16>
    %c1_72 = arith.constant 1 : index
    %c0_73 = arith.constant 0 : index
    %c0_74 = arith.constant 0 : index
    %116 = vector.load %arg7[%c1_72, %c0_73, %c0_74] : memref<9x128x128xbf16, #tpu.memory_space<vmem>>, vector<1x128x128xbf16>
    %117 = vector.shape_cast %116 : vector<1x128x128xbf16> to vector<128x128xbf16>
    %cst_75 = arith.constant dense<0.000000e+00> : vector<64x128xf32>
    %118 = tpu.matmul %115, %117, %cst_75 {dimension_numbers = #tpu.dot_dimension_numbers<[1], [0], [0], [1], [0, 0, 1, 1], [], []>} : vector<64x128xbf16>, vector<128x128xbf16>, vector<64x128xf32> -> vector<64x128xf32>
    %119 = arith.addf %114, %118 : vector<64x128xf32>
    %c9_76 = arith.constant 9 : index
    %c0_77 = arith.constant 0 : index
    %120 = vector.load %arg13[%c9_76, %c0_77] : memref<96x128xbf16, #tpu.memory_space<vmem>>, vector<64x128xbf16>
    %121 = vector.broadcast %41 : vector<64x1xbf16> to vector<64x128xbf16>
    %122 = arith.mulf %120, %121 : vector<64x128xbf16>
    %c2_78 = arith.constant 2 : index
    %c0_79 = arith.constant 0 : index
    %c0_80 = arith.constant 0 : index
    %123 = vector.load %arg7[%c2_78, %c0_79, %c0_80] : memref<9x128x128xbf16, #tpu.memory_space<vmem>>, vector<1x128x128xbf16>
    %124 = vector.shape_cast %123 : vector<1x128x128xbf16> to vector<128x128xbf16>
    %cst_81 = arith.constant dense<0.000000e+00> : vector<64x128xf32>
    %125 = tpu.matmul %122, %124, %cst_81 {dimension_numbers = #tpu.dot_dimension_numbers<[1], [0], [0], [1], [0, 0, 1, 1], [], []>} : vector<64x128xbf16>, vector<128x128xbf16>, vector<64x128xf32> -> vector<64x128xf32>
    %126 = arith.addf %119, %125 : vector<64x128xf32>
    %c15_82 = arith.constant 15 : index
    %c0_83 = arith.constant 0 : index
    %127 = vector.load %arg13[%c15_82, %c0_83] : memref<96x128xbf16, #tpu.memory_space<vmem>>, vector<64x128xbf16>
    %128 = vector.broadcast %36 : vector<64x1xbf16> to vector<64x128xbf16>
    %129 = arith.mulf %127, %128 : vector<64x128xbf16>
    %c3_84 = arith.constant 3 : index
    %c0_85 = arith.constant 0 : index
    %c0_86 = arith.constant 0 : index
    %130 = vector.load %arg7[%c3_84, %c0_85, %c0_86] : memref<9x128x128xbf16, #tpu.memory_space<vmem>>, vector<1x128x128xbf16>
    %131 = vector.shape_cast %130 : vector<1x128x128xbf16> to vector<128x128xbf16>
    %cst_87 = arith.constant dense<0.000000e+00> : vector<64x128xf32>
    %132 = tpu.matmul %129, %131, %cst_87 {dimension_numbers = #tpu.dot_dimension_numbers<[1], [0], [0], [1], [0, 0, 1, 1], [], []>} : vector<64x128xbf16>, vector<128x128xbf16>, vector<64x128xf32> -> vector<64x128xf32>
    %133 = arith.addf %126, %132 : vector<64x128xf32>
    %c16_88 = arith.constant 16 : index
    %c0_89 = arith.constant 0 : index
    %134 = vector.load %arg13[%c16_88, %c0_89] : memref<96x128xbf16, #tpu.memory_space<vmem>>, vector<64x128xbf16>
    %c4_90 = arith.constant 4 : index
    %c0_91 = arith.constant 0 : index
    %c0_92 = arith.constant 0 : index
    %135 = vector.load %arg7[%c4_90, %c0_91, %c0_92] : memref<9x128x128xbf16, #tpu.memory_space<vmem>>, vector<1x128x128xbf16>
    %136 = vector.shape_cast %135 : vector<1x128x128xbf16> to vector<128x128xbf16>
    %cst_93 = arith.constant dense<0.000000e+00> : vector<64x128xf32>
    %137 = tpu.matmul %134, %136, %cst_93 {dimension_numbers = #tpu.dot_dimension_numbers<[1], [0], [0], [1], [0, 0, 1, 1], [], []>} : vector<64x128xbf16>, vector<128x128xbf16>, vector<64x128xf32> -> vector<64x128xf32>
    %138 = arith.addf %133, %137 : vector<64x128xf32>
    %c17_94 = arith.constant 17 : index
    %c0_95 = arith.constant 0 : index
    %139 = vector.load %arg13[%c17_94, %c0_95] : memref<96x128xbf16, #tpu.memory_space<vmem>>, vector<64x128xbf16>
    %140 = vector.broadcast %41 : vector<64x1xbf16> to vector<64x128xbf16>
    %141 = arith.mulf %139, %140 : vector<64x128xbf16>
    %c5_96 = arith.constant 5 : index
    %c0_97 = arith.constant 0 : index
    %c0_98 = arith.constant 0 : index
    %142 = vector.load %arg7[%c5_96, %c0_97, %c0_98] : memref<9x128x128xbf16, #tpu.memory_space<vmem>>, vector<1x128x128xbf16>
    %143 = vector.shape_cast %142 : vector<1x128x128xbf16> to vector<128x128xbf16>
    %cst_99 = arith.constant dense<0.000000e+00> : vector<64x128xf32>
    %144 = tpu.matmul %141, %143, %cst_99 {dimension_numbers = #tpu.dot_dimension_numbers<[1], [0], [0], [1], [0, 0, 1, 1], [], []>} : vector<64x128xbf16>, vector<128x128xbf16>, vector<64x128xf32> -> vector<64x128xf32>
    %145 = arith.addf %138, %144 : vector<64x128xf32>
    %c23_100 = arith.constant 23 : index
    %c0_101 = arith.constant 0 : index
    %146 = vector.load %arg13[%c23_100, %c0_101] : memref<96x128xbf16, #tpu.memory_space<vmem>>, vector<64x128xbf16>
    %147 = vector.broadcast %36 : vector<64x1xbf16> to vector<64x128xbf16>
    %148 = arith.mulf %146, %147 : vector<64x128xbf16>
    %c6_102 = arith.constant 6 : index
    %c0_103 = arith.constant 0 : index
    %c0_104 = arith.constant 0 : index
    %149 = vector.load %arg7[%c6_102, %c0_103, %c0_104] : memref<9x128x128xbf16, #tpu.memory_space<vmem>>, vector<1x128x128xbf16>
    %150 = vector.shape_cast %149 : vector<1x128x128xbf16> to vector<128x128xbf16>
    %cst_105 = arith.constant dense<0.000000e+00> : vector<64x128xf32>
    %151 = tpu.matmul %148, %150, %cst_105 {dimension_numbers = #tpu.dot_dimension_numbers<[1], [0], [0], [1], [0, 0, 1, 1], [], []>} : vector<64x128xbf16>, vector<128x128xbf16>, vector<64x128xf32> -> vector<64x128xf32>
    %152 = arith.addf %145, %151 : vector<64x128xf32>
    %c24_106 = arith.constant 24 : index
    %c0_107 = arith.constant 0 : index
    %153 = vector.load %arg13[%c24_106, %c0_107] : memref<96x128xbf16, #tpu.memory_space<vmem>>, vector<64x128xbf16>
    %c7_108 = arith.constant 7 : index
    %c0_109 = arith.constant 0 : index
    %c0_110 = arith.constant 0 : index
    %154 = vector.load %arg7[%c7_108, %c0_109, %c0_110] : memref<9x128x128xbf16, #tpu.memory_space<vmem>>, vector<1x128x128xbf16>
    %155 = vector.shape_cast %154 : vector<1x128x128xbf16> to vector<128x128xbf16>
    %cst_111 = arith.constant dense<0.000000e+00> : vector<64x128xf32>
    %156 = tpu.matmul %153, %155, %cst_111 {dimension_numbers = #tpu.dot_dimension_numbers<[1], [0], [0], [1], [0, 0, 1, 1], [], []>} : vector<64x128xbf16>, vector<128x128xbf16>, vector<64x128xf32> -> vector<64x128xf32>
    %157 = arith.addf %152, %156 : vector<64x128xf32>
    %c25_112 = arith.constant 25 : index
    %c0_113 = arith.constant 0 : index
    %158 = vector.load %arg13[%c25_112, %c0_113] : memref<96x128xbf16, #tpu.memory_space<vmem>>, vector<64x128xbf16>
    %159 = vector.broadcast %41 : vector<64x1xbf16> to vector<64x128xbf16>
    %160 = arith.mulf %158, %159 : vector<64x128xbf16>
    %c8_114 = arith.constant 8 : index
    %c0_115 = arith.constant 0 : index
    %c0_116 = arith.constant 0 : index
    %161 = vector.load %arg7[%c8_114, %c0_115, %c0_116] : memref<9x128x128xbf16, #tpu.memory_space<vmem>>, vector<1x128x128xbf16>
    %162 = vector.shape_cast %161 : vector<1x128x128xbf16> to vector<128x128xbf16>
    %cst_117 = arith.constant dense<0.000000e+00> : vector<64x128xf32>
    %163 = tpu.matmul %160, %162, %cst_117 {dimension_numbers = #tpu.dot_dimension_numbers<[1], [0], [0], [1], [0, 0, 1, 1], [], []>} : vector<64x128xbf16>, vector<128x128xbf16>, vector<64x128xf32> -> vector<64x128xf32>
    %164 = arith.addf %157, %163 : vector<64x128xf32>
    %c0_118 = arith.constant 0 : index
    %c0_119 = arith.constant 0 : index
    %165 = vector.load %arg8[%c0_118, %c0_119] : memref<1x128xf32, #tpu.memory_space<vmem>>, vector<1x128xf32>
    %166 = vector.broadcast %165 : vector<1x128xf32> to vector<64x128xf32>
    %167 = arith.addf %164, %166 : vector<64x128xf32>
    %cst_120 = arith.constant 0.000000e+00 : f32
    %168 = vector.broadcast %cst_120 : f32 to vector<64x128xf32>
    %169 = arith.maximumf %167, %168 : vector<64x128xf32>
    %cst_121 = arith.constant dense<0.000000e+00> : vector<128xf32>
    %170 = vector.multi_reduction <add>, %169, %cst_121 [0] : vector<64x128xf32> to vector<128xf32>
    %171 = vector.shape_cast %170 : vector<128xf32> to vector<1x128xf32>
    %172 = vector.extract_strided_slice %171 {offsets = [0, 0], sizes = [1, 32], strides = [1, 1]} : vector<1x128xf32> to vector<1x32xf32>
    %173 = vector.extract_strided_slice %171 {offsets = [0, 32], sizes = [1, 32], strides = [1, 1]} : vector<1x128xf32> to vector<1x32xf32>
    %174 = arith.addf %172, %173 : vector<1x32xf32>
    %175 = vector.extract_strided_slice %171 {offsets = [0, 64], sizes = [1, 32], strides = [1, 1]} : vector<1x128xf32> to vector<1x32xf32>
    %176 = arith.addf %174, %175 : vector<1x32xf32>
    %177 = vector.extract_strided_slice %171 {offsets = [0, 96], sizes = [1, 32], strides = [1, 1]} : vector<1x128xf32> to vector<1x32xf32>
    %178 = arith.addf %176, %177 : vector<1x32xf32>
    %cst_122 = arith.constant 3.906250e-03 : f32
    %179 = vector.broadcast %cst_122 : f32 to vector<1x32xf32>
    %180 = arith.mulf %178, %179 : vector<1x32xf32>
    %181 = arith.truncf %180 : vector<1x32xf32> to vector<1x32xbf16>
    %c0_123 = arith.constant 0 : index
    %c0_124 = arith.constant 0 : index
    %182 = vector.load %arg9[%c0_123, %c0_124] : memref<32x2xbf16, #tpu.memory_space<vmem>>, vector<32x2xbf16>
    %cst_125 = arith.constant dense<0.000000e+00> : vector<1x2xf32>
    %183 = tpu.matmul %181, %182, %cst_125 {dimension_numbers = #tpu.dot_dimension_numbers<[1], [0], [0], [1], [0, 0, 1, 1], [], []>} : vector<1x32xbf16>, vector<32x2xbf16>, vector<1x2xf32> -> vector<1x2xf32>
    %cst_126 = arith.constant 0.000000e+00 : f32
    %184 = vector.broadcast %cst_126 : f32 to vector<1x2xf32>
    %185 = arith.maximumf %183, %184 : vector<1x2xf32>
    %186 = arith.truncf %185 : vector<1x2xf32> to vector<1x2xbf16>
    %c0_127 = arith.constant 0 : index
    %c0_128 = arith.constant 0 : index
    %187 = vector.load %arg10[%c0_127, %c0_128] : memref<2x32xbf16, #tpu.memory_space<vmem>>, vector<2x32xbf16>
    %cst_129 = arith.constant dense<0.000000e+00> : vector<1x32xf32>
    %188 = tpu.matmul %186, %187, %cst_129 {dimension_numbers = #tpu.dot_dimension_numbers<[1], [0], [0], [1], [0, 0, 1, 1], [], []>} : vector<1x2xbf16>, vector<2x32xbf16>, vector<1x32xf32> -> vector<1x32xf32>
    %189 = arith.negf %188 : vector<1x32xf32>
    %190 = math.exp %189 : vector<1x32xf32>
    %cst_130 = arith.constant 1.000000e+00 : f32
    %191 = vector.broadcast %cst_130 : f32 to vector<1x32xf32>
    %192 = arith.addf %191, %190 : vector<1x32xf32>
    %193 = arith.divf %191, %192 : vector<1x32xf32>
    %194 = tpu.concatenate %193, %193, %193, %193 in 1 : vector<1x32xf32>, vector<1x32xf32>, vector<1x32xf32>, vector<1x32xf32> -> vector<1x128xf32>
    %195 = vector.broadcast %194 : vector<1x128xf32> to vector<64x128xf32>
    %196 = arith.mulf %169, %195 : vector<64x128xf32>
    %c0_131 = arith.constant 0 : index
    %c0_132 = arith.constant 0 : index
    %c0_133 = arith.constant 0 : index
    %197 = vector.load %arg11[%c0_131, %c0_132, %c0_133] : memref<1x64x128xf32, #tpu.memory_space<vmem>>, vector<1x64x128xf32>
    %198 = vector.shape_cast %197 : vector<1x64x128xf32> to vector<64x128xf32>
    %199 = vector.shape_cast %196 : vector<64x128xf32> to vector<1x64x128xf32>
    tpu.vector_store %arg11[%c0_131, %c0_132, %c0_133], %199 {strides = array<i32>} : memref<1x64x128xf32, #tpu.memory_space<vmem>>, vector<1x64x128xf32>,
    return
  }
  func.func @transform_0(%arg0: i32) -> (i32, i32, i32) {
    %c0_i32 = arith.constant 0 : i32
    %c0_i32_0 = arith.constant 0 : i32
    %c0_i32_1 = arith.constant 0 : i32
    return %arg0, %c0_i32, %c0_i32_0 : i32, i32, i32
  }
  func.func @transform_1(%arg0: i32) -> (i32, i32, i32) {
    %c0_i32 = arith.constant 0 : i32
    %c0_i32_0 = arith.constant 0 : i32
    %c0_i32_1 = arith.constant 0 : i32
    return %arg0, %c0_i32, %c0_i32_0 : i32, i32, i32
  }
  func.func @transform_2(%arg0: i32) -> (i32, i32) {
    %c0_i32 = arith.constant 0 : i32
    %c0_i32_0 = arith.constant 0 : i32
    %c0_i32_1 = arith.constant 0 : i32
    return %c0_i32, %c0_i32_0 : i32, i32
  }
  func.func @transform_3(%arg0: i32) -> (i32, i32) {
    %c0_i32 = arith.constant 0 : i32
    %c0_i32_0 = arith.constant 0 : i32
    %c0_i32_1 = arith.constant 0 : i32
    return %c0_i32, %c0_i32_0 : i32, i32
  }
  func.func @transform_4(%arg0: i32) -> (i32, i32, i32) {
    %c0_i32 = arith.constant 0 : i32
    %c0_i32_0 = arith.constant 0 : i32
    %c0_i32_1 = arith.constant 0 : i32
    %c0_i32_2 = arith.constant 0 : i32
    return %c0_i32, %c0_i32_0, %c0_i32_1 : i32, i32, i32
  }
  func.func @transform_5(%arg0: i32) -> (i32, i32) {
    %c0_i32 = arith.constant 0 : i32
    %c0_i32_0 = arith.constant 0 : i32
    %c0_i32_1 = arith.constant 0 : i32
    return %c0_i32, %c0_i32_0 : i32, i32
  }
  func.func @transform_6(%arg0: i32) -> (i32, i32, i32) {
    %c0_i32 = arith.constant 0 : i32
    %c0_i32_0 = arith.constant 0 : i32
    %c0_i32_1 = arith.constant 0 : i32
    %c0_i32_2 = arith.constant 0 : i32
    return %c0_i32, %c0_i32_0, %c0_i32_1 : i32, i32, i32
  }
  func.func @transform_7(%arg0: i32) -> (i32, i32) {
    %c0_i32 = arith.constant 0 : i32
    %c0_i32_0 = arith.constant 0 : i32
    %c0_i32_1 = arith.constant 0 : i32
    return %c0_i32, %c0_i32_0 : i32, i32
  }
  func.func @transform_8(%arg0: i32) -> (i32, i32) {
    %c0_i32 = arith.constant 0 : i32
    %c0_i32_0 = arith.constant 0 : i32
    %c0_i32_1 = arith.constant 0 : i32
    return %c0_i32, %c0_i32_0 : i32, i32
  }
  func.func @transform_9(%arg0: i32) -> (i32, i32) {
    %c0_i32 = arith.constant 0 : i32
    %c0_i32_0 = arith.constant 0 : i32
    %c0_i32_1 = arith.constant 0 : i32
    return %c0_i32, %c0_i32_0 : i32, i32
  }
  func.func @transform_10(%arg0: i32) -> (i32, i32, i32) {
    %c0_i32 = arith.constant 0 : i32
    %c0_i32_0 = arith.constant 0 : i32
    %c0_i32_1 = arith.constant 0 : i32
    return %arg0, %c0_i32, %c0_i32_0 : i32, i32, i32
  }
}

</mosaic_0001>

<llo_original>
// kernel: tile.23
$region0: #{tile.23}
  #allocation0 [shape = 's32[1]{0}', space=sflag, size = 0x4, scoped, tag = 'scoped memory for tile.23']
  %s0 = inlined_call_operand.vmem [shape: f32[32], index: 0, kind: input, shape index: {}]
  %s1 = inlined_call_operand.vmem [shape: f32[4,32], index: 1, kind: output, shape index: {}]
  // Predicated region
  $region2: #{tile.23} parent=0 // pred_check
    _
  $region3: #{tile.23} parent=0 // pred_check_branch
    %3 = sbr.rel (0) target = $region5
  $region4: #{tile.23} parent=0 // pred_region
    _
  $region5: #{tile.23} parent=0 // pred_fallthru
    _
  %v4 = vld [vmem:[%s0] ss:$0 sm:$0xff]
  %5 = vst [vmem:[%s1] sm:$0xf] %v4

// kernel: tile.24
$region0: #{tile.24}
  %s0 = inlined_call_operand.vmem [shape: f32[4,32], index: 0, kind: input, shape index: {}]
  %s1 = inlined_call_operand.vmem [shape: f32[1,128], index: 1, kind: output, shape index: {}]
  $region1: #{tile.24} parent=0
    #allocation0 [shape = 'u8[4096]{0}', space=vmem, size = 0x1000, scoped, tag = 'scoped mem for output reshape']
    #allocation1 [shape = 'u8[4096]{0}', space=vmem, size = 0x1000, scoped, tag = 'scoped mem for input reshape']
    %s3 = sshll.u32 1, 4
    %s4 = ssub.s32 %s3, 1
    %v5 = vld [vmem:[%s0] sm:%s4]
    %6 = vst [vmem:[#allocation1] sm:%s4] %v5
    %v7 = vld [vmem:[#allocation1] sm:$0x1]
    %vm8 = vcmask 261120
    %9 = vst.msk [vmem:[#allocation0] sm:$0x1] %vm8, %v7
    %s10 = scalar_lea.vmem [#allocation1], 3
    %v11 = vld [vmem:[%s10] sm:$0x1]
    %12 = vrot.lane.b32.xlu0 %v11, 96
    %v13 = vpop.permute.xlu0 %12
    %vm14 = vcmask 1048320
    %15 = vst.msk [vmem:[#allocation0] sm:$0x1] %vm14, %v13
    %s16 = scalar_lea.vmem [#allocation1], 2
    %v17 = vld [vmem:[%s16] sm:$0x1]
    %18 = vrot.lane.b32.xlu0 %v17, 64
    %v19 = vpop.permute.xlu0 %18
    %vm20 = vcmask 785920
    %21 = vst.msk [vmem:[#allocation0] sm:$0x1] %vm20, %v19
    %s22 = scalar_lea.vmem [#allocation1], 1
    %v23 = vld [vmem:[%s22] sm:$0x1]
    %24 = vrot.lane.b32.xlu0 %v23, 32
    %v25 = vpop.permute.xlu0 %24
    %vm26 = vcmask 523520
    %27 = vst.msk [vmem:[#allocation0] sm:$0x1] %vm26, %v25
    %s29 = sshll.u32 1, 1
    %s30 = ssub.s32 %s29, 1
    %v32 = vld [vmem:[#allocation0] sm:%s30]
    %s33 = sshll.u32 1, 1
    %s34 = ssub.s32 %s33, 1
    %35 = vst [vmem:[%s1] sm:%s34] %v32

// kernel: decoder_block_forward.1
$region0: #{decoder_block_forward.1}
  #allocation0 [shape = 'u32[]', space=smem, size = 0x4, offset = 0x4, fixed_abs, tag = 'smem constant byte address 0x4 - core index']
  #allocation1 [shape = 'u32[144,128]{1,0:T(1,128)}', space=vmem, size = 0x12000, scoped, tag = 'internal scratch']
  #allocation2 [shape = 'bf16[96,256]{1,0:T(8,128)(2,1)}', space=vmem, size = 0xc000, scoped, tag = 'scratch operand']
  #allocation3 [shape = 'bf16[96,128]{1,0:T(8,128)(2,1)}', space=vmem, size = 0x6000, scoped, tag = 'scratch operand']
  %s0 = inlined_call_operand.vmem [shape: bf16[2,64,64], index: 0, kind: input, shape index: {}]
  %s1 = inlined_call_operand.vmem [shape: bf16[2,64,128], index: 1, kind: input, shape index: {}]
  %s2 = inlined_call_operand.vmem [shape: bf16[64,128], index: 2, kind: input, shape index: {}]
  %s3 = inlined_call_operand.vmem [shape: f32[1,128], index: 3, kind: input, shape index: {}]
  %s4 = inlined_call_operand.vmem [shape: bf16[9,256,128], index: 4, kind: input, shape index: {}]
  %s5 = inlined_call_operand.vmem [shape: f32[1,128], index: 5, kind: input, shape index: {}]
  %s6 = inlined_call_operand.vmem [shape: bf16[9,128,128], index: 6, kind: input, shape index: {}]
  %s7 = inlined_call_operand.vmem [shape: f32[1,128], index: 7, kind: input, shape index: {}]
  %s8 = inlined_call_operand.vmem [shape: bf16[32,2], index: 8, kind: input, shape index: {}]
  %s9 = inlined_call_operand.vmem [shape: bf16[2,32], index: 9, kind: input, shape index: {}]
  %s10 = inlined_call_operand.vmem [shape: f32[2,64,128], index: 10, kind: output, shape index: {}]
  %s11 = sld [smem:[#allocation0]]
  $region77: #{decoder_block_forward.1} parent=0
    _
  %s13 = ssub.s32 1, %s11
  %s14 = scalar_select 0, %s13, %s11
  loop: start=0, step=1, limit=4
  $region2: #{decoder_block_forward.1} parent=0 // loop_pre_header
    _
  $region3: #{decoder_block_forward.1} parent=0 // loop_header
    %s16 = sphi 0, %s20
    %p17 = scmp.ge.s32.totalorder %s16, 4
    %s26 = sphi 0, %s28
    %s29 = sphi 0, %s26
    %s30 = sphi 0, %s29
    %s46 = sphi 0, %s30
    %s52 = sphi 0, %s54
    %s55 = sphi 0, %s52
    %s56 = sphi 0, %s55
    %s72 = sphi 0, %s56
    %s76 = sphi 0, %s76
    %s78 = sphi 0, %s76
    %s79 = sphi 0, %s78
    %s93 = sphi 0, %s79
    %s97 = sphi 0, %s97
    %s99 = sphi 0, %s97
    %s100 = sphi 0, %s99
    %s114 = sphi 0, %s100
    %s118 = sphi 0, %s118
    %s120 = sphi 0, %s118
    %s121 = sphi 0, %s120
    %s135 = sphi 0, %s121
    %s139 = sphi 0, %s139
    %s141 = sphi 0, %s139
    %s142 = sphi 0, %s141
    %s156 = sphi 0, %s142
    %s160 = sphi 0, %s160
    %s162 = sphi 0, %s160
    %s163 = sphi 0, %s162
    %s177 = sphi 0, %s163
    %s181 = sphi 0, %s181
    %s183 = sphi 0, %s181
    %s184 = sphi 0, %s183
    %s198 = sphi 0, %s184
    %s202 = sphi 0, %s202
    %s204 = sphi 0, %s202
    %s205 = sphi 0, %s204
    %s219 = sphi 0, %s205
    %s223 = sphi 0, %s223
    %s225 = sphi 0, %s223
    %s226 = sphi 0, %s225
    %s240 = sphi 0, %s226
    %s246 = sphi 0, %s248
    %s249 = sphi 0, %s246
    %s250 = sphi 0, %s249
    %s266 = sphi 0, %s250
  $region4: #{decoder_block_forward.1} parent=0 // loop_header_branch
    %19 = sbr.rel (%p17) target = $region8
  $region5: #{decoder_block_forward.1} parent=0 // loop_body
    %s21 = ssub.s32 %s16, 1
    %s22 = ssub.s32 %s16, 2
    %s23 = sadd.s32 %s16, 1
    %s24 = ssub.s32 %s16, %s23
    %p25 = scmp.eq.s32.totalorder %s24, 0
    %s27 = sadd.s32 %s26, 1
    %s28 = scalar_select %p25, %s26, %s27
    %p31 = pneg %p25
    %p32 = scmp.eq.s32.totalorder %s16, 1
    %p33 = por %p31, %p32
    %p34 = scmp.ne.s32.totalorder %s26, %s29
    %p35 = scmp.eq.s32.totalorder %s16, 0
    %p36 = por %p34, %p35
    %p37 = scmp.ne.s32.totalorder %s26, %s29
    %p38 = scmp.eq.s32.totalorder %s21, 1
    %p39 = por %p37, %p38
    %p40 = scmp.ne.s32.totalorder %s29, %s30
    %p41 = scmp.eq.s32.totalorder %s21, 0
    %p42 = por %p40, %p41
    %p43 = scmp.ne.s32.totalorder %s29, %s30
    %p44 = scmp.eq.s32.totalorder %s22, 1
    %p45 = por %p43, %p44
    %p47 = scmp.ne.s32.totalorder %s30, %s46
    %p48 = scmp.eq.s32.totalorder %s22, 0
    %p49 = por %p47, %p48
    %s50 = ssub.s32 %s16, %s23
    %p51 = scmp.eq.s32.totalorder %s50, 0
    %s53 = sadd.s32 %s52, 1
    %s54 = scalar_select %p51, %s52, %s53
    %p57 = pneg %p51
    %p58 = scmp.eq.s32.totalorder %s16, 1
    %p59 = por %p57, %p58
    %p60 = scmp.ne.s32.totalorder %s52, %s55
    %p61 = scmp.eq.s32.totalorder %s16, 0
    %p62 = por %p60, %p61
    %p63 = scmp.ne.s32.totalorder %s52, %s55
    %p64 = scmp.eq.s32.totalorder %s21, 1
    %p65 = por %p63, %p64
    %p66 = scmp.ne.s32.totalorder %s55, %s56
    %p67 = scmp.eq.s32.totalorder %s21, 0
    %p68 = por %p66, %p67
    %p69 = scmp.ne.s32.totalorder %s55, %s56
    %p70 = scmp.eq.s32.totalorder %s22, 1
    %p71 = por %p69, %p70
    %p73 = scmp.ne.s32.totalorder %s56, %s72
    %p74 = scmp.eq.s32.totalorder %s22, 0
    %p75 = por %p73, %p74
    %s77 = sadd.s32 %s76, 1
    %p80 = scmp.eq.s32.totalorder %s16, 1
    %p81 = scmp.ne.s32.totalorder %s76, %s78
    %p82 = scmp.eq.s32.totalorder %s16, 0
    %p83 = por %p81, %p82
    %p84 = scmp.ne.s32.totalorder %s76, %s78
    %p85 = scmp.eq.s32.totalorder %s21, 1
    %p86 = por %p84, %p85
    %p87 = scmp.ne.s32.totalorder %s78, %s79
    %p88 = scmp.eq.s32.totalorder %s21, 0
    %p89 = por %p87, %p88
    %p90 = scmp.ne.s32.totalorder %s78, %s79
    %p91 = scmp.eq.s32.totalorder %s22, 1
    %p92 = por %p90, %p91
    %p94 = scmp.ne.s32.totalorder %s79, %s93
    %p95 = scmp.eq.s32.totalorder %s22, 0
    %p96 = por %p94, %p95
    %s98 = sadd.s32 %s97, 1
    %p101 = scmp.eq.s32.totalorder %s16, 1
    %p102 = scmp.ne.s32.totalorder %s97, %s99
    %p103 = scmp.eq.s32.totalorder %s16, 0
    %p104 = por %p102, %p103
    %p105 = scmp.ne.s32.totalorder %s97, %s99
    %p106 = scmp.eq.s32.totalorder %s21, 1
    %p107 = por %p105, %p106
    %p108 = scmp.ne.s32.totalorder %s99, %s100
    %p109 = scmp.eq.s32.totalorder %s21, 0
    %p110 = por %p108, %p109
    %p111 = scmp.ne.s32.totalorder %s99, %s100
    %p112 = scmp.eq.s32.totalorder %s22, 1
    %p113 = por %p111, %p112
    %p115 = scmp.ne.s32.totalorder %s100, %s114
    %p116 = scmp.eq.s32.totalorder %s22, 0
    %p117 = por %p115, %p116
    %s119 = sadd.s32 %s118, 1
    %p122 = scmp.eq.s32.totalorder %s16, 1
    %p123 = scmp.ne.s32.totalorder %s118, %s120
    %p124 = scmp.eq.s32.totalorder %s16, 0
    %p125 = por %p123, %p124
    %p126 = scmp.ne.s32.totalorder %s118, %s120
    %p127 = scmp.eq.s32.totalorder %s21, 1
    %p128 = por %p126, %p127
    %p129 = scmp.ne.s32.totalorder %s120, %s121
    %p130 = scmp.eq.s32.totalorder %s21, 0
    %p131 = por %p129, %p130
    %p132 = scmp.ne.s32.totalorder %s120, %s121
    %p133 = scmp.eq.s32.totalorder %s22, 1
    %p134 = por %p132, %p133
    %p136 = scmp.ne.s32.totalorder %s121, %s135
    %p137 = scmp.eq.s32.totalorder %s22, 0
    %p138 = por %p136, %p137
    %s140 = sadd.s32 %s139, 1
    %p143 = scmp.eq.s32.totalorder %s16, 1
    %p144 = scmp.ne.s32.totalorder %s139, %s141
    %p145 = scmp.eq.s32.totalorder %s16, 0
    %p146 = por %p144, %p145
    %p147 = scmp.ne.s32.totalorder %s139, %s141
    %p148 = scmp.eq.s32.totalorder %s21, 1
    %p149 = por %p147, %p148
    %p150 = scmp.ne.s32.totalorder %s141, %s142
    %p151 = scmp.eq.s32.totalorder %s21, 0
    %p152 = por %p150, %p151
    %p153 = scmp.ne.s32.totalorder %s141, %s142
    %p154 = scmp.eq.s32.totalorder %s22, 1
    %p155 = por %p153, %p154
    %p157 = scmp.ne.s32.totalorder %s142, %s156
    %p158 = scmp.eq.s32.totalorder %s22, 0
    %p159 = por %p157, %p158
    %s161 = sadd.s32 %s160, 1
    %p164 = scmp.eq.s32.totalorder %s16, 1
    %p165 = scmp.ne.s32.totalorder %s160, %s162
    %p166 = scmp.eq.s32.totalorder %s16, 0
    %p167 = por %p165, %p166
    %p168 = scmp.ne.s32.totalorder %s160, %s162
    %p169 = scmp.eq.s32.totalorder %s21, 1
    %p170 = por %p168, %p169
    %p171 = scmp.ne.s32.totalorder %s162, %s163
    %p172 = scmp.eq.s32.totalorder %s21, 0
    %p173 = por %p171, %p172
    %p174 = scmp.ne.s32.totalorder %s162, %s163
    %p175 = scmp.eq.s32.totalorder %s22, 1
    %p176 = por %p174, %p175
    %p178 = scmp.ne.s32.totalorder %s163, %s177
    %p179 = scmp.eq.s32.totalorder %s22, 0
    %p180 = por %p178, %p179
    %s182 = sadd.s32 %s181, 1
    %p185 = scmp.eq.s32.totalorder %s16, 1
    %p186 = scmp.ne.s32.totalorder %s181, %s183
    %p187 = scmp.eq.s32.totalorder %s16, 0
    %p188 = por %p186, %p187
    %p189 = scmp.ne.s32.totalorder %s181, %s183
    %p190 = scmp.eq.s32.totalorder %s21, 1
    %p191 = por %p189, %p190
    %p192 = scmp.ne.s32.totalorder %s183, %s184
    %p193 = scmp.eq.s32.totalorder %s21, 0
    %p194 = por %p192, %p193
    %p195 = scmp.ne.s32.totalorder %s183, %s184
    %p196 = scmp.eq.s32.totalorder %s22, 1
    %p197 = por %p195, %p196
    %p199 = scmp.ne.s32.totalorder %s184, %s198
    %p200 = scmp.eq.s32.totalorder %s22, 0
    %p201 = por %p199, %p200
    %s203 = sadd.s32 %s202, 1
    %p206 = scmp.eq.s32.totalorder %s16, 1
    %p207 = scmp.ne.s32.totalorder %s202, %s204
    %p208 = scmp.eq.s32.totalorder %s16, 0
    %p209 = por %p207, %p208
    %p210 = scmp.ne.s32.totalorder %s202, %s204
    %p211 = scmp.eq.s32.totalorder %s21, 1
    %p212 = por %p210, %p211
    %p213 = scmp.ne.s32.totalorder %s204, %s205
    %p214 = scmp.eq.s32.totalorder %s21, 0
    %p215 = por %p213, %p214
    %p216 = scmp.ne.s32.totalorder %s204, %s205
    %p217 = scmp.eq.s32.totalorder %s22, 1
    %p218 = por %p216, %p217
    %p220 = scmp.ne.s32.totalorder %s205, %s219
    %p221 = scmp.eq.s32.totalorder %s22, 0
    %p222 = por %p220, %p221
    %s224 = sadd.s32 %s223, 1
    %p227 = scmp.eq.s32.totalorder %s16, 1
    %p228 = scmp.ne.s32.totalorder %s223, %s225
    %p229 = scmp.eq.s32.totalorder %s16, 0
    %p230 = por %p228, %p229
    %p231 = scmp.ne.s32.totalorder %s223, %s225
    %p232 = scmp.eq.s32.totalorder %s21, 1
    %p233 = por %p231, %p232
    %p234 = scmp.ne.s32.totalorder %s225, %s226
    %p235 = scmp.eq.s32.totalorder %s21, 0
    %p236 = por %p234, %p235
    %p237 = scmp.ne.s32.totalorder %s225, %s226
    %p238 = scmp.eq.s32.totalorder %s22, 1
    %p239 = por %p237, %p238
    %p241 = scmp.ne.s32.totalorder %s226, %s240
    %p242 = scmp.eq.s32.totalorder %s22, 0
    %p243 = por %p241, %p242
    %s244 = ssub.s32 %s16, %s23
    %p245 = scmp.eq.s32.totalorder %s244, 0
    %s247 = sadd.s32 %s246, 1
    %s248 = scalar_select %p245, %s246, %s247
    %p251 = pneg %p245
    %p252 = scmp.eq.s32.totalorder %s16, 1
    %p253 = por %p251, %p252
    %p254 = scmp.ne.s32.totalorder %s246, %s249
    %p255 = scmp.eq.s32.totalorder %s16, 0
    %p256 = por %p254, %p255
    %p257 = scmp.ne.s32.totalorder %s246, %s249
    %p258 = scmp.eq.s32.totalorder %s21, 1
    %p259 = por %p257, %p258
    %p260 = scmp.ne.s32.totalorder %s249, %s250
    %p261 = scmp.eq.s32.totalorder %s21, 0
    %p262 = por %p260, %p261
    %p263 = scmp.ne.s32.totalorder %s249, %s250
    %p264 = scmp.eq.s32.totalorder %s22, 1
    %p265 = por %p263, %p264
    %p267 = scmp.ne.s32.totalorder %s250, %s266
    %p268 = scmp.eq.s32.totalorder %s22, 0
    %p269 = por %p267, %p268
    %p270 = scmp.le.s32.totalorder 1, %s16
    %p271 = scmp.lt.s32.totalorder %s16, 3
    %p272 = pnand %p270, %p271
    %p273 = pneg %p272
    // Predicated region
    $region9: #{decoder_block_forward.1} parent=5 // pred_check
      _
    $region10: #{decoder_block_forward.1} parent=5 // pred_check_branch
      %275 = sbr.rel (%p272) target = $region12
    $region11: #{decoder_block_forward.1} parent=5 // pred_region
      %s276 = ssub.s32 %s16, 1
      // Predicated region
      $region13: #{decoder_block_forward.1} parent=11 // pred_check
        %p277 = pneg %p89
      $region14: #{decoder_block_forward.1} parent=11 // pred_check_branch
        %279 = sbr.rel (%p277) target = $region16
      $region15: #{decoder_block_forward.1} parent=11 // pred_region
        _
      $region16: #{decoder_block_forward.1} parent=11 // pred_fallthru
        _
      // Predicated region
      $region17: #{decoder_block_forward.1} parent=11 // pred_check
        %p280 = pneg %p110
      $region18: #{decoder_block_forward.1} parent=11 // pred_check_branch
        %282 = sbr.rel (%p280) target = $region20
      $region19: #{decoder_block_forward.1} parent=11 // pred_region
        _
      $region20: #{decoder_block_forward.1} parent=11 // pred_fallthru
        _
      // Predicated region
      $region21: #{decoder_block_forward.1} parent=11 // pred_check
        %p283 = pneg %p131
      $region22: #{decoder_block_forward.1} parent=11 // pred_check_branch
        %285 = sbr.rel (%p283) target = $region24
      $region23: #{decoder_block_forward.1} parent=11 // pred_region
        _
      $region24: #{decoder_block_forward.1} parent=11 // pred_fallthru
        _
      // Predicated region
      $region25: #{decoder_block_forward.1} parent=11 // pred_check
        %p286 = pneg %p152
      $region26: #{decoder_block_forward.1} parent=11 // pred_check_branch
        %288 = sbr.rel (%p286) target = $region28
      $region27: #{decoder_block_forward.1} parent=11 // pred_region
        _
      $region28: #{decoder_block_forward.1} parent=11 // pred_fallthru
        _
      // Predicated region
      $region29: #{decoder_block_forward.1} parent=11 // pred_check
        %p289 = pneg %p173
      $region30: #{decoder_block_forward.1} parent=11 // pred_check_branch
        %291 = sbr.rel (%p289) target = $region32
      $region31: #{decoder_block_forward.1} parent=11 // pred_region
        _
      $region32: #{decoder_block_forward.1} parent=11 // pred_fallthru
        _
      // Predicated region
      $region33: #{decoder_block_forward.1} parent=11 // pred_check
        %p292 = pneg %p194
      $region34: #{decoder_block_forward.1} parent=11 // pred_check_branch
        %294 = sbr.rel (%p292) target = $region36
      $region35: #{decoder_block_forward.1} parent=11 // pred_region
        _
      $region36: #{decoder_block_forward.1} parent=11 // pred_fallthru
        _
      // Predicated region
      $region37: #{decoder_block_forward.1} parent=11 // pred_check
        %p295 = pneg %p215
      $region38: #{decoder_block_forward.1} parent=11 // pred_check_branch
        %297 = sbr.rel (%p295) target = $region40
      $region39: #{decoder_block_forward.1} parent=11 // pred_region
        _
      $region40: #{decoder_block_forward.1} parent=11 // pred_fallthru
        _
      // Predicated region
      $region41: #{decoder_block_forward.1} parent=11 // pred_check
        %p298 = pneg %p236
      $region42: #{decoder_block_forward.1} parent=11 // pred_check_branch
        %300 = sbr.rel (%p298) target = $region44
      $region43: #{decoder_block_forward.1} parent=11 // pred_region
        _
      $region44: #{decoder_block_forward.1} parent=11 // pred_fallthru
        _
    $region12: #{decoder_block_forward.1} parent=5 // pred_fallthru
      _
    %p301 = scmp.lt.s32.totalorder %s16, 2
    // Predicated region
    $region45: #{decoder_block_forward.1} parent=5 // pred_check
      %p302 = pneg %p301
    $region46: #{decoder_block_forward.1} parent=5 // pred_check_branch
      %304 = sbr.rel (%p302) target = $region48
    $region47: #{decoder_block_forward.1} parent=5 // pred_region
      // Predicated region
      $region49: #{decoder_block_forward.1} parent=47 // pred_check
        %p305 = pneg %p36
      $region50: #{decoder_block_forward.1} parent=47 // pred_check_branch
        %307 = sbr.rel (%p305) target = $region52
      $region51: #{decoder_block_forward.1} parent=47 // pred_region
        %p308 = scmp.lt.s32.totalorder %s16, 1
        %s309 = scalar_select %p308, %s16, 1
        %s310 = smul.addr %s309, 8
        %s311 = smul.addr %s310, 4
        %s312 = scalar_lea.vmem %s0, %s311
      $region52: #{decoder_block_forward.1} parent=47 // pred_fallthru
        _
      // Predicated region
      $region53: #{decoder_block_forward.1} parent=47 // pred_check
        %p313 = pneg %p62
      $region54: #{decoder_block_forward.1} parent=47 // pred_check_branch
        %315 = sbr.rel (%p313) target = $region56
      $region55: #{decoder_block_forward.1} parent=47 // pred_region
        %p316 = scmp.lt.s32.totalorder %s16, 1
        %s317 = scalar_select %p316, %s16, 1
        %s318 = smul.addr %s317, 8
        %s319 = smul.addr %s318, 4
        %s320 = scalar_lea.vmem %s1, %s319
      $region56: #{decoder_block_forward.1} parent=47 // pred_fallthru
        _
    $region48: #{decoder_block_forward.1} parent=5 // pred_fallthru
      _
    %p321 = scmp.le.s32.totalorder 1, %s16
    %p322 = scmp.lt.s32.totalorder %s16, 3
    %p323 = pnand %p321, %p322
    %p324 = pneg %p323
    // Predicated region
    $region57: #{decoder_block_forward.1} parent=5 // pred_check
      _
    $region58: #{decoder_block_forward.1} parent=5 // pred_check_branch
      %326 = sbr.rel (%p323) target = $region60
    $region59: #{decoder_block_forward.1} parent=5 // pred_region
      %s327 = ssub.s32 %s16, 1
      %p328 = scmp.lt.s32.totalorder %s21, 1
      %s329 = scalar_select %p328, %s21, 1
      %s330 = smul.addr %s329, 8
      %s331 = smul.addr %s330, 4
      %s332 = scalar_lea.vmem %s0, %s331
      %p333 = pneg %p42
      %p334 = pneg %p39
      %p335 = scmp.lt.s32.totalorder %s21, 1
      %s336 = scalar_select %p335, %s21, 1
      %s337 = smul.addr %s336, 8
      %s338 = smul.addr %s337, 4
      %s339 = scalar_lea.vmem %s1, %s338
      %p340 = pneg %p68
      %p341 = pneg %p65
      %p342 = pneg %p89
      %p343 = pneg %p86
      %p344 = pneg %p110
      %p345 = pneg %p107
      %p346 = pneg %p131
      %p347 = pneg %p128
      %p348 = pneg %p152
      %p349 = pneg %p149
      %p350 = pneg %p173
      %p351 = pneg %p170
      %p352 = pneg %p194
      %p353 = pneg %p191
      %p354 = pneg %p215
      %p355 = pneg %p212
      %p356 = pneg %p236
      %p357 = pneg %p233
      %p358 = pneg %p262
      %p359 = pneg %p259
      %p360 = scmp.lt.s32.totalorder %s21, 1
      %s361 = scalar_select %p360, %s21, 1
      %s362 = smul.addr %s361, 8
      %s363 = smul.addr %s362, 8
      %s364 = scalar_lea.vmem %s10, %s363
      %p365 = scmp.lt.s32.totalorder %s21, 1
      %s366 = scalar_select %p365, %s21, 1
      %s367 = smul.addr %s366, 8
      %s368 = smul.addr %s367, 4
      %s369 = scalar_lea.vmem %s0, %s368
      %p370 = scmp.lt.s32.totalorder %s21, 1
      %s371 = scalar_select %p370, %s21, 1
      %s372 = smul.addr %s371, 8
      %s373 = smul.addr %s372, 4
      %s374 = scalar_lea.vmem %s1, %s373
      %p375 = scmp.lt.s32.totalorder %s21, 1
      %s376 = scalar_select %p375, %s21, 1
      %s377 = smul.addr %s376, 8
      %s378 = smul.addr %s377, 8
      %s379 = scalar_lea.vmem %s10, %s378
      %p381 = scmp.eq.s32.totalorder %s21, 0
      // Predicated region
      $region61: #{decoder_block_forward.1} parent=59 // pred_check
        %p382 = pneg %p381
      $region62: #{decoder_block_forward.1} parent=59 // pred_check_branch
        %384 = sbr.rel (%p382) target = $region64
      $region63: #{decoder_block_forward.1} parent=59 // pred_region
        %385 = vst [vmem:[#allocation2] sm:$0xff] 0
        %386 = vst [vmem:[#allocation2 + $0x8] sm:$0xff] 0
        %387 = vst [vmem:[#allocation2 + $0x50] sm:$0xff] 0
        %388 = vst [vmem:[#allocation2 + $0x58] sm:$0xff] 0
        %389 = vst [vmem:[#allocation3] sm:$0xf] 0
        %390 = vst [vmem:[#allocation3 + $0x4] sm:$0xf] 0
        %391 = vst [vmem:[#allocation3 + $0x28] sm:$0xf] 0
        %392 = vst [vmem:[#allocation3 + $0x2c] sm:$0xf] 0
      $region64: #{decoder_block_forward.1} parent=59 // pred_fallthru
        _
      %v393 = vld [vmem:[%s369] sm:$0xf]
      %v394 = vld [vmem:[%s369 + $0x4] sm:$0xf]
      %v395 = vld [vmem:[%s369 + $0x8] sm:$0xf]
      %v396 = vld [vmem:[%s369 + $0xc] sm:$0xf]
      %v397 = vld [vmem:[%s369 + $0x10] sm:$0xf]
      %v398 = vld [vmem:[%s369 + $0x14] sm:$0xf]
      %v399 = vld [vmem:[%s369 + $0x18] sm:$0xf]
      %v400 = vld [vmem:[%s369 + $0x1c] sm:$0xf]
      %v401 = vld [vmem:[%s2] sm:$0xf]
      %v402 = vld [vmem:[%s2 + $0x4] sm:$0xf]
      %v403 = vld [vmem:[%s2 + $0x8] sm:$0xf]
      %v404 = vld [vmem:[%s2 + $0xc] sm:$0xf]
      %v405 = vld [vmem:[%s2 + $0x10] sm:$0xf]
      %v406 = vld [vmem:[%s2 + $0x14] sm:$0xf]
      %v407 = vld [vmem:[%s2 + $0x18] sm:$0xf]
      %v408 = vld [vmem:[%s2 + $0x1c] sm:$0xf]
      %v409 = vld [vmem:[%s3] sm:$0x1]
      %v411 = vlaneseq
      %v412 = vshrl.u32 %v411, 7
      %v413 = vsub.s32 0, %v412
      %v414 = vrot.slane %v409, %v413
      %v424 = vunpack.c.l.b16 %v393
      %v425 = vunpack.c.l.b16 %v394
      %v426 = vunpack.c.l.b16 %v395
      %v427 = vunpack.c.l.b16 %v396
      %v428 = vunpack.c.l.b16 %v397
      %v429 = vunpack.c.l.b16 %v398
      %v430 = vunpack.c.l.b16 %v399
      %v431 = vunpack.c.l.b16 %v400
      %v432 = vpack.c.b16 %v425, %v424
      %v433 = vpack.c.b16 %v427, %v426
      %v434 = vpack.c.b16 %v429, %v428
      %v435 = vpack.c.b16 %v431, %v430
      %v444 = vunpack.c.l.b16 %v401
      %v445 = vunpack.c.l.b16 %v402
      %v446 = vunpack.c.l.b16 %v403
      %v447 = vunpack.c.l.b16 %v404
      %v448 = vunpack.c.l.b16 %v405
      %v449 = vunpack.c.l.b16 %v406
      %v450 = vunpack.c.l.b16 %v407
      %v451 = vunpack.c.l.b16 %v408
      %v452 = vpack.c.b16 %v445, %v444
      %v453 = vpack.c.b16 %v447, %v446
      %v454 = vpack.c.b16 %v449, %v448
      %v455 = vpack.c.b16 %v451, %v450
      %vm460 = vcmask 523264
      %v462 = vsel %vm460, %v432, 0
      %v465 = vsel %vm460, %v433, 0
      %v468 = vsel %vm460, %v434, 0
      %v471 = vsel %vm460, %v435, 0
      %473 = vmatprep.subr.bf16.mxu0 0
      %474 = vmatpush1.bf16.msra.mxu0 0
      %475 = vmatprep.subr.bf16.mxu0 0
      %476 = vmatpush1.bf16.msra.mxu0 0
      %477 = vmatprep.subr.bf16.mxu0 0
      %478 = vmatpush1.bf16.msra.mxu0 0
      %479 = vmatprep.subr.bf16.mxu0 0
      %480 = vmatpush1.bf16.msra.mxu0 0
      %481 = vmatprep.subr.bf16.mxu0 0
      %482 = vmatpush1.bf16.msra.mxu0 %v455
      %483 = vmatprep.subr.bf16.mxu0 0
      %484 = vmatpush1.bf16.msra.mxu0 %v454
      %485 = vmatprep.subr.bf16.mxu0 0
      %486 = vmatpush1.bf16.msra.mxu0 %v453
      %487 = vmatprep.subr.bf16.mxu0 0
      %488 = vmatpush1.bf16.msra.mxu0 %v452
      %489 = vmatprep.subr.bf16.mxu0 0
      %490 = vmatpush2.bf16.msra.mxu0 0
      %491 = vmatprep.subr.bf16.mxu0 0
      %492 = vmatpush2.bf16.msra.mxu0 0
      %493 = vmatprep.subr.bf16.mxu0 0
      %494 = vmatpush2.bf16.msra.mxu0 0
      %495 = vmatprep.subr.bf16.mxu0 0
      %496 = vmatpush2.bf16.msra.mxu0 0
      %497 = vmatprep.subr.bf16.mxu0 0
      %498 = vmatpush2.bf16.msra.mxu0 0
      %499 = vmatprep.subr.bf16.mxu0 0
      %500 = vmatpush2.bf16.msra.mxu0 0
      %501 = vmatprep.subr.bf16.mxu0 0
      %502 = vmatpush2.bf16.msra.mxu0 0
      %503 = vmatprep.subr.bf16.mxu0 0
      %504 = vmatpush2.bf16.msra.mxu0 0
      %505 = vmatprep.mubr.bf16.mxu0 0
      %506 = vmatmul.mubr.bf16.gmra.mxu0 %v462
      %v507 = vpop.f32.mrf.mxu0
      %v508 = vadd.f32 %v414, %v507
      %v509 = vpop.f32.mrf.mxu0
      %v510 = vpop.f32.mrf.mxu0
      %v511 = vadd.f32 %v414, %v510
      %v512 = vpop.f32.mrf.mxu0
      %513 = vmatprep.mubr.bf16.mxu0 0
      %514 = vmatmul.mubr.bf16.gmra.mxu0 %v465
      %v515 = vpop.f32.mrf.mxu0
      %v516 = vadd.f32 %v414, %v515
      %v517 = vpop.f32.mrf.mxu0
      %v518 = vpop.f32.mrf.mxu0
      %v519 = vadd.f32 %v414, %v518
      %v520 = vpop.f32.mrf.mxu0
      %521 = vmatprep.mubr.bf16.mxu0 0
      %522 = vmatmul.mubr.bf16.gmra.mxu0 %v468
      %v523 = vpop.f32.mrf.mxu0
      %v524 = vadd.f32 %v414, %v523
      %v525 = vpop.f32.mrf.mxu0
      %v526 = vpop.f32.mrf.mxu0
      %v527 = vadd.f32 %v414, %v526
      %v528 = vpop.f32.mrf.mxu0
      %529 = vmatprep.mubr.bf16.mxu0 0
      %530 = vmatmul.mubr.bf16.gmra.mxu0 %v471
      %v531 = vpop.f32.mrf.mxu0
      %v532 = vadd.f32 %v414, %v531
      %v533 = vpop.f32.mrf.mxu0
      %v534 = vpop.f32.mrf.mxu0
      %v535 = vadd.f32 %v414, %v534
      %v536 = vpop.f32.mrf.mxu0
      %537 = vdwg.mxu0
      %v538 = vpack.c.bf16 %v511, %v508
      %v539 = vpack.c.bf16 %v519, %v516
      %v540 = vpack.c.bf16 %v527, %v524
      %v541 = vpack.c.bf16 %v535, %v532
      %v546 = vunpack.c.l.b16 %v538
      %v547 = vunpack.c.h.b16 %v538
      %v548 = vunpack.c.l.b16 %v539
      %v549 = vunpack.c.h.b16 %v539
      %v550 = vunpack.c.l.b16 %v540
      %v551 = vunpack.c.h.b16 %v540
      %v552 = vunpack.c.l.b16 %v541
      %v553 = vunpack.c.h.b16 %v541
      %v554 = vpack.c.b16 %v546, %v546
      %v555 = vpack.c.b16 %v547, %v547
      %v556 = vpack.c.b16 %v548, %v548
      %v557 = vpack.c.b16 %v549, %v549
      %v558 = vpack.c.b16 %v550, %v550
      %v559 = vpack.c.b16 %v551, %v551
      %v560 = vpack.c.b16 %v552, %v552
      %v561 = vpack.c.b16 %v553, %v553
      %570 = vst [vmem:[#allocation2 + $0x10] sm:$0xf] %v554
      %571 = vst [vmem:[#allocation2 + $0x18] sm:$0xf] %v555
      %572 = vst [vmem:[#allocation2 + $0x20] sm:$0xf] %v556
      %573 = vst [vmem:[#allocation2 + $0x28] sm:$0xf] %v557
      %574 = vst [vmem:[#allocation2 + $0x30] sm:$0xf] %v558
      %575 = vst [vmem:[#allocation2 + $0x38] sm:$0xf] %v559
      %576 = vst [vmem:[#allocation2 + $0x40] sm:$0xf] %v560
      %577 = vst [vmem:[#allocation2 + $0x48] sm:$0xf] %v561
      %v578 = vld [vmem:[%s374] sm:$0xf]
      %v579 = vld [vmem:[%s374 + $0x4] sm:$0xf]
      %v580 = vld [vmem:[%s374 + $0x8] sm:$0xf]
      %v581 = vld [vmem:[%s374 + $0xc] sm:$0xf]
      %v582 = vld [vmem:[%s374 + $0x10] sm:$0xf]
      %v583 = vld [vmem:[%s374 + $0x14] sm:$0xf]
      %v584 = vld [vmem:[%s374 + $0x18] sm:$0xf]
      %v585 = vld [vmem:[%s374 + $0x1c] sm:$0xf]
      %586 = vst [vmem:[#allocation2 + $0x14] sm:$0xf] %v578
      %587 = vst [vmem:[#allocation2 + $0x1c] sm:$0xf] %v579
      %588 = vst [vmem:[#allocation2 + $0x24] sm:$0xf] %v580
      %589 = vst [vmem:[#allocation2 + $0x2c] sm:$0xf] %v581
      %590 = vst [vmem:[#allocation2 + $0x34] sm:$0xf] %v582
      %591 = vst [vmem:[#allocation2 + $0x3c] sm:$0xf] %v583
      %592 = vst [vmem:[#allocation2 + $0x44] sm:$0xf] %v584
      %593 = vst [vmem:[#allocation2 + $0x4c] sm:$0xf] %v585
      %v594 = vlaneseq
      %v595 = vshrl.u32 %v594, 7
      %v596 = vadd.s32 %v595, 8
      %v597 = vadd.s32 %v595, 16
      %v598 = vadd.s32 %v595, 24
      %v599 = vadd.s32 %v595, 32
      %v600 = vadd.s32 %v595, 40
      %v601 = vadd.s32 %v595, 48
      %v602 = vadd.s32 %v595, 56
      %vm603 = vcmp.lt.s32.totalorder %v595, 0
      %v604 = vsub.s32 0, %v595
      %v605 = vsel %vm603, %v604, %v595
      %v606 = vshrl.u32 %v605, 3
      %v607 = vand.u32 %v605, 7
      %v608 = vsub.s32 0, %v607
      %v609 = vsel %vm603, %v608, %v607
      %vm610 = vcmp.lt.s32.totalorder %v596, 0
      %v611 = vsub.s32 0, %v596
      %v612 = vsel %vm610, %v611, %v596
      %v613 = vshrl.u32 %v612, 3
      %v614 = vand.u32 %v612, 7
      %v615 = vsub.s32 0, %v614
      %v616 = vsel %vm610, %v615, %v614
      %vm617 = vcmp.lt.s32.totalorder %v597, 0
      %v618 = vsub.s32 0, %v597
      %v619 = vsel %vm617, %v618, %v597
      %v620 = vshrl.u32 %v619, 3
      %v621 = vand.u32 %v619, 7
      %v622 = vsub.s32 0, %v621
      %v623 = vsel %vm617, %v622, %v621
      %vm624 = vcmp.lt.s32.totalorder %v598, 0
      %v625 = vsub.s32 0, %v598
      %v626 = vsel %vm624, %v625, %v598
      %v627 = vshrl.u32 %v626, 3
      %v628 = vand.u32 %v626, 7
      %v629 = vsub.s32 0, %v628
      %v630 = vsel %vm624, %v629, %v628
      %vm631 = vcmp.lt.s32.totalorder %v599, 0
      %v632 = vsub.s32 0, %v599
      %v633 = vsel %vm631, %v632, %v599
      %v634 = vshrl.u32 %v633, 3
      %v635 = vand.u32 %v633, 7
      %v636 = vsub.s32 0, %v635
      %v637 = vsel %vm631, %v636, %v635
      %vm638 = vcmp.lt.s32.totalorder %v600, 0
      %v639 = vsub.s32 0, %v600
      %v640 = vsel %vm638, %v639, %v600
      %v641 = vshrl.u32 %v640, 3
      %v642 = vand.u32 %v640, 7
      %v643 = vsub.s32 0, %v642
      %v644 = vsel %vm638, %v643, %v642
      %vm645 = vcmp.lt.s32.totalorder %v601, 0
      %v646 = vsub.s32 0, %v601
      %v647 = vsel %vm645, %v646, %v601
      %v648 = vshrl.u32 %v647, 3
      %v649 = vand.u32 %v647, 7
      %v650 = vsub.s32 0, %v649
      %v651 = vsel %vm645, %v650, %v649
      %vm652 = vcmp.lt.s32.totalorder %v602, 0
      %v653 = vsub.s32 0, %v602
      %v654 = vsel %vm652, %v653, %v602
      %v655 = vshrl.u32 %v654, 3
      %v656 = vand.u32 %v654, 7
      %v657 = vsub.s32 0, %v656
      %v658 = vsel %vm652, %v657, %v656
      %vm659 = vcmp.ne.s32.totalorder %v609, 0
      %vm660 = vcmp.ne.s32.totalorder %v616, 0
      %vm661 = vcmp.ne.s32.totalorder %v623, 0
      %vm662 = vcmp.ne.s32.totalorder %v630, 0
      %vm663 = vcmp.ne.s32.totalorder %v637, 0
      %vm664 = vcmp.ne.s32.totalorder %v644, 0
      %vm665 = vcmp.ne.s32.totalorder %v651, 0
      %vm666 = vcmp.ne.s32.totalorder %v658, 0
      %vm667 = vcmp.lt.s32.totalorder %v609, 0
      %vm668 = vcmp.lt.s32.totalorder %v616, 0
      %vm669 = vcmp.lt.s32.totalorder %v623, 0
      %vm670 = vcmp.lt.s32.totalorder %v630, 0
      %vm671 = vcmp.lt.s32.totalorder %v637, 0
      %vm672 = vcmp.lt.s32.totalorder %v644, 0
      %vm673 = vcmp.lt.s32.totalorder %v651, 0
      %vm674 = vcmp.lt.s32.totalorder %v658, 0
      %vm675 = vmand %vm667, %vm659
      %vm676 = vmand %vm668, %vm660
      %vm677 = vmand %vm669, %vm661
      %vm678 = vmand %vm670, %vm662
      %vm679 = vmand %vm671, %vm663
      %vm680 = vmand %vm672, %vm664
      %vm681 = vmand %vm673, %vm665
      %vm682 = vmand %vm674, %vm666
      %v683 = vadd.s32 %v609, 8
      %v684 = vadd.s32 %v616, 8
      %v685 = vadd.s32 %v623, 8
      %v686 = vadd.s32 %v630, 8
      %v687 = vadd.s32 %v637, 8
      %v688 = vadd.s32 %v644, 8
      %v689 = vadd.s32 %v651, 8
      %v690 = vadd.s32 %v658, 8
      %v691 = vsel %vm675, %v683, %v609
      %v692 = vsel %vm676, %v684, %v616
      %v693 = vsel %vm677, %v685, %v623
      %v694 = vsel %vm678, %v686, %v630
      %v695 = vsel %vm679, %v687, %v637
      %v696 = vsel %vm680, %v688, %v644
      %v697 = vsel %vm681, %v689, %v651
      %v698 = vsel %vm682, %v690, %v658
      %vm699 = vcmp.gt.s32.totalorder %v691, 0
      %vm700 = vcmp.gt.s32.totalorder %v692, 0
      %vm701 = vcmp.gt.s32.totalorder %v693, 0
      %vm702 = vcmp.gt.s32.totalorder %v694, 0
      %vm703 = vcmp.gt.s32.totalorder %v695, 0
      %vm704 = vcmp.gt.s32.totalorder %v696, 0
      %vm705 = vcmp.gt.s32.totalorder %v697, 0
      %vm706 = vcmp.gt.s32.totalorder %v698, 0
      %v707 = vsel %vm699, 1, 0
      %v708 = vsel %vm700, 1, 0
      %v709 = vsel %vm701, 1, 0
      %v710 = vsel %vm702, 1, 0
      %v711 = vsel %vm703, 1, 0
      %v712 = vsel %vm704, 1, 0
      %v713 = vsel %vm705, 1, 0
      %v714 = vsel %vm706, 1, 0
      %v715 = vcvt.s32.f32 %v707
      %v716 = vcvt.s32.f32 %v708
      %v717 = vcvt.s32.f32 %v709
      %v718 = vcvt.s32.f32 %v710
      %v719 = vcvt.s32.f32 %v711
      %v720 = vcvt.s32.f32 %v712
      %v721 = vcvt.s32.f32 %v713
      %v722 = vcvt.s32.f32 %v714
      %v723 = vpack.c.bf16 %v716, %v715
      %v724 = vpack.c.bf16 %v718, %v717
      %v725 = vpack.c.bf16 %v720, %v719
      %v726 = vpack.c.bf16 %v722, %v721
      %vm727 = vcmp.lt.s32.totalorder %v691, 7
      %vm728 = vcmp.lt.s32.totalorder %v692, 7
      %vm729 = vcmp.lt.s32.totalorder %v693, 7
      %vm730 = vcmp.lt.s32.totalorder %v694, 7
      %vm731 = vcmp.lt.s32.totalorder %v695, 7
      %vm732 = vcmp.lt.s32.totalorder %v696, 7
      %vm733 = vcmp.lt.s32.totalorder %v697, 7
      %vm734 = vcmp.lt.s32.totalorder %v698, 7
      %v735 = vsel %vm727, 1, 0
      %v736 = vsel %vm728, 1, 0
      %v737 = vsel %vm729, 1, 0
      %v738 = vsel %vm730, 1, 0
      %v739 = vsel %vm731, 1, 0
      %v740 = vsel %vm732, 1, 0
      %v741 = vsel %vm733, 1, 0
      %v742 = vsel %vm734, 1, 0
      %v743 = vcvt.s32.f32 %v735
      %v744 = vcvt.s32.f32 %v736
      %v745 = vcvt.s32.f32 %v737
      %v746 = vcvt.s32.f32 %v738
      %v747 = vcvt.s32.f32 %v739
      %v748 = vcvt.s32.f32 %v740
      %v749 = vcvt.s32.f32 %v741
      %v750 = vcvt.s32.f32 %v742
      %v751 = vpack.c.bf16 %v744, %v743
      %v752 = vpack.c.bf16 %v746, %v745
      %v753 = vpack.c.bf16 %v748, %v747
      %v754 = vpack.c.bf16 %v750, %v749
      %v755 = vld [vmem:[#allocation2] sm:$0x88]
      %v756 = vld [vmem:[#allocation2 + $0x8] sm:$0xff]
      %v757 = vld [vmem:[#allocation2 + $0x10] sm:$0xff]
      %v758 = vld [vmem:[#allocation2 + $0x18] sm:$0xff]
      %v759 = vld [vmem:[#allocation2 + $0x20] sm:$0xff]
      %v760 = vld [vmem:[#allocation2 + $0x28] sm:$0xff]
      %v761 = vld [vmem:[#allocation2 + $0x30] sm:$0xff]
      %v762 = vld [vmem:[#allocation2 + $0x38] sm:$0xff]
      %v763 = vld [vmem:[#allocation2 + $0x40] sm:$0xff]
      %v769 = vunpack.c.l.s4 839922192
      %v770 = vunpack.c.0.s8 %v769
      %v771 = vlaneseq
      %v772 = vshrl.u32 %v771, 7
      %v773 = vsub.s32 %v770, %v772
      %v774 = vrot.slane %v723, %v773
      %v776 = vunpack.c.l.s4 1985246804
      %v777 = vunpack.c.0.s8 %v776
      %v778 = vlaneseq
      %v779 = vshrl.u32 %v778, 7
      %v780 = vsub.s32 %v777, %v779
      %v781 = vrot.slane %v723, %v780
      %v783 = vunpack.c.l.s4 839922192
      %v784 = vunpack.c.0.s8 %v783
      %v785 = vlaneseq
      %v786 = vshrl.u32 %v785, 7
      %v787 = vsub.s32 %v784, %v786
      %v788 = vrot.slane %v724, %v787
      %v790 = vunpack.c.l.s4 1985246804
      %v791 = vunpack.c.0.s8 %v790
      %v792 = vlaneseq
      %v793 = vshrl.u32 %v792, 7
      %v794 = vsub.s32 %v791, %v793
      %v795 = vrot.slane %v724, %v794
      %v797 = vunpack.c.l.s4 839922192
      %v798 = vunpack.c.0.s8 %v797
      %v799 = vlaneseq
      %v800 = vshrl.u32 %v799, 7
      %v801 = vsub.s32 %v798, %v800
      %v802 = vrot.slane %v725, %v801
      %v804 = vunpack.c.l.s4 1985246804
      %v805 = vunpack.c.0.s8 %v804
      %v806 = vlaneseq
      %v807 = vshrl.u32 %v806, 7
      %v808 = vsub.s32 %v805, %v807
      %v809 = vrot.slane %v725, %v808
      %v811 = vunpack.c.l.s4 839922192
      %v812 = vunpack.c.0.s8 %v811
      %v813 = vlaneseq
      %v814 = vshrl.u32 %v813, 7
      %v815 = vsub.s32 %v812, %v814
      %v816 = vrot.slane %v726, %v815
      %v818 = vunpack.c.l.s4 1985246804
      %v819 = vunpack.c.0.s8 %v818
      %v820 = vlaneseq
      %v821 = vshrl.u32 %v820, 7
      %v822 = vsub.s32 %v819, %v821
      %v823 = vrot.slane %v726, %v822
      %vm824 = vsmask.f32 3328
      %vm825 = vsmask.f32 7440
      %vm826 = vmor %vm824, %vm825
      %v828 = vshll.u32 %v774, 16
      %v830 = vrot.slane %v828, 5
      %v831 = vshrl.u32 %v774, 16
      %v833 = vrot.slane %v831, 4
      %v834 = vor.u32 %v833, %v830
      %v835 = vrot.slane %v834, 4
      %v837 = vshll.u32 %v781, 16
      %v839 = vrot.slane %v837, 5
      %v840 = vsel %vm826, %v835, %v839
      %v841 = vshrl.u32 %v781, 16
      %v843 = vrot.slane %v841, 4
      %v844 = vor.u32 %v843, %v839
      %v845 = vrot.slane %v844, 4
      %v847 = vshll.u32 %v788, 16
      %v849 = vrot.slane %v847, 5
      %v850 = vsel %vm826, %v845, %v849
      %v851 = vshrl.u32 %v788, 16
      %v853 = vrot.slane %v851, 4
      %v854 = vor.u32 %v853, %v849
      %v855 = vrot.slane %v854, 4
      %v857 = vshll.u32 %v795, 16
      %v859 = vrot.slane %v857, 5
      %v860 = vsel %vm826, %v855, %v859
      %v861 = vshrl.u32 %v795, 16
      %v863 = vrot.slane %v861, 4
      %v864 = vor.u32 %v863, %v859
      %v865 = vrot.slane %v864, 4
      %v867 = vshll.u32 %v802, 16
      %v869 = vrot.slane %v867, 5
      %v870 = vsel %vm826, %v865, %v869
      %v871 = vshrl.u32 %v802, 16
      %v873 = vrot.slane %v871, 4
      %v874 = vor.u32 %v873, %v869
      %v875 = vrot.slane %v874, 4
      %v877 = vshll.u32 %v809, 16
      %v879 = vrot.slane %v877, 5
      %v880 = vsel %vm826, %v875, %v879
      %v881 = vshrl.u32 %v809, 16
      %v883 = vrot.slane %v881, 4
      %v884 = vor.u32 %v883, %v879
      %v885 = vrot.slane %v884, 4
      %v887 = vshll.u32 %v816, 16
      %v889 = vrot.slane %v887, 5
      %v890 = vsel %vm826, %v885, %v889
      %v891 = vshrl.u32 %v816, 16
      %v893 = vrot.slane %v891, 4
      %v894 = vor.u32 %v893, %v889
      %v895 = vrot.slane %v894, 4
      %v897 = vshll.u32 %v823, 16
      %v899 = vrot.slane %v897, 5
      %v900 = vsel %vm826, %v895, %v899
      %v901 = vshrl.u32 %v823, 16
      %v903 = vrot.slane %v901, 4
      %v904 = vor.u32 %v903, %v899
      %v905 = vrot.slane %v904, 4
      %v915 = vmul.bf16 %v755, %v830
      %v916 = vmul.bf16 %v756, %v840
      %v917 = vmul.bf16 %v757, %v850
      %v918 = vmul.bf16 %v758, %v860
      %v919 = vmul.bf16 %v759, %v870
      %v920 = vmul.bf16 %v760, %v880
      %v921 = vmul.bf16 %v761, %v890
      %v922 = vmul.bf16 %v762, %v900
      %v923 = vmul.bf16 %v763, %v905
      %v924 = vld [vmem:[%s4] sm:$0xf]
      %v925 = vld [vmem:[%s4 + $0x4] sm:$0xf]
      %v926 = vld [vmem:[%s4 + $0x8] sm:$0xf]
      %v927 = vld [vmem:[%s4 + $0xc] sm:$0xf]
      %v928 = vld [vmem:[%s4 + $0x10] sm:$0xf]
      %v929 = vld [vmem:[%s4 + $0x14] sm:$0xf]
      %v930 = vld [vmem:[%s4 + $0x18] sm:$0xf]
      %v931 = vld [vmem:[%s4 + $0x1c] sm:$0xf]
      %v932 = vld [vmem:[%s4 + $0x20] sm:$0xf]
      %v933 = vld [vmem:[%s4 + $0x24] sm:$0xf]
      %v934 = vld [vmem:[%s4 + $0x28] sm:$0xf]
      %v935 = vld [vmem:[%s4 + $0x2c] sm:$0xf]
      %v936 = vld [vmem:[%s4 + $0x30] sm:$0xf]
      %v937 = vld [vmem:[%s4 + $0x34] sm:$0xf]
      %v938 = vld [vmem:[%s4 + $0x38] sm:$0xf]
      %v939 = vld [vmem:[%s4 + $0x3c] sm:$0xf]
      %v940 = vld [vmem:[%s4 + $0x40] sm:$0xf]
      %v941 = vld [vmem:[%s4 + $0x44] sm:$0xf]
      %v942 = vld [vmem:[%s4 + $0x48] sm:$0xf]
      %v943 = vld [vmem:[%s4 + $0x4c] sm:$0xf]
      %v944 = vld [vmem:[%s4 + $0x50] sm:$0xf]
      %v945 = vld [vmem:[%s4 + $0x54] sm:$0xf]
      %v946 = vld [vmem:[%s4 + $0x58] sm:$0xf]
      %v947 = vld [vmem:[%s4 + $0x5c] sm:$0xf]
      %v948 = vld [vmem:[%s4 + $0x60] sm:$0xf]
      %v949 = vld [vmem:[%s4 + $0x64] sm:$0xf]
      %v950 = vld [vmem:[%s4 + $0x68] sm:$0xf]
      %v951 = vld [vmem:[%s4 + $0x6c] sm:$0xf]
      %v952 = vld [vmem:[%s4 + $0x70] sm:$0xf]
      %v953 = vld [vmem:[%s4 + $0x74] sm:$0xf]
      %v954 = vld [vmem:[%s4 + $0x78] sm:$0xf]
      %v955 = vld [vmem:[%s4 + $0x7c] sm:$0xf]
      %s956 = scalar_lea.vmem %s4, 128
      %v957 = vld [vmem:[%s956] sm:$0xf]
      %v958 = vld [vmem:[%s956 + $0x4] sm:$0xf]
      %v959 = vld [vmem:[%s956 + $0x8] sm:$0xf]
      %v960 = vld [vmem:[%s956 + $0xc] sm:$0xf]
      %v961 = vld [vmem:[%s956 + $0x10] sm:$0xf]
      %v962 = vld [vmem:[%s956 + $0x14] sm:$0xf]
      %v963 = vld [vmem:[%s956 + $0x18] sm:$0xf]
      %v964 = vld [vmem:[%s956 + $0x1c] sm:$0xf]
      %v965 = vld [vmem:[%s956 + $0x20] sm:$0xf]
      %v966 = vld [vmem:[%s956 + $0x24] sm:$0xf]
      %v967 = vld [vmem:[%s956 + $0x28] sm:$0xf]
      %v968 = vld [vmem:[%s956 + $0x2c] sm:$0xf]
      %v969 = vld [vmem:[%s956 + $0x30] sm:$0xf]
      %v970 = vld [vmem:[%s956 + $0x34] sm:$0xf]
      %v971 = vld [vmem:[%s956 + $0x38] sm:$0xf]
      %v972 = vld [vmem:[%s956 + $0x3c] sm:$0xf]
      %v973 = vld [vmem:[%s956 + $0x40] sm:$0xf]
      %v974 = vld [vmem:[%s956 + $0x44] sm:$0xf]
      %v975 = vld [vmem:[%s956 + $0x48] sm:$0xf]
      %v976 = vld [vmem:[%s956 + $0x4c] sm:$0xf]
      %v977 = vld [vmem:[%s956 + $0x50] sm:$0xf]
      %v978 = vld [vmem:[%s956 + $0x54] sm:$0xf]
      %v979 = vld [vmem:[%s956 + $0x58] sm:$0xf]
      %v980 = vld [vmem:[%s956 + $0x5c] sm:$0xf]
      %v981 = vld [vmem:[%s956 + $0x60] sm:$0xf]
      %v982 = vld [vmem:[%s956 + $0x64] sm:$0xf]
      %v983 = vld [vmem:[%s956 + $0x68] sm:$0xf]
      %v984 = vld [vmem:[%s956 + $0x6c] sm:$0xf]
      %v985 = vld [vmem:[%s956 + $0x70] sm:$0xf]
      %v986 = vld [vmem:[%s956 + $0x74] sm:$0xf]
      %v987 = vld [vmem:[%s956 + $0x78] sm:$0xf]
      %v988 = vld [vmem:[%s956 + $0x7c] sm:$0xf]
      %v997 = vunpack.c.l.b16 %v756
      %v998 = vunpack.c.h.b16 %v756
      %v999 = vunpack.c.l.b16 %v757
      %v1000 = vunpack.c.h.b16 %v757
      %v1001 = vunpack.c.l.b16 %v758
      %v1002 = vunpack.c.h.b16 %v758
      %v1003 = vunpack.c.l.b16 %v759
      %v1004 = vunpack.c.h.b16 %v759
      %v1005 = vunpack.c.l.b16 %v760
      %v1006 = vunpack.c.h.b16 %v760
      %v1007 = vunpack.c.l.b16 %v761
      %v1008 = vunpack.c.h.b16 %v761
      %v1009 = vunpack.c.l.b16 %v762
      %v1010 = vunpack.c.h.b16 %v762
      %v1011 = vunpack.c.l.b16 %v763
      %v1012 = vunpack.c.h.b16 %v763
      %v1013 = vpack.c.b16 %v999, %v997
      %v1014 = vpack.c.b16 %v1000, %v998
      %v1015 = vpack.c.b16 %v1003, %v1001
      %v1016 = vpack.c.b16 %v1004, %v1002
      %v1017 = vpack.c.b16 %v1007, %v1005
      %v1018 = vpack.c.b16 %v1008, %v1006
      %v1019 = vpack.c.b16 %v1011, %v1009
      %v1020 = vpack.c.b16 %v1012, %v1010
      %v1061 = vunpack.c.l.b16 %v957
      %v1062 = vunpack.c.l.b16 %v958
      %v1063 = vunpack.c.l.b16 %v959
      %v1064 = vunpack.c.l.b16 %v960
      %v1065 = vunpack.c.l.b16 %v961
      %v1066 = vunpack.c.l.b16 %v962
      %v1067 = vunpack.c.l.b16 %v963
      %v1068 = vunpack.c.l.b16 %v964
      %v1069 = vunpack.c.l.b16 %v965
      %v1070 = vunpack.c.l.b16 %v966
      %v1071 = vunpack.c.l.b16 %v967
      %v1072 = vunpack.c.l.b16 %v968
      %v1073 = vunpack.c.l.b16 %v969
      %v1074 = vunpack.c.l.b16 %v970
      %v1075 = vunpack.c.l.b16 %v971
      %v1076 = vunpack.c.l.b16 %v972
      %v1077 = vunpack.c.l.b16 %v973
      %v1078 = vunpack.c.l.b16 %v974
      %v1079 = vunpack.c.l.b16 %v975
      %v1080 = vunpack.c.l.b16 %v976
      %v1081 = vunpack.c.l.b16 %v977
      %v1082 = vunpack.c.l.b16 %v978
      %v1083 = vunpack.c.l.b16 %v979
      %v1084 = vunpack.c.l.b16 %v980
      %v1085 = vunpack.c.l.b16 %v981
      %v1086 = vunpack.c.l.b16 %v982
      %v1087 = vunpack.c.l.b16 %v983
      %v1088 = vunpack.c.l.b16 %v984
      %v1089 = vunpack.c.l.b16 %v985
      %v1090 = vunpack.c.l.b16 %v986
      %v1091 = vunpack.c.l.b16 %v987
      %v1092 = vunpack.c.l.b16 %v988
      %v1093 = vpack.c.b16 %v1062, %v1061
      %v1094 = vpack.c.b16 %v1064, %v1063
      %v1095 = vpack.c.b16 %v1066, %v1065
      %v1096 = vpack.c.b16 %v1068, %v1067
      %v1097 = vpack.c.b16 %v1070, %v1069
      %v1098 = vpack.c.b16 %v1072, %v1071
      %v1099 = vpack.c.b16 %v1074, %v1073
      %v1100 = vpack.c.b16 %v1076, %v1075
      %v1101 = vpack.c.b16 %v1078, %v1077
      %v1102 = vpack.c.b16 %v1080, %v1079
      %v1103 = vpack.c.b16 %v1082, %v1081
      %v1104 = vpack.c.b16 %v1084, %v1083
      %v1105 = vpack.c.b16 %v1086, %v1085
      %v1106 = vpack.c.b16 %v1088, %v1087
      %v1107 = vpack.c.b16 %v1090, %v1089
      %v1108 = vpack.c.b16 %v1092, %v1091
      %1125 = vmatprep.subr.bf16.mxu0 0
      %1126 = vmatpush1.bf16.msra.mxu0 %v1100
      %1127 = vmatprep.subr.bf16.mxu0 0
      %1128 = vmatpush1.bf16.msra.mxu0 %v1099
      %1129 = vmatprep.subr.bf16.mxu0 0
      %1130 = vmatpush1.bf16.msra.mxu0 %v1098
      %1131 = vmatprep.subr.bf16.mxu0 0
      %1132 = vmatpush1.bf16.msra.mxu0 %v1097
      %1133 = vmatprep.subr.bf16.mxu0 0
      %1134 = vmatpush1.bf16.msra.mxu0 %v1096
      %1135 = vmatprep.subr.bf16.mxu0 0
      %1136 = vmatpush1.bf16.msra.mxu0 %v1095
      %1137 = vmatprep.subr.bf16.mxu0 0
      %1138 = vmatpush1.bf16.msra.mxu0 %v1094
      %1139 = vmatprep.subr.bf16.mxu0 0
      %1140 = vmatpush1.bf16.msra.mxu0 %v1093
      %1141 = vmatprep.subr.bf16.mxu0 0
      %1142 = vmatpush2.bf16.msra.mxu0 %v1108
      %1143 = vmatprep.subr.bf16.mxu0 0
      %1144 = vmatpush2.bf16.msra.mxu0 %v1107
      %1145 = vmatprep.subr.bf16.mxu0 0
      %1146 = vmatpush2.bf16.msra.mxu0 %v1106
      %1147 = vmatprep.subr.bf16.mxu0 0
      %1148 = vmatpush2.bf16.msra.mxu0 %v1105
      %1149 = vmatprep.subr.bf16.mxu0 0
      %1150 = vmatpush2.bf16.msra.mxu0 %v1104
      %1151 = vmatprep.subr.bf16.mxu0 0
      %1152 = vmatpush2.bf16.msra.mxu0 %v1103
      %1153 = vmatprep.subr.bf16.mxu0 0
      %1154 = vmatpush2.bf16.msra.mxu0 %v1102
      %1155 = vmatprep.subr.bf16.mxu0 0
      %1156 = vmatpush2.bf16.msra.mxu0 %v1101
      %1157 = vmatprep.mubr.bf16.mxu0 %v1014
      %1158 = vmatmul.mubr.bf16.gmra.mxu0 %v1013
      %v1159 = vpop.f32.mrf.mxu0
      %v1160 = vadd.f32 0.0, %v1159
      %v1161 = vpop.f32.mrf.mxu0
      %v1162 = vpop.f32.mrf.mxu0
      %v1163 = vadd.f32 0.0, %v1162
      %v1164 = vpop.f32.mrf.mxu0
      %1165 = vmatprep.mubr.bf16.mxu0 %v1016
      %1166 = vmatmul.mubr.bf16.gmra.mxu0 %v1015
      %v1167 = vpop.f32.mrf.mxu0
      %v1168 = vadd.f32 0.0, %v1167
      %v1169 = vpop.f32.mrf.mxu0
      %v1170 = vpop.f32.mrf.mxu0
      %v1171 = vadd.f32 0.0, %v1170
      %v1172 = vpop.f32.mrf.mxu0
      %1173 = vmatprep.mubr.bf16.mxu0 %v1018
      %1174 = vmatmul.mubr.bf16.gmra.mxu0 %v1017
      %v1175 = vpop.f32.mrf.mxu0
      %v1176 = vadd.f32 0.0, %v1175
      %v1177 = vpop.f32.mrf.mxu0
      %v1178 = vpop.f32.mrf.mxu0
      %v1179 = vadd.f32 0.0, %v1178
      %v1180 = vpop.f32.mrf.mxu0
      %1181 = vmatprep.mubr.bf16.mxu0 %v1020
      %1182 = vmatmul.mubr.bf16.gmra.mxu0 %v1019
      %v1183 = vpop.f32.mrf.mxu0
      %v1184 = vadd.f32 0.0, %v1183
      %v1185 = vpop.f32.mrf.mxu0
      %v1186 = vpop.f32.mrf.mxu0
      %v1187 = vadd.f32 0.0, %v1186
      %v1188 = vpop.f32.mrf.mxu0
      %1189 = vdwg.mxu0
      %v1199 = vunpack.c.l.b16 %v915
      %v1200 = vunpack.c.h.b16 %v915
      %v1201 = vunpack.c.l.b16 %v916
      %v1202 = vunpack.c.h.b16 %v916
      %v1203 = vunpack.c.l.b16 %v917
      %v1204 = vunpack.c.h.b16 %v917
      %v1205 = vunpack.c.l.b16 %v918
      %v1206 = vunpack.c.h.b16 %v918
      %v1207 = vunpack.c.l.b16 %v919
      %v1208 = vunpack.c.h.b16 %v919
      %v1209 = vunpack.c.l.b16 %v920
      %v1210 = vunpack.c.h.b16 %v920
      %v1211 = vunpack.c.l.b16 %v921
      %v1212 = vunpack.c.h.b16 %v921
      %v1213 = vunpack.c.l.b16 %v922
      %v1214 = vunpack.c.h.b16 %v922
      %v1215 = vunpack.c.l.b16 %v923
      %v1216 = vunpack.c.h.b16 %v923
      %v1217 = vpack.c.b16 %v1201, %v1199
      %v1218 = vpack.c.b16 %v1202, %v1200
      %v1219 = vpack.c.b16 %v1205, %v1203
      %v1220 = vpack.c.b16 %v1206, %v1204
      %v1221 = vpack.c.b16 %v1209, %v1207
      %v1222 = vpack.c.b16 %v1210, %v1208
      %v1223 = vpack.c.b16 %v1213, %v1211
      %v1224 = vpack.c.b16 %v1214, %v1212
      %v1225 = vpack.c.b16 %v1215, %v1215
      %v1226 = vpack.c.b16 %v1216, %v1216
      %vm1227 = vsmask.f32 4352
      %v1229 = vshrl.u32 %v1217, 16
      %v1231 = vrot.slane %v1229, 3
      %v1232 = vshll.u32 %v1217, 16
      %v1234 = vrot.slane %v1232, 4
      %v1235 = vor.u32 %v1231, %v1234
      %v1237 = vshrl.u32 %v1219, 16
      %v1239 = vrot.slane %v1237, 3
      %v1240 = vshll.u32 %v1219, 16
      %v1242 = vrot.slane %v1240, 4
      %v1243 = vor.u32 %v1239, %v1242
      %v1244 = vsel %vm1227, %v1235, %v1243
      %v1246 = vshrl.u32 %v1218, 16
      %v1248 = vrot.slane %v1246, 3
      %v1249 = vshll.u32 %v1218, 16
      %v1251 = vrot.slane %v1249, 4
      %v1252 = vor.u32 %v1248, %v1251
      %v1254 = vshrl.u32 %v1220, 16
      %v1256 = vrot.slane %v1254, 3
      %v1257 = vshll.u32 %v1220, 16
      %v1259 = vrot.slane %v1257, 4
      %v1260 = vor.u32 %v1256, %v1259
      %v1261 = vsel %vm1227, %v1252, %v1260
      %v1263 = vshrl.u32 %v1221, 16
      %v1265 = vrot.slane %v1263, 3
      %v1266 = vshll.u32 %v1221, 16
      %v1268 = vrot.slane %v1266, 4
      %v1269 = vor.u32 %v1265, %v1268
      %v1270 = vsel %vm1227, %v1243, %v1269
      %v1272 = vshrl.u32 %v1222, 16
      %v1274 = vrot.slane %v1272, 3
      %v1275 = vshll.u32 %v1222, 16
      %v1277 = vrot.slane %v1275, 4
      %v1278 = vor.u32 %v1274, %v1277
      %v1279 = vsel %vm1227, %v1260, %v1278
      %v1281 = vshrl.u32 %v1223, 16
      %v1283 = vrot.slane %v1281, 3
      %v1284 = vshll.u32 %v1223, 16
      %v1286 = vrot.slane %v1284, 4
      %v1287 = vor.u32 %v1283, %v1286
      %v1288 = vsel %vm1227, %v1269, %v1287
      %v1290 = vshrl.u32 %v1224, 16
      %v1292 = vrot.slane %v1290, 3
      %v1293 = vshll.u32 %v1224, 16
      %v1295 = vrot.slane %v1293, 4
      %v1296 = vor.u32 %v1292, %v1295
      %v1297 = vsel %vm1227, %v1278, %v1296
      %v1299 = vshrl.u32 %v1225, 16
      %v1301 = vrot.slane %v1299, 3
      %v1302 = vshll.u32 %v1225, 16
      %v1304 = vrot.slane %v1302, 4
      %v1305 = vor.u32 %v1301, %v1304
      %v1306 = vsel %vm1227, %v1287, %v1305
      %v1308 = vshrl.u32 %v1226, 16
      %v1310 = vrot.slane %v1308, 3
      %v1311 = vshll.u32 %v1226, 16
      %v1313 = vrot.slane %v1311, 4
      %v1314 = vor.u32 %v1310, %v1313
      %v1315 = vsel %vm1227, %v1296, %v1314
      %v1356 = vunpack.c.l.b16 %v924
      %v1357 = vunpack.c.l.b16 %v925
      %v1358 = vunpack.c.l.b16 %v926
      %v1359 = vunpack.c.l.b16 %v927
      %v1360 = vunpack.c.l.b16 %v928
      %v1361 = vunpack.c.l.b16 %v929
      %v1362 = vunpack.c.l.b16 %v930
      %v1363 = vunpack.c.l.b16 %v931
      %v1364 = vunpack.c.l.b16 %v932
      %v1365 = vunpack.c.l.b16 %v933
      %v1366 = vunpack.c.l.b16 %v934
      %v1367 = vunpack.c.l.b16 %v935
      %v1368 = vunpack.c.l.b16 %v936
      %v1369 = vunpack.c.l.b16 %v937
      %v1370 = vunpack.c.l.b16 %v938
      %v1371 = vunpack.c.l.b16 %v939
      %v1372 = vunpack.c.l.b16 %v940
      %v1373 = vunpack.c.l.b16 %v941
      %v1374 = vunpack.c.l.b16 %v942
      %v1375 = vunpack.c.l.b16 %v943
      %v1376 = vunpack.c.l.b16 %v944
      %v1377 = vunpack.c.l.b16 %v945
      %v1378 = vunpack.c.l.b16 %v946
      %v1379 = vunpack.c.l.b16 %v947
      %v1380 = vunpack.c.l.b16 %v948
      %v1381 = vunpack.c.l.b16 %v949
      %v1382 = vunpack.c.l.b16 %v950
      %v1383 = vunpack.c.l.b16 %v951
      %v1384 = vunpack.c.l.b16 %v952
      %v1385 = vunpack.c.l.b16 %v953
      %v1386 = vunpack.c.l.b16 %v954
      %v1387 = vunpack.c.l.b16 %v955
      %v1388 = vpack.c.b16 %v1357, %v1356
      %v1389 = vpack.c.b16 %v1359, %v1358
      %v1390 = vpack.c.b16 %v1361, %v1360
      %v1391 = vpack.c.b16 %v1363, %v1362
      %v1392 = vpack.c.b16 %v1365, %v1364
      %v1393 = vpack.c.b16 %v1367, %v1366
      %v1394 = vpack.c.b16 %v1369, %v1368
      %v1395 = vpack.c.b16 %v1371, %v1370
      %v1396 = vpack.c.b16 %v1373, %v1372
      %v1397 = vpack.c.b16 %v1375, %v1374
      %v1398 = vpack.c.b16 %v1377, %v1376
      %v1399 = vpack.c.b16 %v1379, %v1378
      %v1400 = vpack.c.b16 %v1381, %v1380
      %v1401 = vpack.c.b16 %v1383, %v1382
      %v1402 = vpack.c.b16 %v1385, %v1384
      %v1403 = vpack.c.b16 %v1387, %v1386
      %1420 = vmatprep.subr.bf16.mxu0 0
      %1421 = vmatpush1.bf16.msra.mxu0 %v1395
      %1422 = vmatprep.subr.bf16.mxu0 0
      %1423 = vmatpush1.bf16.msra.mxu0 %v1394
      %1424 = vmatprep.subr.bf16.mxu0 0
      %1425 = vmatpush1.bf16.msra.mxu0 %v1393
      %1426 = vmatprep.subr.bf16.mxu0 0
      %1427 = vmatpush1.bf16.msra.mxu0 %v1392
      %1428 = vmatprep.subr.bf16.mxu0 0
      %1429 = vmatpush1.bf16.msra.mxu0 %v1391
      %1430 = vmatprep.subr.bf16.mxu0 0
      %1431 = vmatpush1.bf16.msra.mxu0 %v1390
      %1432 = vmatprep.subr.bf16.mxu0 0
      %1433 = vmatpush1.bf16.msra.mxu0 %v1389
      %1434 = vmatprep.subr.bf16.mxu0 0
      %1435 = vmatpush1.bf16.msra.mxu0 %v1388
      %1436 = vmatprep.subr.bf16.mxu0 0
      %1437 = vmatpush2.bf16.msra.mxu0 %v1403
      %1438 = vmatprep.subr.bf16.mxu0 0
      %1439 = vmatpush2.bf16.msra.mxu0 %v1402
      %1440 = vmatprep.subr.bf16.mxu0 0
      %1441 = vmatpush2.bf16.msra.mxu0 %v1401
      %1442 = vmatprep.subr.bf16.mxu0 0
      %1443 = vmatpush2.bf16.msra.mxu0 %v1400
      %1444 = vmatprep.subr.bf16.mxu0 0
      %1445 = vmatpush2.bf16.msra.mxu0 %v1399
      %1446 = vmatprep.subr.bf16.mxu0 0
      %1447 = vmatpush2.bf16.msra.mxu0 %v1398
      %1448 = vmatprep.subr.bf16.mxu0 0
      %1449 = vmatpush2.bf16.msra.mxu0 %v1397
      %1450 = vmatprep.subr.bf16.mxu0 0
      %1451 = vmatpush2.bf16.msra.mxu0 %v1396
      %1452 = vmatprep.mubr.bf16.mxu0 %v1261
      %1453 = vmatmul.mubr.bf16.gmra.mxu0 %v1244
      %v1454 = vpop.f32.mrf.mxu0
      %v1455 = vadd.f32 %v1160, %v1454
      %v1456 = vpop.f32.mrf.mxu0
      %v1457 = vpop.f32.mrf.mxu0
      %v1458 = vadd.f32 %v1163, %v1457
      %v1459 = vpop.f32.mrf.mxu0
      %1460 = vmatprep.mubr.bf16.mxu0 %v1279
      %1461 = vmatmul.mubr.bf16.gmra.mxu0 %v1270
      %v1462 = vpop.f32.mrf.mxu0
      %v1463 = vadd.f32 %v1168, %v1462
      %v1464 = vpop.f32.mrf.mxu0
      %v1465 = vpop.f32.mrf.mxu0
      %v1466 = vadd.f32 %v1171, %v1465
      %v1467 = vpop.f32.mrf.mxu0
      %1468 = vmatprep.mubr.bf16.mxu0 %v1297
      %1469 = vmatmul.mubr.bf16.gmra.mxu0 %v1288
      %v1470 = vpop.f32.mrf.mxu0
      %v1471 = vadd.f32 %v1176, %v1470
      %v1472 = vpop.f32.mrf.mxu0
      %v1473 = vpop.f32.mrf.mxu0
      %v1474 = vadd.f32 %v1179, %v1473
      %v1475 = vpop.f32.mrf.mxu0
      %1476 = vmatprep.mubr.bf16.mxu0 %v1315
      %1477 = vmatmul.mubr.bf16.gmra.mxu0 %v1306
      %v1478 = vpop.f32.mrf.mxu0
      %v1479 = vadd.f32 %v1184, %v1478
      %v1480 = vpop.f32.mrf.mxu0
      %v1481 = vpop.f32.mrf.mxu0
      %v1482 = vadd.f32 %v1187, %v1481
      %v1483 = vpop.f32.mrf.mxu0
      %1484 = vdwg.mxu0
      %v1485 = vld [vmem:[#allocation2 + $0x8] sm:$0xff]
      %v1486 = vld [vmem:[#allocation2 + $0x10] sm:$0xff]
      %v1487 = vld [vmem:[#allocation2 + $0x18] sm:$0xff]
      %v1488 = vld [vmem:[#allocation2 + $0x20] sm:$0xff]
      %v1489 = vld [vmem:[#allocation2 + $0x28] sm:$0xff]
      %v1490 = vld [vmem:[#allocation2 + $0x30] sm:$0xff]
      %v1491 = vld [vmem:[#allocation2 + $0x38] sm:$0xff]
      %v1492 = vld [vmem:[#allocation2 + $0x40] sm:$0xff]
      %v1493 = vld [vmem:[#allocation2 + $0x48] sm:$0x11]
      %v1499 = vunpack.c.l.s4 839922192
      %v1500 = vunpack.c.0.s8 %v1499
      %v1501 = vlaneseq
      %v1502 = vshrl.u32 %v1501, 7
      %v1503 = vsub.s32 %v1500, %v1502
      %v1504 = vrot.slane %v751, %v1503
      %v1506 = vunpack.c.l.s4 1985246804
      %v1507 = vunpack.c.0.s8 %v1506
      %v1508 = vlaneseq
      %v1509 = vshrl.u32 %v1508, 7
      %v1510 = vsub.s32 %v1507, %v1509
      %v1511 = vrot.slane %v751, %v1510
      %v1513 = vunpack.c.l.s4 839922192
      %v1514 = vunpack.c.0.s8 %v1513
      %v1515 = vlaneseq
      %v1516 = vshrl.u32 %v1515, 7
      %v1517 = vsub.s32 %v1514, %v1516
      %v1518 = vrot.slane %v752, %v1517
      %v1520 = vunpack.c.l.s4 1985246804
      %v1521 = vunpack.c.0.s8 %v1520
      %v1522 = vlaneseq
      %v1523 = vshrl.u32 %v1522, 7
      %v1524 = vsub.s32 %v1521, %v1523
      %v1525 = vrot.slane %v752, %v1524
      %v1527 = vunpack.c.l.s4 839922192
      %v1528 = vunpack.c.0.s8 %v1527
      %v1529 = vlaneseq
      %v1530 = vshrl.u32 %v1529, 7
      %v1531 = vsub.s32 %v1528, %v1530
      %v1532 = vrot.slane %v753, %v1531
      %v1534 = vunpack.c.l.s4 1985246804
      %v1535 = vunpack.c.0.s8 %v1534
      %v1536 = vlaneseq
      %v1537 = vshrl.u32 %v1536, 7
      %v1538 = vsub.s32 %v1535, %v1537
      %v1539 = vrot.slane %v753, %v1538
      %v1541 = vunpack.c.l.s4 839922192
      %v1542 = vunpack.c.0.s8 %v1541
      %v1543 = vlaneseq
      %v1544 = vshrl.u32 %v1543, 7
      %v1545 = vsub.s32 %v1542, %v1544
      %v1546 = vrot.slane %v754, %v1545
      %v1548 = vunpack.c.l.s4 1985246804
      %v1549 = vunpack.c.0.s8 %v1548
      %v1550 = vlaneseq
      %v1551 = vshrl.u32 %v1550, 7
      %v1552 = vsub.s32 %v1549, %v1551
      %v1553 = vrot.slane %v754, %v1552
      %vm1554 = vsmask.f32 256
      %vm1555 = vsmask.f32 4368
      %vm1556 = vmor %vm1554, %vm1555
      %v1558 = vshrl.u32 %v1504, 16
      %v1560 = vrot.slane %v1558, 7
      %v1561 = vshll.u32 %v1504, 16
      %v1563 = vor.u32 %v1560, %v1561
      %v1564 = vrot.slane %v1560, 4
      %v1566 = vshrl.u32 %v1511, 16
      %v1568 = vrot.slane %v1566, 7
      %v1569 = vshll.u32 %v1511, 16
      %v1571 = vor.u32 %v1568, %v1569
      %v1572 = vsel %vm1556, %v1564, %v1571
      %v1573 = vrot.slane %v1568, 4
      %v1575 = vshrl.u32 %v1518, 16
      %v1577 = vrot.slane %v1575, 7
      %v1578 = vshll.u32 %v1518, 16
      %v1580 = vor.u32 %v1577, %v1578
      %v1581 = vsel %vm1556, %v1573, %v1580
      %v1582 = vrot.slane %v1577, 4
      %v1584 = vshrl.u32 %v1525, 16
      %v1586 = vrot.slane %v1584, 7
      %v1587 = vshll.u32 %v1525, 16
      %v1589 = vor.u32 %v1586, %v1587
      %v1590 = vsel %vm1556, %v1582, %v1589
      %v1591 = vrot.slane %v1586, 4
      %v1593 = vshrl.u32 %v1532, 16
      %v1595 = vrot.slane %v1593, 7
      %v1596 = vshll.u32 %v1532, 16
      %v1598 = vor.u32 %v1595, %v1596
      %v1599 = vsel %vm1556, %v1591, %v1598
      %v1600 = vrot.slane %v1595, 4
      %v1602 = vshrl.u32 %v1539, 16
      %v1604 = vrot.slane %v1602, 7
      %v1605 = vshll.u32 %v1539, 16
      %v1607 = vor.u32 %v1604, %v1605
      %v1608 = vsel %vm1556, %v1600, %v1607
      %v1609 = vrot.slane %v1604, 4
      %v1611 = vshrl.u32 %v1546, 16
      %v1613 = vrot.slane %v1611, 7
      %v1614 = vshll.u32 %v1546, 16
      %v1616 = vor.u32 %v1613, %v1614
      %v1617 = vsel %vm1556, %v1609, %v1616
      %v1618 = vrot.slane %v1613, 4
      %v1620 = vshrl.u32 %v1553, 16
      %v1622 = vrot.slane %v1620, 7
      %v1623 = vshll.u32 %v1553, 16
      %v1625 = vor.u32 %v1622, %v1623
      %v1626 = vsel %vm1556, %v1618, %v1625
      %v1627 = vrot.slane %v1622, 4
      %v1637 = vmul.bf16 %v1485, %v1563
      %v1638 = vmul.bf16 %v1486, %v1572
      %v1639 = vmul.bf16 %v1487, %v1581
      %v1640 = vmul.bf16 %v1488, %v1590
      %v1641 = vmul.bf16 %v1489, %v1599
      %v1642 = vmul.bf16 %v1490, %v1608
      %v1643 = vmul.bf16 %v1491, %v1617
      %v1644 = vmul.bf16 %v1492, %v1626
      %v1645 = vmul.bf16 %v1493, %v1627
      %s1646 = scalar_lea.vmem %s4, 256
      %v1647 = vld [vmem:[%s1646] sm:$0xf]
      %v1648 = vld [vmem:[%s1646 + $0x4] sm:$0xf]
      %v1649 = vld [vmem:[%s1646 + $0x8] sm:$0xf]
      %v1650 = vld [vmem:[%s1646 + $0xc] sm:$0xf]
      %v1651 = vld [vmem:[%s1646 + $0x10] sm:$0xf]
      %v1652 = vld [vmem:[%s1646 + $0x14] sm:$0xf]
      %v1653 = vld [vmem:[%s1646 + $0x18] sm:$0xf]
      %v1654 = vld [vmem:[%s1646 + $0x1c] sm:$0xf]
      %v1655 = vld [vmem:[%s1646 + $0x20] sm:$0xf]
      %v1656 = vld [vmem:[%s1646 + $0x24] sm:$0xf]
      %v1657 = vld [vmem:[%s1646 + $0x28] sm:$0xf]
      %v1658 = vld [vmem:[%s1646 + $0x2c] sm:$0xf]
      %v1659 = vld [vmem:[%s1646 + $0x30] sm:$0xf]
      %v1660 = vld [vmem:[%s1646 + $0x34] sm:$0xf]
      %v1661 = vld [vmem:[%s1646 + $0x38] sm:$0xf]
      %v1662 = vld [vmem:[%s1646 + $0x3c] sm:$0xf]
      %v1663 = vld [vmem:[%s1646 + $0x40] sm:$0xf]
      %v1664 = vld [vmem:[%s1646 + $0x44] sm:$0xf]
      %v1665 = vld [vmem:[%s1646 + $0x48] sm:$0xf]
      %v1666 = vld [vmem:[%s1646 + $0x4c] sm:$0xf]
      %v1667 = vld [vmem:[%s1646 + $0x50] sm:$0xf]
      %v1668 = vld [vmem:[%s1646 + $0x54] sm:$0xf]
      %v1669 = vld [vmem:[%s1646 + $0x58] sm:$0xf]
      %v1670 = vld [vmem:[%s1646 + $0x5c] sm:$0xf]
      %v1671 = vld [vmem:[%s1646 + $0x60] sm:$0xf]
      %v1672 = vld [vmem:[%s1646 + $0x64] sm:$0xf]
      %v1673 = vld [vmem:[%s1646 + $0x68] sm:$0xf]
      %v1674 = vld [vmem:[%s1646 + $0x6c] sm:$0xf]
      %v1675 = vld [vmem:[%s1646 + $0x70] sm:$0xf]
      %v1676 = vld [vmem:[%s1646 + $0x74] sm:$0xf]
      %v1677 = vld [vmem:[%s1646 + $0x78] sm:$0xf]
      %v1678 = vld [vmem:[%s1646 + $0x7c] sm:$0xf]
      %v1688 = vunpack.c.l.b16 %v1637
      %v1689 = vunpack.c.h.b16 %v1637
      %v1690 = vunpack.c.l.b16 %v1638
      %v1691 = vunpack.c.h.b16 %v1638
      %v1692 = vunpack.c.l.b16 %v1639
      %v1693 = vunpack.c.h.b16 %v1639
      %v1694 = vunpack.c.l.b16 %v1640
      %v1695 = vunpack.c.h.b16 %v1640
      %v1696 = vunpack.c.l.b16 %v1641
      %v1697 = vunpack.c.h.b16 %v1641
      %v1698 = vunpack.c.l.b16 %v1642
      %v1699 = vunpack.c.h.b16 %v1642
      %v1700 = vunpack.c.l.b16 %v1643
      %v1701 = vunpack.c.h.b16 %v1643
      %v1702 = vunpack.c.l.b16 %v1644
      %v1703 = vunpack.c.h.b16 %v1644
      %v1704 = vunpack.c.l.b16 %v1645
      %v1705 = vunpack.c.h.b16 %v1645
      %v1706 = vpack.c.b16 %v1690, %v1688
      %v1707 = vpack.c.b16 %v1691, %v1689
      %v1708 = vpack.c.b16 %v1694, %v1692
      %v1709 = vpack.c.b16 %v1695, %v1693
      %v1710 = vpack.c.b16 %v1698, %v1696
      %v1711 = vpack.c.b16 %v1699, %v1697
      %v1712 = vpack.c.b16 %v1702, %v1700
      %v1713 = vpack.c.b16 %v1703, %v1701
      %v1714 = vpack.c.b16 %v1704, %v1704
      %v1715 = vpack.c.b16 %v1705, %v1705
      %vm1716 = vsmask.f32 7424
      %v1718 = vshrl.u32 %v1706, 16
      %v1720 = vshll.u32 %v1706, 16
      %v1722 = vrot.slane %v1720, 1
      %v1723 = vor.u32 %v1718, %v1722
      %v1725 = vshll.u32 %v1708, 16
      %v1727 = vrot.slane %v1725, 1
      %v1728 = vsel %vm1716, %v1723, %v1727
      %v1730 = vshrl.u32 %v1707, 16
      %v1732 = vshll.u32 %v1707, 16
      %v1734 = vrot.slane %v1732, 1
      %v1735 = vor.u32 %v1730, %v1734
      %v1737 = vshll.u32 %v1709, 16
      %v1739 = vrot.slane %v1737, 1
      %v1740 = vsel %vm1716, %v1735, %v1739
      %v1741 = vshrl.u32 %v1708, 16
      %v1743 = vor.u32 %v1741, %v1727
      %v1745 = vshll.u32 %v1710, 16
      %v1747 = vrot.slane %v1745, 1
      %v1748 = vsel %vm1716, %v1743, %v1747
      %v1749 = vshrl.u32 %v1709, 16
      %v1751 = vor.u32 %v1749, %v1739
      %v1753 = vshll.u32 %v1711, 16
      %v1755 = vrot.slane %v1753, 1
      %v1756 = vsel %vm1716, %v1751, %v1755
      %v1757 = vshrl.u32 %v1710, 16
      %v1759 = vor.u32 %v1757, %v1747
      %v1761 = vshll.u32 %v1712, 16
      %v1763 = vrot.slane %v1761, 1
      %v1764 = vsel %vm1716, %v1759, %v1763
      %v1765 = vshrl.u32 %v1711, 16
      %v1767 = vor.u32 %v1765, %v1755
      %v1769 = vshll.u32 %v1713, 16
      %v1771 = vrot.slane %v1769, 1
      %v1772 = vsel %vm1716, %v1767, %v1771
      %v1773 = vshrl.u32 %v1712, 16
      %v1775 = vor.u32 %v1773, %v1763
      %v1777 = vshll.u32 %v1714, 16
      %v1779 = vrot.slane %v1777, 1
      %v1780 = vsel %vm1716, %v1775, %v1779
      %v1781 = vshrl.u32 %v1713, 16
      %v1783 = vor.u32 %v1781, %v1771
      %v1785 = vshll.u32 %v1715, 16
      %v1787 = vrot.slane %v1785, 1
      %v1788 = vsel %vm1716, %v1783, %v1787
      %v1829 = vunpack.c.l.b16 %v1647
      %v1830 = vunpack.c.l.b16 %v1648
      %v1831 = vunpack.c.l.b16 %v1649
      %v1832 = vunpack.c.l.b16 %v1650
      %v1833 = vunpack.c.l.b16 %v1651
      %v1834 = vunpack.c.l.b16 %v1652
      %v1835 = vunpack.c.l.b16 %v1653
      %v1836 = vunpack.c.l.b16 %v1654
      %v1837 = vunpack.c.l.b16 %v1655
      %v1838 = vunpack.c.l.b16 %v1656
      %v1839 = vunpack.c.l.b16 %v1657
      %v1840 = vunpack.c.l.b16 %v1658
      %v1841 = vunpack.c.l.b16 %v1659
      %v1842 = vunpack.c.l.b16 %v1660
      %v1843 = vunpack.c.l.b16 %v1661
      %v1844 = vunpack.c.l.b16 %v1662
      %v1845 = vunpack.c.l.b16 %v1663
      %v1846 = vunpack.c.l.b16 %v1664
      %v1847 = vunpack.c.l.b16 %v1665
      %v1848 = vunpack.c.l.b16 %v1666
      %v1849 = vunpack.c.l.b16 %v1667
      %v1850 = vunpack.c.l.b16 %v1668
      %v1851 = vunpack.c.l.b16 %v1669
      %v1852 = vunpack.c.l.b16 %v1670
      %v1853 = vunpack.c.l.b16 %v1671
      %v1854 = vunpack.c.l.b16 %v1672
      %v1855 = vunpack.c.l.b16 %v1673
      %v1856 = vunpack.c.l.b16 %v1674
      %v1857 = vunpack.c.l.b16 %v1675
      %v1858 = vunpack.c.l.b16 %v1676
      %v1859 = vunpack.c.l.b16 %v1677
      %v1860 = vunpack.c.l.b16 %v1678
      %v1861 = vpack.c.b16 %v1830, %v1829
      %v1862 = vpack.c.b16 %v1832, %v1831
      %v1863 = vpack.c.b16 %v1834, %v1833
      %v1864 = vpack.c.b16 %v1836, %v1835
      %v1865 = vpack.c.b16 %v1838, %v1837
      %v1866 = vpack.c.b16 %v1840, %v1839
      %v1867 = vpack.c.b16 %v1842, %v1841
      %v1868 = vpack.c.b16 %v1844, %v1843
      %v1869 = vpack.c.b16 %v1846, %v1845
      %v1870 = vpack.c.b16 %v1848, %v1847
      %v1871 = vpack.c.b16 %v1850, %v1849
      %v1872 = vpack.c.b16 %v1852, %v1851
      %v1873 = vpack.c.b16 %v1854, %v1853
      %v1874 = vpack.c.b16 %v1856, %v1855
      %v1875 = vpack.c.b16 %v1858, %v1857
      %v1876 = vpack.c.b16 %v1860, %v1859
      %1893 = vmatprep.subr.bf16.mxu0 0
      %1894 = vmatpush1.bf16.msra.mxu0 %v1868
      %1895 = vmatprep.subr.bf16.mxu0 0
      %1896 = vmatpush1.bf16.msra.mxu0 %v1867
      %1897 = vmatprep.subr.bf16.mxu0 0
      %1898 = vmatpush1.bf16.msra.mxu0 %v1866
      %1899 = vmatprep.subr.bf16.mxu0 0
      %1900 = vmatpush1.bf16.msra.mxu0 %v1865
      %1901 = vmatprep.subr.bf16.mxu0 0
      %1902 = vmatpush1.bf16.msra.mxu0 %v1864
      %1903 = vmatprep.subr.bf16.mxu0 0
      %1904 = vmatpush1.bf16.msra.mxu0 %v1863
      %1905 = vmatprep.subr.bf16.mxu0 0
      %1906 = vmatpush1.bf16.msra.mxu0 %v1862
      %1907 = vmatprep.subr.bf16.mxu0 0
      %1908 = vmatpush1.bf16.msra.mxu0 %v1861
      %1909 = vmatprep.subr.bf16.mxu0 0
      %1910 = vmatpush2.bf16.msra.mxu0 %v1876
      %1911 = vmatprep.subr.bf16.mxu0 0
      %1912 = vmatpush2.bf16.msra.mxu0 %v1875
      %1913 = vmatprep.subr.bf16.mxu0 0
      %1914 = vmatpush2.bf16.msra.mxu0 %v1874
      %1915 = vmatprep.subr.bf16.mxu0 0
      %1916 = vmatpush2.bf16.msra.mxu0 %v1873
      %1917 = vmatprep.subr.bf16.mxu0 0
      %1918 = vmatpush2.bf16.msra.mxu0 %v1872
      %1919 = vmatprep.subr.bf16.mxu0 0
      %1920 = vmatpush2.bf16.msra.mxu0 %v1871
      %1921 = vmatprep.subr.bf16.mxu0 0
      %1922 = vmatpush2.bf16.msra.mxu0 %v1870
      %1923 = vmatprep.subr.bf16.mxu0 0
      %1924 = vmatpush2.bf16.msra.mxu0 %v1869
      %1925 = vmatprep.mubr.bf16.mxu0 %v1740
      %1926 = vmatmul.mubr.bf16.gmra.mxu0 %v1728
      %v1927 = vpop.f32.mrf.mxu0
      %v1928 = vadd.f32 0.0, %v1927
      %v1929 = vpop.f32.mrf.mxu0
      %v1930 = vpop.f32.mrf.mxu0
      %v1931 = vadd.f32 0.0, %v1930
      %v1932 = vpop.f32.mrf.mxu0
      %1933 = vmatprep.mubr.bf16.mxu0 %v1756
      %1934 = vmatmul.mubr.bf16.gmra.mxu0 %v1748
      %v1935 = vpop.f32.mrf.mxu0
      %v1936 = vadd.f32 0.0, %v1935
      %v1937 = vpop.f32.mrf.mxu0
      %v1938 = vpop.f32.mrf.mxu0
      %v1939 = vadd.f32 0.0, %v1938
      %v1940 = vpop.f32.mrf.mxu0
      %1941 = vmatprep.mubr.bf16.mxu0 %v1772
      %1942 = vmatmul.mubr.bf16.gmra.mxu0 %v1764
      %v1943 = vpop.f32.mrf.mxu0
      %v1944 = vadd.f32 0.0, %v1943
      %v1945 = vpop.f32.mrf.mxu0
      %v1946 = vpop.f32.mrf.mxu0
      %v1947 = vadd.f32 0.0, %v1946
      %v1948 = vpop.f32.mrf.mxu0
      %1949 = vmatprep.mubr.bf16.mxu0 %v1788
      %1950 = vmatmul.mubr.bf16.gmra.mxu0 %v1780
      %v1951 = vpop.f32.mrf.mxu0
      %v1952 = vadd.f32 0.0, %v1951
      %v1953 = vpop.f32.mrf.mxu0
      %v1954 = vpop.f32.mrf.mxu0
      %v1955 = vadd.f32 0.0, %v1954
      %v1956 = vpop.f32.mrf.mxu0
      %1957 = vdwg.mxu0
      %v1958 = vadd.f32 %v1455, %v1928
      %v1959 = vadd.f32 %v1458, %v1931
      %v1960 = vadd.f32 %v1463, %v1936
      %v1961 = vadd.f32 %v1466, %v1939
      %v1962 = vadd.f32 %v1471, %v1944
      %v1963 = vadd.f32 %v1474, %v1947
      %v1964 = vadd.f32 %v1479, %v1952
      %v1965 = vadd.f32 %v1482, %v1955
      %v1966 = vld [vmem:[#allocation2 + $0x8] sm:$0x88]
      %v1967 = vld [vmem:[#allocation2 + $0x48] sm:$0xff]
      %v1968 = vmul.bf16 %v1966, %v830
      %v1969 = vmul.bf16 %v1486, %v840
      %v1970 = vmul.bf16 %v1487, %v850
      %v1971 = vmul.bf16 %v1488, %v860
      %v1972 = vmul.bf16 %v1489, %v870
      %v1973 = vmul.bf16 %v1490, %v880
      %v1974 = vmul.bf16 %v1491, %v890
      %v1975 = vmul.bf16 %v1492, %v900
      %v1976 = vmul.bf16 %v1967, %v905
      %s1977 = scalar_lea.vmem %s4, 384
      %v1978 = vld [vmem:[%s1977] sm:$0xf]
      %v1979 = vld [vmem:[%s1977 + $0x4] sm:$0xf]
      %v1980 = vld [vmem:[%s1977 + $0x8] sm:$0xf]
      %v1981 = vld [vmem:[%s1977 + $0xc] sm:$0xf]
      %v1982 = vld [vmem:[%s1977 + $0x10] sm:$0xf]
      %v1983 = vld [vmem:[%s1977 + $0x14] sm:$0xf]
      %v1984 = vld [vmem:[%s1977 + $0x18] sm:$0xf]
      %v1985 = vld [vmem:[%s1977 + $0x1c] sm:$0xf]
      %v1986 = vld [vmem:[%s1977 + $0x20] sm:$0xf]
      %v1987 = vld [vmem:[%s1977 + $0x24] sm:$0xf]
      %v1988 = vld [vmem:[%s1977 + $0x28] sm:$0xf]
      %v1989 = vld [vmem:[%s1977 + $0x2c] sm:$0xf]
      %v1990 = vld [vmem:[%s1977 + $0x30] sm:$0xf]
      %v1991 = vld [vmem:[%s1977 + $0x34] sm:$0xf]
      %v1992 = vld [vmem:[%s1977 + $0x38] sm:$0xf]
      %v1993 = vld [vmem:[%s1977 + $0x3c] sm:$0xf]
      %v1994 = vld [vmem:[%s1977 + $0x40] sm:$0xf]
      %v1995 = vld [vmem:[%s1977 + $0x44] sm:$0xf]
      %v1996 = vld [vmem:[%s1977 + $0x48] sm:$0xf]
      %v1997 = vld [vmem:[%s1977 + $0x4c] sm:$0xf]
      %v1998 = vld [vmem:[%s1977 + $0x50] sm:$0xf]
      %v1999 = vld [vmem:[%s1977 + $0x54] sm:$0xf]
      %v2000 = vld [vmem:[%s1977 + $0x58] sm:$0xf]
      %v2001 = vld [vmem:[%s1977 + $0x5c] sm:$0xf]
      %v2002 = vld [vmem:[%s1977 + $0x60] sm:$0xf]
      %v2003 = vld [vmem:[%s1977 + $0x64] sm:$0xf]
      %v2004 = vld [vmem:[%s1977 + $0x68] sm:$0xf]
      %v2005 = vld [vmem:[%s1977 + $0x6c] sm:$0xf]
      %v2006 = vld [vmem:[%s1977 + $0x70] sm:$0xf]
      %v2007 = vld [vmem:[%s1977 + $0x74] sm:$0xf]
      %v2008 = vld [vmem:[%s1977 + $0x78] sm:$0xf]
      %v2009 = vld [vmem:[%s1977 + $0x7c] sm:$0xf]
      %v2019 = vunpack.c.l.b16 %v1968
      %v2020 = vunpack.c.h.b16 %v1968
      %v2021 = vunpack.c.l.b16 %v1969
      %v2022 = vunpack.c.h.b16 %v1969
      %v2023 = vunpack.c.l.b16 %v1970
      %v2024 = vunpack.c.h.b16 %v1970
      %v2025 = vunpack.c.l.b16 %v1971
      %v2026 = vunpack.c.h.b16 %v1971
      %v2027 = vunpack.c.l.b16 %v1972
      %v2028 = vunpack.c.h.b16 %v1972
      %v2029 = vunpack.c.l.b16 %v1973
      %v2030 = vunpack.c.h.b16 %v1973
      %v2031 = vunpack.c.l.b16 %v1974
      %v2032 = vunpack.c.h.b16 %v1974
      %v2033 = vunpack.c.l.b16 %v1975
      %v2034 = vunpack.c.h.b16 %v1975
      %v2035 = vunpack.c.l.b16 %v1976
      %v2036 = vunpack.c.h.b16 %v1976
      %v2037 = vpack.c.b16 %v2021, %v2019
      %v2038 = vpack.c.b16 %v2022, %v2020
      %v2039 = vpack.c.b16 %v2025, %v2023
      %v2040 = vpack.c.b16 %v2026, %v2024
      %v2041 = vpack.c.b16 %v2029, %v2027
      %v2042 = vpack.c.b16 %v2030, %v2028
      %v2043 = vpack.c.b16 %v2033, %v2031
      %v2044 = vpack.c.b16 %v2034, %v2032
      %v2045 = vpack.c.b16 %v2035, %v2035
      %v2046 = vpack.c.b16 %v2036, %v2036
      %v2048 = vshrl.u32 %v2037, 16
      %v2050 = vrot.slane %v2048, 3
      %v2051 = vshll.u32 %v2037, 16
      %v2053 = vrot.slane %v2051, 4
      %v2054 = vor.u32 %v2050, %v2053
      %v2056 = vshrl.u32 %v2039, 16
      %v2058 = vrot.slane %v2056, 3
      %v2059 = vshll.u32 %v2039, 16
      %v2061 = vrot.slane %v2059, 4
      %v2062 = vor.u32 %v2058, %v2061
      %v2063 = vsel %vm1227, %v2054, %v2062
      %v2065 = vshrl.u32 %v2038, 16
      %v2067 = vrot.slane %v2065, 3
      %v2068 = vshll.u32 %v2038, 16
      %v2070 = vrot.slane %v2068, 4
      %v2071 = vor.u32 %v2067, %v2070
      %v2073 = vshrl.u32 %v2040, 16
      %v2075 = vrot.slane %v2073, 3
      %v2076 = vshll.u32 %v2040, 16
      %v2078 = vrot.slane %v2076, 4
      %v2079 = vor.u32 %v2075, %v2078
      %v2080 = vsel %vm1227, %v2071, %v2079
      %v2082 = vshrl.u32 %v2041, 16
      %v2084 = vrot.slane %v2082, 3
      %v2085 = vshll.u32 %v2041, 16
      %v2087 = vrot.slane %v2085, 4
      %v2088 = vor.u32 %v2084, %v2087
      %v2089 = vsel %vm1227, %v2062, %v2088
      %v2091 = vshrl.u32 %v2042, 16
      %v2093 = vrot.slane %v2091, 3
      %v2094 = vshll.u32 %v2042, 16
      %v2096 = vrot.slane %v2094, 4
      %v2097 = vor.u32 %v2093, %v2096
      %v2098 = vsel %vm1227, %v2079, %v2097
      %v2100 = vshrl.u32 %v2043, 16
      %v2102 = vrot.slane %v2100, 3
      %v2103 = vshll.u32 %v2043, 16
      %v2105 = vrot.slane %v2103, 4
      %v2106 = vor.u32 %v2102, %v2105
      %v2107 = vsel %vm1227, %v2088, %v2106
      %v2109 = vshrl.u32 %v2044, 16
      %v2111 = vrot.slane %v2109, 3
      %v2112 = vshll.u32 %v2044, 16
      %v2114 = vrot.slane %v2112, 4
      %v2115 = vor.u32 %v2111, %v2114
      %v2116 = vsel %vm1227, %v2097, %v2115
      %v2118 = vshrl.u32 %v2045, 16
      %v2120 = vrot.slane %v2118, 3
      %v2121 = vshll.u32 %v2045, 16
      %v2123 = vrot.slane %v2121, 4
      %v2124 = vor.u32 %v2120, %v2123
      %v2125 = vsel %vm1227, %v2106, %v2124
      %v2127 = vshrl.u32 %v2046, 16
      %v2129 = vrot.slane %v2127, 3
      %v2130 = vshll.u32 %v2046, 16
      %v2132 = vrot.slane %v2130, 4
      %v2133 = vor.u32 %v2129, %v2132
      %v2134 = vsel %vm1227, %v2115, %v2133
      %v2175 = vunpack.c.l.b16 %v1978
      %v2176 = vunpack.c.l.b16 %v1979
      %v2177 = vunpack.c.l.b16 %v1980
      %v2178 = vunpack.c.l.b16 %v1981
      %v2179 = vunpack.c.l.b16 %v1982
      %v2180 = vunpack.c.l.b16 %v1983
      %v2181 = vunpack.c.l.b16 %v1984
      %v2182 = vunpack.c.l.b16 %v1985
      %v2183 = vunpack.c.l.b16 %v1986
      %v2184 = vunpack.c.l.b16 %v1987
      %v2185 = vunpack.c.l.b16 %v1988
      %v2186 = vunpack.c.l.b16 %v1989
      %v2187 = vunpack.c.l.b16 %v1990
      %v2188 = vunpack.c.l.b16 %v1991
      %v2189 = vunpack.c.l.b16 %v1992
      %v2190 = vunpack.c.l.b16 %v1993
      %v2191 = vunpack.c.l.b16 %v1994
      %v2192 = vunpack.c.l.b16 %v1995
      %v2193 = vunpack.c.l.b16 %v1996
      %v2194 = vunpack.c.l.b16 %v1997
      %v2195 = vunpack.c.l.b16 %v1998
      %v2196 = vunpack.c.l.b16 %v1999
      %v2197 = vunpack.c.l.b16 %v2000
      %v2198 = vunpack.c.l.b16 %v2001
      %v2199 = vunpack.c.l.b16 %v2002
      %v2200 = vunpack.c.l.b16 %v2003
      %v2201 = vunpack.c.l.b16 %v2004
      %v2202 = vunpack.c.l.b16 %v2005
      %v2203 = vunpack.c.l.b16 %v2006
      %v2204 = vunpack.c.l.b16 %v2007
      %v2205 = vunpack.c.l.b16 %v2008
      %v2206 = vunpack.c.l.b16 %v2009
      %v2207 = vpack.c.b16 %v2176, %v2175
      %v2208 = vpack.c.b16 %v2178, %v2177
      %v2209 = vpack.c.b16 %v2180, %v2179
      %v2210 = vpack.c.b16 %v2182, %v2181
      %v2211 = vpack.c.b16 %v2184, %v2183
      %v2212 = vpack.c.b16 %v2186, %v2185
      %v2213 = vpack.c.b16 %v2188, %v2187
      %v2214 = vpack.c.b16 %v2190, %v2189
      %v2215 = vpack.c.b16 %v2192, %v2191
      %v2216 = vpack.c.b16 %v2194, %v2193
      %v2217 = vpack.c.b16 %v2196, %v2195
      %v2218 = vpack.c.b16 %v2198, %v2197
      %v2219 = vpack.c.b16 %v2200, %v2199
      %v2220 = vpack.c.b16 %v2202, %v2201
      %v2221 = vpack.c.b16 %v2204, %v2203
      %v2222 = vpack.c.b16 %v2206, %v2205
      %2239 = vmatprep.subr.bf16.mxu0 0
      %2240 = vmatpush1.bf16.msra.mxu0 %v2214
      %2241 = vmatprep.subr.bf16.mxu0 0
      %2242 = vmatpush1.bf16.msra.mxu0 %v2213
      %2243 = vmatprep.subr.bf16.mxu0 0
      %2244 = vmatpush1.bf16.msra.mxu0 %v2212
      %2245 = vmatprep.subr.bf16.mxu0 0
      %2246 = vmatpush1.bf16.msra.mxu0 %v2211
      %2247 = vmatprep.subr.bf16.mxu0 0
      %2248 = vmatpush1.bf16.msra.mxu0 %v2210
      %2249 = vmatprep.subr.bf16.mxu0 0
      %2250 = vmatpush1.bf16.msra.mxu0 %v2209
      %2251 = vmatprep.subr.bf16.mxu0 0
      %2252 = vmatpush1.bf16.msra.mxu0 %v2208
      %2253 = vmatprep.subr.bf16.mxu0 0
      %2254 = vmatpush1.bf16.msra.mxu0 %v2207
      %2255 = vmatprep.subr.bf16.mxu0 0
      %2256 = vmatpush2.bf16.msra.mxu0 %v2222
      %2257 = vmatprep.subr.bf16.mxu0 0
      %2258 = vmatpush2.bf16.msra.mxu0 %v2221
      %2259 = vmatprep.subr.bf16.mxu0 0
      %2260 = vmatpush2.bf16.msra.mxu0 %v2220
      %2261 = vmatprep.subr.bf16.mxu0 0
      %2262 = vmatpush2.bf16.msra.mxu0 %v2219
      %2263 = vmatprep.subr.bf16.mxu0 0
      %2264 = vmatpush2.bf16.msra.mxu0 %v2218
      %2265 = vmatprep.subr.bf16.mxu0 0
      %2266 = vmatpush2.bf16.msra.mxu0 %v2217
      %2267 = vmatprep.subr.bf16.mxu0 0
      %2268 = vmatpush2.bf16.msra.mxu0 %v2216
      %2269 = vmatprep.subr.bf16.mxu0 0
      %2270 = vmatpush2.bf16.msra.mxu0 %v2215
      %2271 = vmatprep.mubr.bf16.mxu0 %v2080
      %2272 = vmatmul.mubr.bf16.gmra.mxu0 %v2063
      %v2273 = vpop.f32.mrf.mxu0
      %v2274 = vadd.f32 0.0, %v2273
      %v2275 = vpop.f32.mrf.mxu0
      %v2276 = vpop.f32.mrf.mxu0
      %v2277 = vadd.f32 0.0, %v2276
      %v2278 = vpop.f32.mrf.mxu0
      %2279 = vmatprep.mubr.bf16.mxu0 %v2098
      %2280 = vmatmul.mubr.bf16.gmra.mxu0 %v2089
      %v2281 = vpop.f32.mrf.mxu0
      %v2282 = vadd.f32 0.0, %v2281
      %v2283 = vpop.f32.mrf.mxu0
      %v2284 = vpop.f32.mrf.mxu0
      %v2285 = vadd.f32 0.0, %v2284
      %v2286 = vpop.f32.mrf.mxu0
      %2287 = vmatprep.mubr.bf16.mxu0 %v2116
      %2288 = vmatmul.mubr.bf16.gmra.mxu0 %v2107
      %v2289 = vpop.f32.mrf.mxu0
      %v2290 = vadd.f32 0.0, %v2289
      %v2291 = vpop.f32.mrf.mxu0
      %v2292 = vpop.f32.mrf.mxu0
      %v2293 = vadd.f32 0.0, %v2292
      %v2294 = vpop.f32.mrf.mxu0
      %2295 = vmatprep.mubr.bf16.mxu0 %v2134
      %2296 = vmatmul.mubr.bf16.gmra.mxu0 %v2125
      %v2297 = vpop.f32.mrf.mxu0
      %v2298 = vadd.f32 0.0, %v2297
      %v2299 = vpop.f32.mrf.mxu0
      %v2300 = vpop.f32.mrf.mxu0
      %v2301 = vadd.f32 0.0, %v2300
      %v2302 = vpop.f32.mrf.mxu0
      %2303 = vdwg.mxu0
      %v2304 = vadd.f32 %v1958, %v2274
      %v2305 = vadd.f32 %v1959, %v2277
      %v2306 = vadd.f32 %v1960, %v2282
      %v2307 = vadd.f32 %v1961, %v2285
      %v2308 = vadd.f32 %v1962, %v2290
      %v2309 = vadd.f32 %v1963, %v2293
      %v2310 = vadd.f32 %v1964, %v2298
      %v2311 = vadd.f32 %v1965, %v2301
      %s2312 = scalar_lea.vmem %s4, 512
      %v2313 = vld [vmem:[%s2312] sm:$0xf]
      %v2314 = vld [vmem:[%s2312 + $0x4] sm:$0xf]
      %v2315 = vld [vmem:[%s2312 + $0x8] sm:$0xf]
      %v2316 = vld [vmem:[%s2312 + $0xc] sm:$0xf]
      %v2317 = vld [vmem:[%s2312 + $0x10] sm:$0xf]
      %v2318 = vld [vmem:[%s2312 + $0x14] sm:$0xf]
      %v2319 = vld [vmem:[%s2312 + $0x18] sm:$0xf]
      %v2320 = vld [vmem:[%s2312 + $0x1c] sm:$0xf]
      %v2321 = vld [vmem:[%s2312 + $0x20] sm:$0xf]
      %v2322 = vld [vmem:[%s2312 + $0x24] sm:$0xf]
      %v2323 = vld [vmem:[%s2312 + $0x28] sm:$0xf]
      %v2324 = vld [vmem:[%s2312 + $0x2c] sm:$0xf]
      %v2325 = vld [vmem:[%s2312 + $0x30] sm:$0xf]
      %v2326 = vld [vmem:[%s2312 + $0x34] sm:$0xf]
      %v2327 = vld [vmem:[%s2312 + $0x38] sm:$0xf]
      %v2328 = vld [vmem:[%s2312 + $0x3c] sm:$0xf]
      %v2329 = vld [vmem:[%s2312 + $0x40] sm:$0xf]
      %v2330 = vld [vmem:[%s2312 + $0x44] sm:$0xf]
      %v2331 = vld [vmem:[%s2312 + $0x48] sm:$0xf]
      %v2332 = vld [vmem:[%s2312 + $0x4c] sm:$0xf]
      %v2333 = vld [vmem:[%s2312 + $0x50] sm:$0xf]
      %v2334 = vld [vmem:[%s2312 + $0x54] sm:$0xf]
      %v2335 = vld [vmem:[%s2312 + $0x58] sm:$0xf]
      %v2336 = vld [vmem:[%s2312 + $0x5c] sm:$0xf]
      %v2337 = vld [vmem:[%s2312 + $0x60] sm:$0xf]
      %v2338 = vld [vmem:[%s2312 + $0x64] sm:$0xf]
      %v2339 = vld [vmem:[%s2312 + $0x68] sm:$0xf]
      %v2340 = vld [vmem:[%s2312 + $0x6c] sm:$0xf]
      %v2341 = vld [vmem:[%s2312 + $0x70] sm:$0xf]
      %v2342 = vld [vmem:[%s2312 + $0x74] sm:$0xf]
      %v2343 = vld [vmem:[%s2312 + $0x78] sm:$0xf]
      %v2344 = vld [vmem:[%s2312 + $0x7c] sm:$0xf]
      %v2353 = vunpack.c.l.b16 %v1486
      %v2354 = vunpack.c.h.b16 %v1486
      %v2355 = vunpack.c.l.b16 %v1487
      %v2356 = vunpack.c.h.b16 %v1487
      %v2357 = vunpack.c.l.b16 %v1488
      %v2358 = vunpack.c.h.b16 %v1488
      %v2359 = vunpack.c.l.b16 %v1489
      %v2360 = vunpack.c.h.b16 %v1489
      %v2361 = vunpack.c.l.b16 %v1490
      %v2362 = vunpack.c.h.b16 %v1490
      %v2363 = vunpack.c.l.b16 %v1491
      %v2364 = vunpack.c.h.b16 %v1491
      %v2365 = vunpack.c.l.b16 %v1492
      %v2366 = vunpack.c.h.b16 %v1492
      %v2367 = vunpack.c.l.b16 %v1967
      %v2368 = vunpack.c.h.b16 %v1967
      %v2369 = vpack.c.b16 %v2355, %v2353
      %v2370 = vpack.c.b16 %v2356, %v2354
      %v2371 = vpack.c.b16 %v2359, %v2357
      %v2372 = vpack.c.b16 %v2360, %v2358
      %v2373 = vpack.c.b16 %v2363, %v2361
      %v2374 = vpack.c.b16 %v2364, %v2362
      %v2375 = vpack.c.b16 %v2367, %v2365
      %v2376 = vpack.c.b16 %v2368, %v2366
      %v2417 = vunpack.c.l.b16 %v2313
      %v2418 = vunpack.c.l.b16 %v2314
      %v2419 = vunpack.c.l.b16 %v2315
      %v2420 = vunpack.c.l.b16 %v2316
      %v2421 = vunpack.c.l.b16 %v2317
      %v2422 = vunpack.c.l.b16 %v2318
      %v2423 = vunpack.c.l.b16 %v2319
      %v2424 = vunpack.c.l.b16 %v2320
      %v2425 = vunpack.c.l.b16 %v2321
      %v2426 = vunpack.c.l.b16 %v2322
      %v2427 = vunpack.c.l.b16 %v2323
      %v2428 = vunpack.c.l.b16 %v2324
      %v2429 = vunpack.c.l.b16 %v2325
      %v2430 = vunpack.c.l.b16 %v2326
      %v2431 = vunpack.c.l.b16 %v2327
      %v2432 = vunpack.c.l.b16 %v2328
      %v2433 = vunpack.c.l.b16 %v2329
      %v2434 = vunpack.c.l.b16 %v2330
      %v2435 = vunpack.c.l.b16 %v2331
      %v2436 = vunpack.c.l.b16 %v2332
      %v2437 = vunpack.c.l.b16 %v2333
      %v2438 = vunpack.c.l.b16 %v2334
      %v2439 = vunpack.c.l.b16 %v2335
      %v2440 = vunpack.c.l.b16 %v2336
      %v2441 = vunpack.c.l.b16 %v2337
      %v2442 = vunpack.c.l.b16 %v2338
      %v2443 = vunpack.c.l.b16 %v2339
      %v2444 = vunpack.c.l.b16 %v2340
      %v2445 = vunpack.c.l.b16 %v2341
      %v2446 = vunpack.c.l.b16 %v2342
      %v2447 = vunpack.c.l.b16 %v2343
      %v2448 = vunpack.c.l.b16 %v2344
      %v2449 = vpack.c.b16 %v2418, %v2417
      %v2450 = vpack.c.b16 %v2420, %v2419
      %v2451 = vpack.c.b16 %v2422, %v2421
      %v2452 = vpack.c.b16 %v2424, %v2423
      %v2453 = vpack.c.b16 %v2426, %v2425
      %v2454 = vpack.c.b16 %v2428, %v2427
      %v2455 = vpack.c.b16 %v2430, %v2429
      %v2456 = vpack.c.b16 %v2432, %v2431
      %v2457 = vpack.c.b16 %v2434, %v2433
      %v2458 = vpack.c.b16 %v2436, %v2435
      %v2459 = vpack.c.b16 %v2438, %v2437
      %v2460 = vpack.c.b16 %v2440, %v2439
      %v2461 = vpack.c.b16 %v2442, %v2441
      %v2462 = vpack.c.b16 %v2444, %v2443
      %v2463 = vpack.c.b16 %v2446, %v2445
      %v2464 = vpack.c.b16 %v2448, %v2447
      %2481 = vmatprep.subr.bf16.mxu0 0
      %2482 = vmatpush1.bf16.msra.mxu0 %v2456
      %2483 = vmatprep.subr.bf16.mxu0 0
      %2484 = vmatpush1.bf16.msra.mxu0 %v2455
      %2485 = vmatprep.subr.bf16.mxu0 0
      %2486 = vmatpush1.bf16.msra.mxu0 %v2454
      %2487 = vmatprep.subr.bf16.mxu0 0
      %2488 = vmatpush1.bf16.msra.mxu0 %v2453
      %2489 = vmatprep.subr.bf16.mxu0 0
      %2490 = vmatpush1.bf16.msra.mxu0 %v2452
      %2491 = vmatprep.subr.bf16.mxu0 0
      %2492 = vmatpush1.bf16.msra.mxu0 %v2451
      %2493 = vmatprep.subr.bf16.mxu0 0
      %2494 = vmatpush1.bf16.msra.mxu0 %v2450
      %2495 = vmatprep.subr.bf16.mxu0 0
      %2496 = vmatpush1.bf16.msra.mxu0 %v2449
      %2497 = vmatprep.subr.bf16.mxu0 0
      %2498 = vmatpush2.bf16.msra.mxu0 %v2464
      %2499 = vmatprep.subr.bf16.mxu0 0
      %2500 = vmatpush2.bf16.msra.mxu0 %v2463
      %2501 = vmatprep.subr.bf16.mxu0 0
      %2502 = vmatpush2.bf16.msra.mxu0 %v2462
      %2503 = vmatprep.subr.bf16.mxu0 0
      %2504 = vmatpush2.bf16.msra.mxu0 %v2461
      %2505 = vmatprep.subr.bf16.mxu0 0
      %2506 = vmatpush2.bf16.msra.mxu0 %v2460
      %2507 = vmatprep.subr.bf16.mxu0 0
      %2508 = vmatpush2.bf16.msra.mxu0 %v2459
      %2509 = vmatprep.subr.bf16.mxu0 0
      %2510 = vmatpush2.bf16.msra.mxu0 %v2458
      %2511 = vmatprep.subr.bf16.mxu0 0
      %2512 = vmatpush2.bf16.msra.mxu0 %v2457
      %2513 = vmatprep.mubr.bf16.mxu0 %v2370
      %2514 = vmatmul.mubr.bf16.gmra.mxu0 %v2369
      %v2515 = vpop.f32.mrf.mxu0
      %v2516 = vadd.f32 0.0, %v2515
      %v2517 = vpop.f32.mrf.mxu0
      %v2518 = vpop.f32.mrf.mxu0
      %v2519 = vadd.f32 0.0, %v2518
      %v2520 = vpop.f32.mrf.mxu0
      %2521 = vmatprep.mubr.bf16.mxu0 %v2372
      %2522 = vmatmul.mubr.bf16.gmra.mxu0 %v2371
      %v2523 = vpop.f32.mrf.mxu0
      %v2524 = vadd.f32 0.0, %v2523
      %v2525 = vpop.f32.mrf.mxu0
      %v2526 = vpop.f32.mrf.mxu0
      %v2527 = vadd.f32 0.0, %v2526
      %v2528 = vpop.f32.mrf.mxu0
      %2529 = vmatprep.mubr.bf16.mxu0 %v2374
      %2530 = vmatmul.mubr.bf16.gmra.mxu0 %v2373
      %v2531 = vpop.f32.mrf.mxu0
      %v2532 = vadd.f32 0.0, %v2531
      %v2533 = vpop.f32.mrf.mxu0
      %v2534 = vpop.f32.mrf.mxu0
      %v2535 = vadd.f32 0.0, %v2534
      %v2536 = vpop.f32.mrf.mxu0
      %2537 = vmatprep.mubr.bf16.mxu0 %v2376
      %2538 = vmatmul.mubr.bf16.gmra.mxu0 %v2375
      %v2539 = vpop.f32.mrf.mxu0
      %v2540 = vadd.f32 0.0, %v2539
      %v2541 = vpop.f32.mrf.mxu0
      %v2542 = vpop.f32.mrf.mxu0
      %v2543 = vadd.f32 0.0, %v2542
      %v2544 = vpop.f32.mrf.mxu0
      %2545 = vdwg.mxu0
      %v2546 = vadd.f32 %v2304, %v2516
      %v2547 = vadd.f32 %v2305, %v2519
      %v2548 = vadd.f32 %v2306, %v2524
      %v2549 = vadd.f32 %v2307, %v2527
      %v2550 = vadd.f32 %v2308, %v2532
      %v2551 = vadd.f32 %v2309, %v2535
      %v2552 = vadd.f32 %v2310, %v2540
      %v2553 = vadd.f32 %v2311, %v2543
      %v2554 = vld [vmem:[#allocation2 + $0x10] sm:$0xff]
      %v2555 = vld [vmem:[#allocation2 + $0x18] sm:$0xff]
      %v2556 = vld [vmem:[#allocation2 + $0x20] sm:$0xff]
      %v2557 = vld [vmem:[#allocation2 + $0x28] sm:$0xff]
      %v2558 = vld [vmem:[#allocation2 + $0x30] sm:$0xff]
      %v2559 = vld [vmem:[#allocation2 + $0x38] sm:$0xff]
      %v2560 = vld [vmem:[#allocation2 + $0x40] sm:$0xff]
      %v2561 = vld [vmem:[#allocation2 + $0x48] sm:$0xff]
      %v2562 = vld [vmem:[#allocation2 + $0x50] sm:$0x11]
      %v2563 = vmul.bf16 %v2554, %v1563
      %v2564 = vmul.bf16 %v2555, %v1572
      %v2565 = vmul.bf16 %v2556, %v1581
      %v2566 = vmul.bf16 %v2557, %v1590
      %v2567 = vmul.bf16 %v2558, %v1599
      %v2568 = vmul.bf16 %v2559, %v1608
      %v2569 = vmul.bf16 %v2560, %v1617
      %v2570 = vmul.bf16 %v2561, %v1626
      %v2571 = vmul.bf16 %v2562, %v1627
      %s2572 = scalar_lea.vmem %s4, 640
      %v2573 = vld [vmem:[%s2572] sm:$0xf]
      %v2574 = vld [vmem:[%s2572 + $0x4] sm:$0xf]
      %v2575 = vld [vmem:[%s2572 + $0x8] sm:$0xf]
      %v2576 = vld [vmem:[%s2572 + $0xc] sm:$0xf]
      %v2577 = vld [vmem:[%s2572 + $0x10] sm:$0xf]
      %v2578 = vld [vmem:[%s2572 + $0x14] sm:$0xf]
      %v2579 = vld [vmem:[%s2572 + $0x18] sm:$0xf]
      %v2580 = vld [vmem:[%s2572 + $0x1c] sm:$0xf]
      %v2581 = vld [vmem:[%s2572 + $0x20] sm:$0xf]
      %v2582 = vld [vmem:[%s2572 + $0x24] sm:$0xf]
      %v2583 = vld [vmem:[%s2572 + $0x28] sm:$0xf]
      %v2584 = vld [vmem:[%s2572 + $0x2c] sm:$0xf]
      %v2585 = vld [vmem:[%s2572 + $0x30] sm:$0xf]
      %v2586 = vld [vmem:[%s2572 + $0x34] sm:$0xf]
      %v2587 = vld [vmem:[%s2572 + $0x38] sm:$0xf]
      %v2588 = vld [vmem:[%s2572 + $0x3c] sm:$0xf]
      %v2589 = vld [vmem:[%s2572 + $0x40] sm:$0xf]
      %v2590 = vld [vmem:[%s2572 + $0x44] sm:$0xf]
      %v2591 = vld [vmem:[%s2572 + $0x48] sm:$0xf]
      %v2592 = vld [vmem:[%s2572 + $0x4c] sm:$0xf]
      %v2593 = vld [vmem:[%s2572 + $0x50] sm:$0xf]
      %v2594 = vld [vmem:[%s2572 + $0x54] sm:$0xf]
      %v2595 = vld [vmem:[%s2572 + $0x58] sm:$0xf]
      %v2596 = vld [vmem:[%s2572 + $0x5c] sm:$0xf]
      %v2597 = vld [vmem:[%s2572 + $0x60] sm:$0xf]
      %v2598 = vld [vmem:[%s2572 + $0x64] sm:$0xf]
      %v2599 = vld [vmem:[%s2572 + $0x68] sm:$0xf]
      %v2600 = vld [vmem:[%s2572 + $0x6c] sm:$0xf]
      %v2601 = vld [vmem:[%s2572 + $0x70] sm:$0xf]
      %v2602 = vld [vmem:[%s2572 + $0x74] sm:$0xf]
      %v2603 = vld [vmem:[%s2572 + $0x78] sm:$0xf]
      %v2604 = vld [vmem:[%s2572 + $0x7c] sm:$0xf]
      %v2614 = vunpack.c.l.b16 %v2563
      %v2615 = vunpack.c.h.b16 %v2563
      %v2616 = vunpack.c.l.b16 %v2564
      %v2617 = vunpack.c.h.b16 %v2564
      %v2618 = vunpack.c.l.b16 %v2565
      %v2619 = vunpack.c.h.b16 %v2565
      %v2620 = vunpack.c.l.b16 %v2566
      %v2621 = vunpack.c.h.b16 %v2566
      %v2622 = vunpack.c.l.b16 %v2567
      %v2623 = vunpack.c.h.b16 %v2567
      %v2624 = vunpack.c.l.b16 %v2568
      %v2625 = vunpack.c.h.b16 %v2568
      %v2626 = vunpack.c.l.b16 %v2569
      %v2627 = vunpack.c.h.b16 %v2569
      %v2628 = vunpack.c.l.b16 %v2570
      %v2629 = vunpack.c.h.b16 %v2570
      %v2630 = vunpack.c.l.b16 %v2571
      %v2631 = vunpack.c.h.b16 %v2571
      %v2632 = vpack.c.b16 %v2616, %v2614
      %v2633 = vpack.c.b16 %v2617, %v2615
      %v2634 = vpack.c.b16 %v2620, %v2618
      %v2635 = vpack.c.b16 %v2621, %v2619
      %v2636 = vpack.c.b16 %v2624, %v2622
      %v2637 = vpack.c.b16 %v2625, %v2623
      %v2638 = vpack.c.b16 %v2628, %v2626
      %v2639 = vpack.c.b16 %v2629, %v2627
      %v2640 = vpack.c.b16 %v2630, %v2630
      %v2641 = vpack.c.b16 %v2631, %v2631
      %v2643 = vshrl.u32 %v2632, 16
      %v2645 = vshll.u32 %v2632, 16
      %v2647 = vrot.slane %v2645, 1
      %v2648 = vor.u32 %v2643, %v2647
      %v2650 = vshll.u32 %v2634, 16
      %v2652 = vrot.slane %v2650, 1
      %v2653 = vsel %vm1716, %v2648, %v2652
      %v2655 = vshrl.u32 %v2633, 16
      %v2657 = vshll.u32 %v2633, 16
      %v2659 = vrot.slane %v2657, 1
      %v2660 = vor.u32 %v2655, %v2659
      %v2662 = vshll.u32 %v2635, 16
      %v2664 = vrot.slane %v2662, 1
      %v2665 = vsel %vm1716, %v2660, %v2664
      %v2666 = vshrl.u32 %v2634, 16
      %v2668 = vor.u32 %v2666, %v2652
      %v2670 = vshll.u32 %v2636, 16
      %v2672 = vrot.slane %v2670, 1
      %v2673 = vsel %vm1716, %v2668, %v2672
      %v2674 = vshrl.u32 %v2635, 16
      %v2676 = vor.u32 %v2674, %v2664
      %v2678 = vshll.u32 %v2637, 16
      %v2680 = vrot.slane %v2678, 1
      %v2681 = vsel %vm1716, %v2676, %v2680
      %v2682 = vshrl.u32 %v2636, 16
      %v2684 = vor.u32 %v2682, %v2672
      %v2686 = vshll.u32 %v2638, 16
      %v2688 = vrot.slane %v2686, 1
      %v2689 = vsel %vm1716, %v2684, %v2688
      %v2690 = vshrl.u32 %v2637, 16
      %v2692 = vor.u32 %v2690, %v2680
      %v2694 = vshll.u32 %v2639, 16
      %v2696 = vrot.slane %v2694, 1
      %v2697 = vsel %vm1716, %v2692, %v2696
      %v2698 = vshrl.u32 %v2638, 16
      %v2700 = vor.u32 %v2698, %v2688
      %v2702 = vshll.u32 %v2640, 16
      %v2704 = vrot.slane %v2702, 1
      %v2705 = vsel %vm1716, %v2700, %v2704
      %v2706 = vshrl.u32 %v2639, 16
      %v2708 = vor.u32 %v2706, %v2696
      %v2710 = vshll.u32 %v2641, 16
      %v2712 = vrot.slane %v2710, 1
      %v2713 = vsel %vm1716, %v2708, %v2712
      %v2754 = vunpack.c.l.b16 %v2573
      %v2755 = vunpack.c.l.b16 %v2574
      %v2756 = vunpack.c.l.b16 %v2575
      %v2757 = vunpack.c.l.b16 %v2576
      %v2758 = vunpack.c.l.b16 %v2577
      %v2759 = vunpack.c.l.b16 %v2578
      %v2760 = vunpack.c.l.b16 %v2579
      %v2761 = vunpack.c.l.b16 %v2580
      %v2762 = vunpack.c.l.b16 %v2581
      %v2763 = vunpack.c.l.b16 %v2582
      %v2764 = vunpack.c.l.b16 %v2583
      %v2765 = vunpack.c.l.b16 %v2584
      %v2766 = vunpack.c.l.b16 %v2585
      %v2767 = vunpack.c.l.b16 %v2586
      %v2768 = vunpack.c.l.b16 %v2587
      %v2769 = vunpack.c.l.b16 %v2588
      %v2770 = vunpack.c.l.b16 %v2589
      %v2771 = vunpack.c.l.b16 %v2590
      %v2772 = vunpack.c.l.b16 %v2591
      %v2773 = vunpack.c.l.b16 %v2592
      %v2774 = vunpack.c.l.b16 %v2593
      %v2775 = vunpack.c.l.b16 %v2594
      %v2776 = vunpack.c.l.b16 %v2595
      %v2777 = vunpack.c.l.b16 %v2596
      %v2778 = vunpack.c.l.b16 %v2597
      %v2779 = vunpack.c.l.b16 %v2598
      %v2780 = vunpack.c.l.b16 %v2599
      %v2781 = vunpack.c.l.b16 %v2600
      %v2782 = vunpack.c.l.b16 %v2601
      %v2783 = vunpack.c.l.b16 %v2602
      %v2784 = vunpack.c.l.b16 %v2603
      %v2785 = vunpack.c.l.b16 %v2604
      %v2786 = vpack.c.b16 %v2755, %v2754
      %v2787 = vpack.c.b16 %v2757, %v2756
      %v2788 = vpack.c.b16 %v2759, %v2758
      %v2789 = vpack.c.b16 %v2761, %v2760
      %v2790 = vpack.c.b16 %v2763, %v2762
      %v2791 = vpack.c.b16 %v2765, %v2764
      %v2792 = vpack.c.b16 %v2767, %v2766
      %v2793 = vpack.c.b16 %v2769, %v2768
      %v2794 = vpack.c.b16 %v2771, %v2770
      %v2795 = vpack.c.b16 %v2773, %v2772
      %v2796 = vpack.c.b16 %v2775, %v2774
      %v2797 = vpack.c.b16 %v2777, %v2776
      %v2798 = vpack.c.b16 %v2779, %v2778
      %v2799 = vpack.c.b16 %v2781, %v2780
      %v2800 = vpack.c.b16 %v2783, %v2782
      %v2801 = vpack.c.b16 %v2785, %v2784
      %2818 = vmatprep.subr.bf16.mxu0 0
      %2819 = vmatpush1.bf16.msra.mxu0 %v2793
      %2820 = vmatprep.subr.bf16.mxu0 0
      %2821 = vmatpush1.bf16.msra.mxu0 %v2792
      %2822 = vmatprep.subr.bf16.mxu0 0
      %2823 = vmatpush1.bf16.msra.mxu0 %v2791
      %2824 = vmatprep.subr.bf16.mxu0 0
      %2825 = vmatpush1.bf16.msra.mxu0 %v2790
      %2826 = vmatprep.subr.bf16.mxu0 0
      %2827 = vmatpush1.bf16.msra.mxu0 %v2789
      %2828 = vmatprep.subr.bf16.mxu0 0
      %2829 = vmatpush1.bf16.msra.mxu0 %v2788
      %2830 = vmatprep.subr.bf16.mxu0 0
      %2831 = vmatpush1.bf16.msra.mxu0 %v2787
      %2832 = vmatprep.subr.bf16.mxu0 0
      %2833 = vmatpush1.bf16.msra.mxu0 %v2786
      %2834 = vmatprep.subr.bf16.mxu0 0
      %2835 = vmatpush2.bf16.msra.mxu0 %v2801
      %2836 = vmatprep.subr.bf16.mxu0 0
      %2837 = vmatpush2.bf16.msra.mxu0 %v2800
      %2838 = vmatprep.subr.bf16.mxu0 0
      %2839 = vmatpush2.bf16.msra.mxu0 %v2799
      %2840 = vmatprep.subr.bf16.mxu0 0
      %2841 = vmatpush2.bf16.msra.mxu0 %v2798
      %2842 = vmatprep.subr.bf16.mxu0 0
      %2843 = vmatpush2.bf16.msra.mxu0 %v2797
      %2844 = vmatprep.subr.bf16.mxu0 0
      %2845 = vmatpush2.bf16.msra.mxu0 %v2796
      %2846 = vmatprep.subr.bf16.mxu0 0
      %2847 = vmatpush2.bf16.msra.mxu0 %v2795
      %2848 = vmatprep.subr.bf16.mxu0 0
      %2849 = vmatpush2.bf16.msra.mxu0 %v2794
      %2850 = vmatprep.mubr.bf16.mxu0 %v2665
      %2851 = vmatmul.mubr.bf16.gmra.mxu0 %v2653
      %v2852 = vpop.f32.mrf.mxu0
      %v2853 = vadd.f32 0.0, %v2852
      %v2854 = vpop.f32.mrf.mxu0
      %v2855 = vpop.f32.mrf.mxu0
      %v2856 = vadd.f32 0.0, %v2855
      %v2857 = vpop.f32.mrf.mxu0
      %2858 = vmatprep.mubr.bf16.mxu0 %v2681
      %2859 = vmatmul.mubr.bf16.gmra.mxu0 %v2673
      %v2860 = vpop.f32.mrf.mxu0
      %v2861 = vadd.f32 0.0, %v2860
      %v2862 = vpop.f32.mrf.mxu0
      %v2863 = vpop.f32.mrf.mxu0
      %v2864 = vadd.f32 0.0, %v2863
      %v2865 = vpop.f32.mrf.mxu0
      %2866 = vmatprep.mubr.bf16.mxu0 %v2697
      %2867 = vmatmul.mubr.bf16.gmra.mxu0 %v2689
      %v2868 = vpop.f32.mrf.mxu0
      %v2869 = vadd.f32 0.0, %v2868
      %v2870 = vpop.f32.mrf.mxu0
      %v2871 = vpop.f32.mrf.mxu0
      %v2872 = vadd.f32 0.0, %v2871
      %v2873 = vpop.f32.mrf.mxu0
      %2874 = vmatprep.mubr.bf16.mxu0 %v2713
      %2875 = vmatmul.mubr.bf16.gmra.mxu0 %v2705
      %v2876 = vpop.f32.mrf.mxu0
      %v2877 = vadd.f32 0.0, %v2876
      %v2878 = vpop.f32.mrf.mxu0
      %v2879 = vpop.f32.mrf.mxu0
      %v2880 = vadd.f32 0.0, %v2879
      %v2881 = vpop.f32.mrf.mxu0
      %2882 = vdwg.mxu0
      %v2883 = vadd.f32 %v2546, %v2853
      %v2884 = vadd.f32 %v2547, %v2856
      %v2885 = vadd.f32 %v2548, %v2861
      %v2886 = vadd.f32 %v2549, %v2864
      %v2887 = vadd.f32 %v2550, %v2869
      %v2888 = vadd.f32 %v2551, %v2872
      %v2889 = vadd.f32 %v2552, %v2877
      %v2890 = vadd.f32 %v2553, %v2880
      %v2891 = vld [vmem:[#allocation2 + $0x10] sm:$0x88]
      %v2892 = vld [vmem:[#allocation2 + $0x50] sm:$0xff]
      %v2893 = vmul.bf16 %v2891, %v830
      %v2894 = vmul.bf16 %v2555, %v840
      %v2895 = vmul.bf16 %v2556, %v850
      %v2896 = vmul.bf16 %v2557, %v860
      %v2897 = vmul.bf16 %v2558, %v870
      %v2898 = vmul.bf16 %v2559, %v880
      %v2899 = vmul.bf16 %v2560, %v890
      %v2900 = vmul.bf16 %v2561, %v900
      %v2901 = vmul.bf16 %v2892, %v905
      %s2902 = scalar_lea.vmem %s4, 768
      %v2903 = vld [vmem:[%s2902] sm:$0xf]
      %v2904 = vld [vmem:[%s2902 + $0x4] sm:$0xf]
      %v2905 = vld [vmem:[%s2902 + $0x8] sm:$0xf]
      %v2906 = vld [vmem:[%s2902 + $0xc] sm:$0xf]
      %v2907 = vld [vmem:[%s2902 + $0x10] sm:$0xf]
      %v2908 = vld [vmem:[%s2902 + $0x14] sm:$0xf]
      %v2909 = vld [vmem:[%s2902 + $0x18] sm:$0xf]
      %v2910 = vld [vmem:[%s2902 + $0x1c] sm:$0xf]
      %v2911 = vld [vmem:[%s2902 + $0x20] sm:$0xf]
      %v2912 = vld [vmem:[%s2902 + $0x24] sm:$0xf]
      %v2913 = vld [vmem:[%s2902 + $0x28] sm:$0xf]
      %v2914 = vld [vmem:[%s2902 + $0x2c] sm:$0xf]
      %v2915 = vld [vmem:[%s2902 + $0x30] sm:$0xf]
      %v2916 = vld [vmem:[%s2902 + $0x34] sm:$0xf]
      %v2917 = vld [vmem:[%s2902 + $0x38] sm:$0xf]
      %v2918 = vld [vmem:[%s2902 + $0x3c] sm:$0xf]
      %v2919 = vld [vmem:[%s2902 + $0x40] sm:$0xf]
      %v2920 = vld [vmem:[%s2902 + $0x44] sm:$0xf]
      %v2921 = vld [vmem:[%s2902 + $0x48] sm:$0xf]
      %v2922 = vld [vmem:[%s2902 + $0x4c] sm:$0xf]
      %v2923 = vld [vmem:[%s2902 + $0x50] sm:$0xf]
      %v2924 = vld [vmem:[%s2902 + $0x54] sm:$0xf]
      %v2925 = vld [vmem:[%s2902 + $0x58] sm:$0xf]
      %v2926 = vld [vmem:[%s2902 + $0x5c] sm:$0xf]
      %v2927 = vld [vmem:[%s2902 + $0x60] sm:$0xf]
      %v2928 = vld [vmem:[%s2902 + $0x64] sm:$0xf]
      %v2929 = vld [vmem:[%s2902 + $0x68] sm:$0xf]
      %v2930 = vld [vmem:[%s2902 + $0x6c] sm:$0xf]
      %v2931 = vld [vmem:[%s2902 + $0x70] sm:$0xf]
      %v2932 = vld [vmem:[%s2902 + $0x74] sm:$0xf]
      %v2933 = vld [vmem:[%s2902 + $0x78] sm:$0xf]
      %v2934 = vld [vmem:[%s2902 + $0x7c] sm:$0xf]
      %v2944 = vunpack.c.l.b16 %v2893
      %v2945 = vunpack.c.h.b16 %v2893
      %v2946 = vunpack.c.l.b16 %v2894
      %v2947 = vunpack.c.h.b16 %v2894
      %v2948 = vunpack.c.l.b16 %v2895
      %v2949 = vunpack.c.h.b16 %v2895
      %v2950 = vunpack.c.l.b16 %v2896
      %v2951 = vunpack.c.h.b16 %v2896
      %v2952 = vunpack.c.l.b16 %v2897
      %v2953 = vunpack.c.h.b16 %v2897
      %v2954 = vunpack.c.l.b16 %v2898
      %v2955 = vunpack.c.h.b16 %v2898
      %v2956 = vunpack.c.l.b16 %v2899
      %v2957 = vunpack.c.h.b16 %v2899
      %v2958 = vunpack.c.l.b16 %v2900
      %v2959 = vunpack.c.h.b16 %v2900
      %v2960 = vunpack.c.l.b16 %v2901
      %v2961 = vunpack.c.h.b16 %v2901
      %v2962 = vpack.c.b16 %v2946, %v2944
      %v2963 = vpack.c.b16 %v2947, %v2945
      %v2964 = vpack.c.b16 %v2950, %v2948
      %v2965 = vpack.c.b16 %v2951, %v2949
      %v2966 = vpack.c.b16 %v2954, %v2952
      %v2967 = vpack.c.b16 %v2955, %v2953
      %v2968 = vpack.c.b16 %v2958, %v2956
      %v2969 = vpack.c.b16 %v2959, %v2957
      %v2970 = vpack.c.b16 %v2960, %v2960
      %v2971 = vpack.c.b16 %v2961, %v2961
      %v2973 = vshrl.u32 %v2962, 16
      %v2975 = vrot.slane %v2973, 3
      %v2976 = vshll.u32 %v2962, 16
      %v2978 = vrot.slane %v2976, 4
      %v2979 = vor.u32 %v2975, %v2978
      %v2981 = vshrl.u32 %v2964, 16
      %v2983 = vrot.slane %v2981, 3
      %v2984 = vshll.u32 %v2964, 16
      %v2986 = vrot.slane %v2984, 4
      %v2987 = vor.u32 %v2983, %v2986
      %v2988 = vsel %vm1227, %v2979, %v2987
      %v2990 = vshrl.u32 %v2963, 16
      %v2992 = vrot.slane %v2990, 3
      %v2993 = vshll.u32 %v2963, 16
      %v2995 = vrot.slane %v2993, 4
      %v2996 = vor.u32 %v2992, %v2995
      %v2998 = vshrl.u32 %v2965, 16
      %v3000 = vrot.slane %v2998, 3
      %v3001 = vshll.u32 %v2965, 16
      %v3003 = vrot.slane %v3001, 4
      %v3004 = vor.u32 %v3000, %v3003
      %v3005 = vsel %vm1227, %v2996, %v3004
      %v3007 = vshrl.u32 %v2966, 16
      %v3009 = vrot.slane %v3007, 3
      %v3010 = vshll.u32 %v2966, 16
      %v3012 = vrot.slane %v3010, 4
      %v3013 = vor.u32 %v3009, %v3012
      %v3014 = vsel %vm1227, %v2987, %v3013
      %v3016 = vshrl.u32 %v2967, 16
      %v3018 = vrot.slane %v3016, 3
      %v3019 = vshll.u32 %v2967, 16
      %v3021 = vrot.slane %v3019, 4
      %v3022 = vor.u32 %v3018, %v3021
      %v3023 = vsel %vm1227, %v3004, %v3022
      %v3025 = vshrl.u32 %v2968, 16
      %v3027 = vrot.slane %v3025, 3
      %v3028 = vshll.u32 %v2968, 16
      %v3030 = vrot.slane %v3028, 4
      %v3031 = vor.u32 %v3027, %v3030
      %v3032 = vsel %vm1227, %v3013, %v3031
      %v3034 = vshrl.u32 %v2969, 16
      %v3036 = vrot.slane %v3034, 3
      %v3037 = vshll.u32 %v2969, 16
      %v3039 = vrot.slane %v3037, 4
      %v3040 = vor.u32 %v3036, %v3039
      %v3041 = vsel %vm1227, %v3022, %v3040
      %v3043 = vshrl.u32 %v2970, 16
      %v3045 = vrot.slane %v3043, 3
      %v3046 = vshll.u32 %v2970, 16
      %v3048 = vrot.slane %v3046, 4
      %v3049 = vor.u32 %v3045, %v3048
      %v3050 = vsel %vm1227, %v3031, %v3049
      %v3052 = vshrl.u32 %v2971, 16
      %v3054 = vrot.slane %v3052, 3
      %v3055 = vshll.u32 %v2971, 16
      %v3057 = vrot.slane %v3055, 4
      %v3058 = vor.u32 %v3054, %v3057
      %v3059 = vsel %vm1227, %v3040, %v3058
      %v3100 = vunpack.c.l.b16 %v2903
      %v3101 = vunpack.c.l.b16 %v2904
      %v3102 = vunpack.c.l.b16 %v2905
      %v3103 = vunpack.c.l.b16 %v2906
      %v3104 = vunpack.c.l.b16 %v2907
      %v3105 = vunpack.c.l.b16 %v2908
      %v3106 = vunpack.c.l.b16 %v2909
      %v3107 = vunpack.c.l.b16 %v2910
      %v3108 = vunpack.c.l.b16 %v2911
      %v3109 = vunpack.c.l.b16 %v2912
      %v3110 = vunpack.c.l.b16 %v2913
      %v3111 = vunpack.c.l.b16 %v2914
      %v3112 = vunpack.c.l.b16 %v2915
      %v3113 = vunpack.c.l.b16 %v2916
      %v3114 = vunpack.c.l.b16 %v2917
      %v3115 = vunpack.c.l.b16 %v2918
      %v3116 = vunpack.c.l.b16 %v2919
      %v3117 = vunpack.c.l.b16 %v2920
      %v3118 = vunpack.c.l.b16 %v2921
      %v3119 = vunpack.c.l.b16 %v2922
      %v3120 = vunpack.c.l.b16 %v2923
      %v3121 = vunpack.c.l.b16 %v2924
      %v3122 = vunpack.c.l.b16 %v2925
      %v3123 = vunpack.c.l.b16 %v2926
      %v3124 = vunpack.c.l.b16 %v2927
      %v3125 = vunpack.c.l.b16 %v2928
      %v3126 = vunpack.c.l.b16 %v2929
      %v3127 = vunpack.c.l.b16 %v2930
      %v3128 = vunpack.c.l.b16 %v2931
      %v3129 = vunpack.c.l.b16 %v2932
      %v3130 = vunpack.c.l.b16 %v2933
      %v3131 = vunpack.c.l.b16 %v2934
      %v3132 = vpack.c.b16 %v3101, %v3100
      %v3133 = vpack.c.b16 %v3103, %v3102
      %v3134 = vpack.c.b16 %v3105, %v3104
      %v3135 = vpack.c.b16 %v3107, %v3106
      %v3136 = vpack.c.b16 %v3109, %v3108
      %v3137 = vpack.c.b16 %v3111, %v3110
      %v3138 = vpack.c.b16 %v3113, %v3112
      %v3139 = vpack.c.b16 %v3115, %v3114
      %v3140 = vpack.c.b16 %v3117, %v3116
      %v3141 = vpack.c.b16 %v3119, %v3118
      %v3142 = vpack.c.b16 %v3121, %v3120
      %v3143 = vpack.c.b16 %v3123, %v3122
      %v3144 = vpack.c.b16 %v3125, %v3124
      %v3145 = vpack.c.b16 %v3127, %v3126
      %v3146 = vpack.c.b16 %v3129, %v3128
      %v3147 = vpack.c.b16 %v3131, %v3130
      %3164 = vmatprep.subr.bf16.mxu0 0
      %3165 = vmatpush1.bf16.msra.mxu0 %v3139
      %3166 = vmatprep.subr.bf16.mxu0 0
      %3167 = vmatpush1.bf16.msra.mxu0 %v3138
      %3168 = vmatprep.subr.bf16.mxu0 0
      %3169 = vmatpush1.bf16.msra.mxu0 %v3137
      %3170 = vmatprep.subr.bf16.mxu0 0
      %3171 = vmatpush1.bf16.msra.mxu0 %v3136
      %3172 = vmatprep.subr.bf16.mxu0 0
      %3173 = vmatpush1.bf16.msra.mxu0 %v3135
      %3174 = vmatprep.subr.bf16.mxu0 0
      %3175 = vmatpush1.bf16.msra.mxu0 %v3134
      %3176 = vmatprep.subr.bf16.mxu0 0
      %3177 = vmatpush1.bf16.msra.mxu0 %v3133
      %3178 = vmatprep.subr.bf16.mxu0 0
      %3179 = vmatpush1.bf16.msra.mxu0 %v3132
      %3180 = vmatprep.subr.bf16.mxu0 0
      %3181 = vmatpush2.bf16.msra.mxu0 %v3147
      %3182 = vmatprep.subr.bf16.mxu0 0
      %3183 = vmatpush2.bf16.msra.mxu0 %v3146
      %3184 = vmatprep.subr.bf16.mxu0 0
      %3185 = vmatpush2.bf16.msra.mxu0 %v3145
      %3186 = vmatprep.subr.bf16.mxu0 0
      %3187 = vmatpush2.bf16.msra.mxu0 %v3144
      %3188 = vmatprep.subr.bf16.mxu0 0
      %3189 = vmatpush2.bf16.msra.mxu0 %v3143
      %3190 = vmatprep.subr.bf16.mxu0 0
      %3191 = vmatpush2.bf16.msra.mxu0 %v3142
      %3192 = vmatprep.subr.bf16.mxu0 0
      %3193 = vmatpush2.bf16.msra.mxu0 %v3141
      %3194 = vmatprep.subr.bf16.mxu0 0
      %3195 = vmatpush2.bf16.msra.mxu0 %v3140
      %3196 = vmatprep.mubr.bf16.mxu0 %v3005
      %3197 = vmatmul.mubr.bf16.gmra.mxu0 %v2988
      %v3198 = vpop.f32.mrf.mxu0
      %v3199 = vadd.f32 0.0, %v3198
      %v3200 = vpop.f32.mrf.mxu0
      %v3201 = vpop.f32.mrf.mxu0
      %v3202 = vadd.f32 0.0, %v3201
      %v3203 = vpop.f32.mrf.mxu0
      %3204 = vmatprep.mubr.bf16.mxu0 %v3023
      %3205 = vmatmul.mubr.bf16.gmra.mxu0 %v3014
      %v3206 = vpop.f32.mrf.mxu0
      %v3207 = vadd.f32 0.0, %v3206
      %v3208 = vpop.f32.mrf.mxu0
      %v3209 = vpop.f32.mrf.mxu0
      %v3210 = vadd.f32 0.0, %v3209
      %v3211 = vpop.f32.mrf.mxu0
      %3212 = vmatprep.mubr.bf16.mxu0 %v3041
      %3213 = vmatmul.mubr.bf16.gmra.mxu0 %v3032
      %v3214 = vpop.f32.mrf.mxu0
      %v3215 = vadd.f32 0.0, %v3214
      %v3216 = vpop.f32.mrf.mxu0
      %v3217 = vpop.f32.mrf.mxu0
      %v3218 = vadd.f32 0.0, %v3217
      %v3219 = vpop.f32.mrf.mxu0
      %3220 = vmatprep.mubr.bf16.mxu0 %v3059
      %3221 = vmatmul.mubr.bf16.gmra.mxu0 %v3050
      %v3222 = vpop.f32.mrf.mxu0
      %v3223 = vadd.f32 0.0, %v3222
      %v3224 = vpop.f32.mrf.mxu0
      %v3225 = vpop.f32.mrf.mxu0
      %v3226 = vadd.f32 0.0, %v3225
      %v3227 = vpop.f32.mrf.mxu0
      %3228 = vdwg.mxu0
      %v3229 = vadd.f32 %v2883, %v3199
      %v3230 = vadd.f32 %v2884, %v3202
      %v3231 = vadd.f32 %v2885, %v3207
      %v3232 = vadd.f32 %v2886, %v3210
      %v3233 = vadd.f32 %v2887, %v3215
      %v3234 = vadd.f32 %v2888, %v3218
      %v3235 = vadd.f32 %v2889, %v3223
      %v3236 = vadd.f32 %v2890, %v3226
      %s3237 = scalar_lea.vmem %s4, 896
      %v3238 = vld [vmem:[%s3237] sm:$0xf]
      %v3239 = vld [vmem:[%s3237 + $0x4] sm:$0xf]
      %v3240 = vld [vmem:[%s3237 + $0x8] sm:$0xf]
      %v3241 = vld [vmem:[%s3237 + $0xc] sm:$0xf]
      %v3242 = vld [vmem:[%s3237 + $0x10] sm:$0xf]
      %v3243 = vld [vmem:[%s3237 + $0x14] sm:$0xf]
      %v3244 = vld [vmem:[%s3237 + $0x18] sm:$0xf]
      %v3245 = vld [vmem:[%s3237 + $0x1c] sm:$0xf]
      %v3246 = vld [vmem:[%s3237 + $0x20] sm:$0xf]
      %v3247 = vld [vmem:[%s3237 + $0x24] sm:$0xf]
      %v3248 = vld [vmem:[%s3237 + $0x28] sm:$0xf]
      %v3249 = vld [vmem:[%s3237 + $0x2c] sm:$0xf]
      %v3250 = vld [vmem:[%s3237 + $0x30] sm:$0xf]
      %v3251 = vld [vmem:[%s3237 + $0x34] sm:$0xf]
      %v3252 = vld [vmem:[%s3237 + $0x38] sm:$0xf]
      %v3253 = vld [vmem:[%s3237 + $0x3c] sm:$0xf]
      %v3254 = vld [vmem:[%s3237 + $0x40] sm:$0xf]
      %v3255 = vld [vmem:[%s3237 + $0x44] sm:$0xf]
      %v3256 = vld [vmem:[%s3237 + $0x48] sm:$0xf]
      %v3257 = vld [vmem:[%s3237 + $0x4c] sm:$0xf]
      %v3258 = vld [vmem:[%s3237 + $0x50] sm:$0xf]
      %v3259 = vld [vmem:[%s3237 + $0x54] sm:$0xf]
      %v3260 = vld [vmem:[%s3237 + $0x58] sm:$0xf]
      %v3261 = vld [vmem:[%s3237 + $0x5c] sm:$0xf]
      %v3262 = vld [vmem:[%s3237 + $0x60] sm:$0xf]
      %v3263 = vld [vmem:[%s3237 + $0x64] sm:$0xf]
      %v3264 = vld [vmem:[%s3237 + $0x68] sm:$0xf]
      %v3265 = vld [vmem:[%s3237 + $0x6c] sm:$0xf]
      %v3266 = vld [vmem:[%s3237 + $0x70] sm:$0xf]
      %v3267 = vld [vmem:[%s3237 + $0x74] sm:$0xf]
      %v3268 = vld [vmem:[%s3237 + $0x78] sm:$0xf]
      %v3269 = vld [vmem:[%s3237 + $0x7c] sm:$0xf]
      %v3278 = vunpack.c.l.b16 %v2555
      %v3279 = vunpack.c.h.b16 %v2555
      %v3280 = vunpack.c.l.b16 %v2556
      %v3281 = vunpack.c.h.b16 %v2556
      %v3282 = vunpack.c.l.b16 %v2557
      %v3283 = vunpack.c.h.b16 %v2557
      %v3284 = vunpack.c.l.b16 %v2558
      %v3285 = vunpack.c.h.b16 %v2558
      %v3286 = vunpack.c.l.b16 %v2559
      %v3287 = vunpack.c.h.b16 %v2559
      %v3288 = vunpack.c.l.b16 %v2560
      %v3289 = vunpack.c.h.b16 %v2560
      %v3290 = vunpack.c.l.b16 %v2561
      %v3291 = vunpack.c.h.b16 %v2561
      %v3292 = vunpack.c.l.b16 %v2892
      %v3293 = vunpack.c.h.b16 %v2892
      %v3294 = vpack.c.b16 %v3280, %v3278
      %v3295 = vpack.c.b16 %v3281, %v3279
      %v3296 = vpack.c.b16 %v3284, %v3282
      %v3297 = vpack.c.b16 %v3285, %v3283
      %v3298 = vpack.c.b16 %v3288, %v3286
      %v3299 = vpack.c.b16 %v3289, %v3287
      %v3300 = vpack.c.b16 %v3292, %v3290
      %v3301 = vpack.c.b16 %v3293, %v3291
      %v3342 = vunpack.c.l.b16 %v3238
      %v3343 = vunpack.c.l.b16 %v3239
      %v3344 = vunpack.c.l.b16 %v3240
      %v3345 = vunpack.c.l.b16 %v3241
      %v3346 = vunpack.c.l.b16 %v3242
      %v3347 = vunpack.c.l.b16 %v3243
      %v3348 = vunpack.c.l.b16 %v3244
      %v3349 = vunpack.c.l.b16 %v3245
      %v3350 = vunpack.c.l.b16 %v3246
      %v3351 = vunpack.c.l.b16 %v3247
      %v3352 = vunpack.c.l.b16 %v3248
      %v3353 = vunpack.c.l.b16 %v3249
      %v3354 = vunpack.c.l.b16 %v3250
      %v3355 = vunpack.c.l.b16 %v3251
      %v3356 = vunpack.c.l.b16 %v3252
      %v3357 = vunpack.c.l.b16 %v3253
      %v3358 = vunpack.c.l.b16 %v3254
      %v3359 = vunpack.c.l.b16 %v3255
      %v3360 = vunpack.c.l.b16 %v3256
      %v3361 = vunpack.c.l.b16 %v3257
      %v3362 = vunpack.c.l.b16 %v3258
      %v3363 = vunpack.c.l.b16 %v3259
      %v3364 = vunpack.c.l.b16 %v3260
      %v3365 = vunpack.c.l.b16 %v3261
      %v3366 = vunpack.c.l.b16 %v3262
      %v3367 = vunpack.c.l.b16 %v3263
      %v3368 = vunpack.c.l.b16 %v3264
      %v3369 = vunpack.c.l.b16 %v3265
      %v3370 = vunpack.c.l.b16 %v3266
      %v3371 = vunpack.c.l.b16 %v3267
      %v3372 = vunpack.c.l.b16 %v3268
      %v3373 = vunpack.c.l.b16 %v3269
      %v3374 = vpack.c.b16 %v3343, %v3342
      %v3375 = vpack.c.b16 %v3345, %v3344
      %v3376 = vpack.c.b16 %v3347, %v3346
      %v3377 = vpack.c.b16 %v3349, %v3348
      %v3378 = vpack.c.b16 %v3351, %v3350
      %v3379 = vpack.c.b16 %v3353, %v3352
      %v3380 = vpack.c.b16 %v3355, %v3354
      %v3381 = vpack.c.b16 %v3357, %v3356
      %v3382 = vpack.c.b16 %v3359, %v3358
      %v3383 = vpack.c.b16 %v3361, %v3360
      %v3384 = vpack.c.b16 %v3363, %v3362
      %v3385 = vpack.c.b16 %v3365, %v3364
      %v3386 = vpack.c.b16 %v3367, %v3366
      %v3387 = vpack.c.b16 %v3369, %v3368
      %v3388 = vpack.c.b16 %v3371, %v3370
      %v3389 = vpack.c.b16 %v3373, %v3372
      %3406 = vmatprep.subr.bf16.mxu0 0
      %3407 = vmatpush1.bf16.msra.mxu0 %v3381
      %3408 = vmatprep.subr.bf16.mxu0 0
      %3409 = vmatpush1.bf16.msra.mxu0 %v3380
      %3410 = vmatprep.subr.bf16.mxu0 0
      %3411 = vmatpush1.bf16.msra.mxu0 %v3379
      %3412 = vmatprep.subr.bf16.mxu0 0
      %3413 = vmatpush1.bf16.msra.mxu0 %v3378
      %3414 = vmatprep.subr.bf16.mxu0 0
      %3415 = vmatpush1.bf16.msra.mxu0 %v3377
      %3416 = vmatprep.subr.bf16.mxu0 0
      %3417 = vmatpush1.bf16.msra.mxu0 %v3376
      %3418 = vmatprep.subr.bf16.mxu0 0
      %3419 = vmatpush1.bf16.msra.mxu0 %v3375
      %3420 = vmatprep.subr.bf16.mxu0 0
      %3421 = vmatpush1.bf16.msra.mxu0 %v3374
      %3422 = vmatprep.subr.bf16.mxu0 0
      %3423 = vmatpush2.bf16.msra.mxu0 %v3389
      %3424 = vmatprep.subr.bf16.mxu0 0
      %3425 = vmatpush2.bf16.msra.mxu0 %v3388
      %3426 = vmatprep.subr.bf16.mxu0 0
      %3427 = vmatpush2.bf16.msra.mxu0 %v3387
      %3428 = vmatprep.subr.bf16.mxu0 0
      %3429 = vmatpush2.bf16.msra.mxu0 %v3386
      %3430 = vmatprep.subr.bf16.mxu0 0
      %3431 = vmatpush2.bf16.msra.mxu0 %v3385
      %3432 = vmatprep.subr.bf16.mxu0 0
      %3433 = vmatpush2.bf16.msra.mxu0 %v3384
      %3434 = vmatprep.subr.bf16.mxu0 0
      %3435 = vmatpush2.bf16.msra.mxu0 %v3383
      %3436 = vmatprep.subr.bf16.mxu0 0
      %3437 = vmatpush2.bf16.msra.mxu0 %v3382
      %3438 = vmatprep.mubr.bf16.mxu0 %v3295
      %3439 = vmatmul.mubr.bf16.gmra.mxu0 %v3294
      %v3440 = vpop.f32.mrf.mxu0
      %v3441 = vadd.f32 0.0, %v3440
      %v3442 = vpop.f32.mrf.mxu0
      %v3443 = vpop.f32.mrf.mxu0
      %v3444 = vadd.f32 0.0, %v3443
      %v3445 = vpop.f32.mrf.mxu0
      %3446 = vmatprep.mubr.bf16.mxu0 %v3297
      %3447 = vmatmul.mubr.bf16.gmra.mxu0 %v3296
      %v3448 = vpop.f32.mrf.mxu0
      %v3449 = vadd.f32 0.0, %v3448
      %v3450 = vpop.f32.mrf.mxu0
      %v3451 = vpop.f32.mrf.mxu0
      %v3452 = vadd.f32 0.0, %v3451
      %v3453 = vpop.f32.mrf.mxu0
      %3454 = vmatprep.mubr.bf16.mxu0 %v3299
      %3455 = vmatmul.mubr.bf16.gmra.mxu0 %v3298
      %v3456 = vpop.f32.mrf.mxu0
      %v3457 = vadd.f32 0.0, %v3456
      %v3458 = vpop.f32.mrf.mxu0
      %v3459 = vpop.f32.mrf.mxu0
      %v3460 = vadd.f32 0.0, %v3459
      %v3461 = vpop.f32.mrf.mxu0
      %3462 = vmatprep.mubr.bf16.mxu0 %v3301
      %3463 = vmatmul.mubr.bf16.gmra.mxu0 %v3300
      %v3464 = vpop.f32.mrf.mxu0
      %v3465 = vadd.f32 0.0, %v3464
      %v3466 = vpop.f32.mrf.mxu0
      %v3467 = vpop.f32.mrf.mxu0
      %v3468 = vadd.f32 0.0, %v3467
      %v3469 = vpop.f32.mrf.mxu0
      %3470 = vdwg.mxu0
      %v3471 = vadd.f32 %v3229, %v3441
      %v3472 = vadd.f32 %v3230, %v3444
      %v3473 = vadd.f32 %v3231, %v3449
      %v3474 = vadd.f32 %v3232, %v3452
      %v3475 = vadd.f32 %v3233, %v3457
      %v3476 = vadd.f32 %v3234, %v3460
      %v3477 = vadd.f32 %v3235, %v3465
      %v3478 = vadd.f32 %v3236, %v3468
      %v3479 = vld [vmem:[#allocation2 + $0x18] sm:$0xff]
      %v3480 = vld [vmem:[#allocation2 + $0x20] sm:$0xff]
      %v3481 = vld [vmem:[#allocation2 + $0x28] sm:$0xff]
      %v3482 = vld [vmem:[#allocation2 + $0x30] sm:$0xff]
      %v3483 = vld [vmem:[#allocation2 + $0x38] sm:$0xff]
      %v3484 = vld [vmem:[#allocation2 + $0x40] sm:$0xff]
      %v3485 = vld [vmem:[#allocation2 + $0x48] sm:$0xff]
      %v3486 = vld [vmem:[#allocation2 + $0x50] sm:$0xff]
      %v3487 = vld [vmem:[#allocation2 + $0x58] sm:$0x11]
      %v3488 = vmul.bf16 %v3479, %v1563
      %v3489 = vmul.bf16 %v3480, %v1572
      %v3490 = vmul.bf16 %v3481, %v1581
      %v3491 = vmul.bf16 %v3482, %v1590
      %v3492 = vmul.bf16 %v3483, %v1599
      %v3493 = vmul.bf16 %v3484, %v1608
      %v3494 = vmul.bf16 %v3485, %v1617
      %v3495 = vmul.bf16 %v3486, %v1626
      %v3496 = vmul.bf16 %v3487, %v1627
      %s3497 = scalar_lea.vmem %s4, 1024
      %v3498 = vld [vmem:[%s3497] sm:$0xf]
      %v3499 = vld [vmem:[%s3497 + $0x4] sm:$0xf]
      %v3500 = vld [vmem:[%s3497 + $0x8] sm:$0xf]
      %v3501 = vld [vmem:[%s3497 + $0xc] sm:$0xf]
      %v3502 = vld [vmem:[%s3497 + $0x10] sm:$0xf]
      %v3503 = vld [vmem:[%s3497 + $0x14] sm:$0xf]
      %v3504 = vld [vmem:[%s3497 + $0x18] sm:$0xf]
      %v3505 = vld [vmem:[%s3497 + $0x1c] sm:$0xf]
      %v3506 = vld [vmem:[%s3497 + $0x20] sm:$0xf]
      %v3507 = vld [vmem:[%s3497 + $0x24] sm:$0xf]
      %v3508 = vld [vmem:[%s3497 + $0x28] sm:$0xf]
      %v3509 = vld [vmem:[%s3497 + $0x2c] sm:$0xf]
      %v3510 = vld [vmem:[%s3497 + $0x30] sm:$0xf]
      %v3511 = vld [vmem:[%s3497 + $0x34] sm:$0xf]
      %v3512 = vld [vmem:[%s3497 + $0x38] sm:$0xf]
      %v3513 = vld [vmem:[%s3497 + $0x3c] sm:$0xf]
      %v3514 = vld [vmem:[%s3497 + $0x40] sm:$0xf]
      %v3515 = vld [vmem:[%s3497 + $0x44] sm:$0xf]
      %v3516 = vld [vmem:[%s3497 + $0x48] sm:$0xf]
      %v3517 = vld [vmem:[%s3497 + $0x4c] sm:$0xf]
      %v3518 = vld [vmem:[%s3497 + $0x50] sm:$0xf]
      %v3519 = vld [vmem:[%s3497 + $0x54] sm:$0xf]
      %v3520 = vld [vmem:[%s3497 + $0x58] sm:$0xf]
      %v3521 = vld [vmem:[%s3497 + $0x5c] sm:$0xf]
      %v3522 = vld [vmem:[%s3497 + $0x60] sm:$0xf]
      %v3523 = vld [vmem:[%s3497 + $0x64] sm:$0xf]
      %v3524 = vld [vmem:[%s3497 + $0x68] sm:$0xf]
      %v3525 = vld [vmem:[%s3497 + $0x6c] sm:$0xf]
      %v3526 = vld [vmem:[%s3497 + $0x70] sm:$0xf]
      %v3527 = vld [vmem:[%s3497 + $0x74] sm:$0xf]
      %v3528 = vld [vmem:[%s3497 + $0x78] sm:$0xf]
      %v3529 = vld [vmem:[%s3497 + $0x7c] sm:$0xf]
      %v3539 = vunpack.c.l.b16 %v3488
      %v3540 = vunpack.c.h.b16 %v3488
      %v3541 = vunpack.c.l.b16 %v3489
      %v3542 = vunpack.c.h.b16 %v3489
      %v3543 = vunpack.c.l.b16 %v3490
      %v3544 = vunpack.c.h.b16 %v3490
      %v3545 = vunpack.c.l.b16 %v3491
      %v3546 = vunpack.c.h.b16 %v3491
      %v3547 = vunpack.c.l.b16 %v3492
      %v3548 = vunpack.c.h.b16 %v3492
      %v3549 = vunpack.c.l.b16 %v3493
      %v3550 = vunpack.c.h.b16 %v3493
      %v3551 = vunpack.c.l.b16 %v3494
      %v3552 = vunpack.c.h.b16 %v3494
      %v3553 = vunpack.c.l.b16 %v3495
      %v3554 = vunpack.c.h.b16 %v3495
      %v3555 = vunpack.c.l.b16 %v3496
      %v3556 = vunpack.c.h.b16 %v3496
      %v3557 = vpack.c.b16 %v3541, %v3539
      %v3558 = vpack.c.b16 %v3542, %v3540
      %v3559 = vpack.c.b16 %v3545, %v3543
      %v3560 = vpack.c.b16 %v3546, %v3544
      %v3561 = vpack.c.b16 %v3549, %v3547
      %v3562 = vpack.c.b16 %v3550, %v3548
      %v3563 = vpack.c.b16 %v3553, %v3551
      %v3564 = vpack.c.b16 %v3554, %v3552
      %v3565 = vpack.c.b16 %v3555, %v3555
      %v3566 = vpack.c.b16 %v3556, %v3556
      %v3568 = vshrl.u32 %v3557, 16
      %v3570 = vshll.u32 %v3557, 16
      %v3572 = vrot.slane %v3570, 1
      %v3573 = vor.u32 %v3568, %v3572
      %v3575 = vshll.u32 %v3559, 16
      %v3577 = vrot.slane %v3575, 1
      %v3578 = vsel %vm1716, %v3573, %v3577
      %v3580 = vshrl.u32 %v3558, 16
      %v3582 = vshll.u32 %v3558, 16
      %v3584 = vrot.slane %v3582, 1
      %v3585 = vor.u32 %v3580, %v3584
      %v3587 = vshll.u32 %v3560, 16
      %v3589 = vrot.slane %v3587, 1
      %v3590 = vsel %vm1716, %v3585, %v3589
      %v3591 = vshrl.u32 %v3559, 16
      %v3593 = vor.u32 %v3591, %v3577
      %v3595 = vshll.u32 %v3561, 16
      %v3597 = vrot.slane %v3595, 1
      %v3598 = vsel %vm1716, %v3593, %v3597
      %v3599 = vshrl.u32 %v3560, 16
      %v3601 = vor.u32 %v3599, %v3589
      %v3603 = vshll.u32 %v3562, 16
      %v3605 = vrot.slane %v3603, 1
      %v3606 = vsel %vm1716, %v3601, %v3605
      %v3607 = vshrl.u32 %v3561, 16
      %v3609 = vor.u32 %v3607, %v3597
      %v3611 = vshll.u32 %v3563, 16
      %v3613 = vrot.slane %v3611, 1
      %v3614 = vsel %vm1716, %v3609, %v3613
      %v3615 = vshrl.u32 %v3562, 16
      %v3617 = vor.u32 %v3615, %v3605
      %v3619 = vshll.u32 %v3564, 16
      %v3621 = vrot.slane %v3619, 1
      %v3622 = vsel %vm1716, %v3617, %v3621
      %v3623 = vshrl.u32 %v3563, 16
      %v3625 = vor.u32 %v3623, %v3613
      %v3627 = vshll.u32 %v3565, 16
      %v3629 = vrot.slane %v3627, 1
      %v3630 = vsel %vm1716, %v3625, %v3629
      %v3631 = vshrl.u32 %v3564, 16
      %v3633 = vor.u32 %v3631, %v3621
      %v3635 = vshll.u32 %v3566, 16
      %v3637 = vrot.slane %v3635, 1
      %v3638 = vsel %vm1716, %v3633, %v3637
      %v3679 = vunpack.c.l.b16 %v3498
      %v3680 = vunpack.c.l.b16 %v3499
      %v3681 = vunpack.c.l.b16 %v3500
      %v3682 = vunpack.c.l.b16 %v3501
      %v3683 = vunpack.c.l.b16 %v3502
      %v3684 = vunpack.c.l.b16 %v3503
      %v3685 = vunpack.c.l.b16 %v3504
      %v3686 = vunpack.c.l.b16 %v3505
      %v3687 = vunpack.c.l.b16 %v3506
      %v3688 = vunpack.c.l.b16 %v3507
      %v3689 = vunpack.c.l.b16 %v3508
      %v3690 = vunpack.c.l.b16 %v3509
      %v3691 = vunpack.c.l.b16 %v3510
      %v3692 = vunpack.c.l.b16 %v3511
      %v3693 = vunpack.c.l.b16 %v3512
      %v3694 = vunpack.c.l.b16 %v3513
      %v3695 = vunpack.c.l.b16 %v3514
      %v3696 = vunpack.c.l.b16 %v3515
      %v3697 = vunpack.c.l.b16 %v3516
      %v3698 = vunpack.c.l.b16 %v3517
      %v3699 = vunpack.c.l.b16 %v3518
      %v3700 = vunpack.c.l.b16 %v3519
      %v3701 = vunpack.c.l.b16 %v3520
      %v3702 = vunpack.c.l.b16 %v3521
      %v3703 = vunpack.c.l.b16 %v3522
      %v3704 = vunpack.c.l.b16 %v3523
      %v3705 = vunpack.c.l.b16 %v3524
      %v3706 = vunpack.c.l.b16 %v3525
      %v3707 = vunpack.c.l.b16 %v3526
      %v3708 = vunpack.c.l.b16 %v3527
      %v3709 = vunpack.c.l.b16 %v3528
      %v3710 = vunpack.c.l.b16 %v3529
      %v3711 = vpack.c.b16 %v3680, %v3679
      %v3712 = vpack.c.b16 %v3682, %v3681
      %v3713 = vpack.c.b16 %v3684, %v3683
      %v3714 = vpack.c.b16 %v3686, %v3685
      %v3715 = vpack.c.b16 %v3688, %v3687
      %v3716 = vpack.c.b16 %v3690, %v3689
      %v3717 = vpack.c.b16 %v3692, %v3691
      %v3718 = vpack.c.b16 %v3694, %v3693
      %v3719 = vpack.c.b16 %v3696, %v3695
      %v3720 = vpack.c.b16 %v3698, %v3697
      %v3721 = vpack.c.b16 %v3700, %v3699
      %v3722 = vpack.c.b16 %v3702, %v3701
      %v3723 = vpack.c.b16 %v3704, %v3703
      %v3724 = vpack.c.b16 %v3706, %v3705
      %v3725 = vpack.c.b16 %v3708, %v3707
      %v3726 = vpack.c.b16 %v3710, %v3709
      %3743 = vmatprep.subr.bf16.mxu0 0
      %3744 = vmatpush1.bf16.msra.mxu0 %v3718
      %3745 = vmatprep.subr.bf16.mxu0 0
      %3746 = vmatpush1.bf16.msra.mxu0 %v3717
      %3747 = vmatprep.subr.bf16.mxu0 0
      %3748 = vmatpush1.bf16.msra.mxu0 %v3716
      %3749 = vmatprep.subr.bf16.mxu0 0
      %3750 = vmatpush1.bf16.msra.mxu0 %v3715
      %3751 = vmatprep.subr.bf16.mxu0 0
      %3752 = vmatpush1.bf16.msra.mxu0 %v3714
      %3753 = vmatprep.subr.bf16.mxu0 0
      %3754 = vmatpush1.bf16.msra.mxu0 %v3713
      %3755 = vmatprep.subr.bf16.mxu0 0
      %3756 = vmatpush1.bf16.msra.mxu0 %v3712
      %3757 = vmatprep.subr.bf16.mxu0 0
      %3758 = vmatpush1.bf16.msra.mxu0 %v3711
      %3759 = vmatprep.subr.bf16.mxu0 0
      %3760 = vmatpush2.bf16.msra.mxu0 %v3726
      %3761 = vmatprep.subr.bf16.mxu0 0
      %3762 = vmatpush2.bf16.msra.mxu0 %v3725
      %3763 = vmatprep.subr.bf16.mxu0 0
      %3764 = vmatpush2.bf16.msra.mxu0 %v3724
      %3765 = vmatprep.subr.bf16.mxu0 0
      %3766 = vmatpush2.bf16.msra.mxu0 %v3723
      %3767 = vmatprep.subr.bf16.mxu0 0
      %3768 = vmatpush2.bf16.msra.mxu0 %v3722
      %3769 = vmatprep.subr.bf16.mxu0 0
      %3770 = vmatpush2.bf16.msra.mxu0 %v3721
      %3771 = vmatprep.subr.bf16.mxu0 0
      %3772 = vmatpush2.bf16.msra.mxu0 %v3720
      %3773 = vmatprep.subr.bf16.mxu0 0
      %3774 = vmatpush2.bf16.msra.mxu0 %v3719
      %3775 = vmatprep.mubr.bf16.mxu0 %v3590
      %3776 = vmatmul.mubr.bf16.gmra.mxu0 %v3578
      %v3777 = vpop.f32.mrf.mxu0
      %v3778 = vadd.f32 0.0, %v3777
      %v3779 = vpop.f32.mrf.mxu0
      %v3780 = vpop.f32.mrf.mxu0
      %v3781 = vadd.f32 0.0, %v3780
      %v3782 = vpop.f32.mrf.mxu0
      %3783 = vmatprep.mubr.bf16.mxu0 %v3606
      %3784 = vmatmul.mubr.bf16.gmra.mxu0 %v3598
      %v3785 = vpop.f32.mrf.mxu0
      %v3786 = vadd.f32 0.0, %v3785
      %v3787 = vpop.f32.mrf.mxu0
      %v3788 = vpop.f32.mrf.mxu0
      %v3789 = vadd.f32 0.0, %v3788
      %v3790 = vpop.f32.mrf.mxu0
      %3791 = vmatprep.mubr.bf16.mxu0 %v3622
      %3792 = vmatmul.mubr.bf16.gmra.mxu0 %v3614
      %v3793 = vpop.f32.mrf.mxu0
      %v3794 = vadd.f32 0.0, %v3793
      %v3795 = vpop.f32.mrf.mxu0
      %v3796 = vpop.f32.mrf.mxu0
      %v3797 = vadd.f32 0.0, %v3796
      %v3798 = vpop.f32.mrf.mxu0
      %3799 = vmatprep.mubr.bf16.mxu0 %v3638
      %3800 = vmatmul.mubr.bf16.gmra.mxu0 %v3630
      %v3801 = vpop.f32.mrf.mxu0
      %v3802 = vadd.f32 0.0, %v3801
      %v3803 = vpop.f32.mrf.mxu0
      %v3804 = vpop.f32.mrf.mxu0
      %v3805 = vadd.f32 0.0, %v3804
      %v3806 = vpop.f32.mrf.mxu0
      %3807 = vdwg.mxu0
      %v3808 = vadd.f32 %v3471, %v3778
      %v3809 = vadd.f32 %v3472, %v3781
      %v3810 = vadd.f32 %v3473, %v3786
      %v3811 = vadd.f32 %v3474, %v3789
      %v3812 = vadd.f32 %v3475, %v3794
      %v3813 = vadd.f32 %v3476, %v3797
      %v3814 = vadd.f32 %v3477, %v3802
      %v3815 = vadd.f32 %v3478, %v3805
      %v3816 = vld [vmem:[%s5] sm:$0x1]
      %v3818 = vlaneseq
      %v3819 = vshrl.u32 %v3818, 7
      %v3820 = vsub.s32 0, %v3819
      %v3821 = vrot.slane %v3816, %v3820
      %v3823 = vadd.f32 %v3808, %v3821
      %v3824 = vadd.f32 %v3809, %v3821
      %v3825 = vadd.f32 %v3810, %v3821
      %v3826 = vadd.f32 %v3811, %v3821
      %v3827 = vadd.f32 %v3812, %v3821
      %v3828 = vadd.f32 %v3813, %v3821
      %v3829 = vadd.f32 %v3814, %v3821
      %v3830 = vadd.f32 %v3815, %v3821
      %v3831 = vmax.f32 %v3823, 0.0
      %v3832 = vmax.f32 %v3824, 0.0
      %v3833 = vmax.f32 %v3825, 0.0
      %v3834 = vmax.f32 %v3826, 0.0
      %v3835 = vmax.f32 %v3827, 0.0
      %v3836 = vmax.f32 %v3828, 0.0
      %v3837 = vmax.f32 %v3829, 0.0
      %v3838 = vmax.f32 %v3830, 0.0
      %v3839 = vpack.c.bf16 %v3832, %v3831
      %v3840 = vpack.c.bf16 %v3834, %v3833
      %v3841 = vpack.c.bf16 %v3836, %v3835
      %v3842 = vpack.c.bf16 %v3838, %v3837
      %v3847 = vunpack.c.l.b16 %v3839
      %v3848 = vunpack.c.h.b16 %v3839
      %v3849 = vunpack.c.l.b16 %v3840
      %v3850 = vunpack.c.h.b16 %v3840
      %v3851 = vunpack.c.l.b16 %v3841
      %v3852 = vunpack.c.h.b16 %v3841
      %v3853 = vunpack.c.l.b16 %v3842
      %v3854 = vunpack.c.h.b16 %v3842
      %v3855 = vpack.c.b16 %v3847, %v3847
      %v3856 = vpack.c.b16 %v3848, %v3848
      %v3857 = vpack.c.b16 %v3849, %v3849
      %v3858 = vpack.c.b16 %v3850, %v3850
      %v3859 = vpack.c.b16 %v3851, %v3851
      %v3860 = vpack.c.b16 %v3852, %v3852
      %v3861 = vpack.c.b16 %v3853, %v3853
      %v3862 = vpack.c.b16 %v3854, %v3854
      %3871 = vst [vmem:[#allocation3 + $0x8] sm:$0xf] %v3855
      %3872 = vst [vmem:[#allocation3 + $0xc] sm:$0xf] %v3856
      %3873 = vst [vmem:[#allocation3 + $0x10] sm:$0xf] %v3857
      %3874 = vst [vmem:[#allocation3 + $0x14] sm:$0xf] %v3858
      %3875 = vst [vmem:[#allocation3 + $0x18] sm:$0xf] %v3859
      %3876 = vst [vmem:[#allocation3 + $0x1c] sm:$0xf] %v3860
      %3877 = vst [vmem:[#allocation3 + $0x20] sm:$0xf] %v3861
      %3878 = vst [vmem:[#allocation3 + $0x24] sm:$0xf] %v3862
      %v3879 = vld [vmem:[#allocation3] sm:$0x8]
      %v3880 = vld [vmem:[#allocation3 + $0x4] sm:$0xf]
      %v3881 = vld [vmem:[#allocation3 + $0x8] sm:$0xf]
      %v3882 = vld [vmem:[#allocation3 + $0xc] sm:$0xf]
      %v3883 = vld [vmem:[#allocation3 + $0x10] sm:$0xf]
      %v3884 = vld [vmem:[#allocation3 + $0x14] sm:$0xf]
      %v3885 = vld [vmem:[#allocation3 + $0x18] sm:$0xf]
      %v3886 = vld [vmem:[#allocation3 + $0x1c] sm:$0xf]
      %v3887 = vld [vmem:[#allocation3 + $0x20] sm:$0xf]
      %v3888 = vmul.bf16 %v3879, %v830
      %v3889 = vmul.bf16 %v3880, %v840
      %v3890 = vmul.bf16 %v3881, %v850
      %v3891 = vmul.bf16 %v3882, %v860
      %v3892 = vmul.bf16 %v3883, %v870
      %v3893 = vmul.bf16 %v3884, %v880
      %v3894 = vmul.bf16 %v3885, %v890
      %v3895 = vmul.bf16 %v3886, %v900
      %v3896 = vmul.bf16 %v3887, %v905
      %v3897 = vld [vmem:[%s6] sm:$0xf]
      %v3898 = vld [vmem:[%s6 + $0x4] sm:$0xf]
      %v3899 = vld [vmem:[%s6 + $0x8] sm:$0xf]
      %v3900 = vld [vmem:[%s6 + $0xc] sm:$0xf]
      %v3901 = vld [vmem:[%s6 + $0x10] sm:$0xf]
      %v3902 = vld [vmem:[%s6 + $0x14] sm:$0xf]
      %v3903 = vld [vmem:[%s6 + $0x18] sm:$0xf]
      %v3904 = vld [vmem:[%s6 + $0x1c] sm:$0xf]
      %v3905 = vld [vmem:[%s6 + $0x20] sm:$0xf]
      %v3906 = vld [vmem:[%s6 + $0x24] sm:$0xf]
      %v3907 = vld [vmem:[%s6 + $0x28] sm:$0xf]
      %v3908 = vld [vmem:[%s6 + $0x2c] sm:$0xf]
      %v3909 = vld [vmem:[%s6 + $0x30] sm:$0xf]
      %v3910 = vld [vmem:[%s6 + $0x34] sm:$0xf]
      %v3911 = vld [vmem:[%s6 + $0x38] sm:$0xf]
      %v3912 = vld [vmem:[%s6 + $0x3c] sm:$0xf]
      %s3913 = scalar_lea.vmem %s6, 64
      %v3914 = vld [vmem:[%s3913] sm:$0xf]
      %v3915 = vld [vmem:[%s3913 + $0x4] sm:$0xf]
      %v3916 = vld [vmem:[%s3913 + $0x8] sm:$0xf]
      %v3917 = vld [vmem:[%s3913 + $0xc] sm:$0xf]
      %v3918 = vld [vmem:[%s3913 + $0x10] sm:$0xf]
      %v3919 = vld [vmem:[%s3913 + $0x14] sm:$0xf]
      %v3920 = vld [vmem:[%s3913 + $0x18] sm:$0xf]
      %v3921 = vld [vmem:[%s3913 + $0x1c] sm:$0xf]
      %v3922 = vld [vmem:[%s3913 + $0x20] sm:$0xf]
      %v3923 = vld [vmem:[%s3913 + $0x24] sm:$0xf]
      %v3924 = vld [vmem:[%s3913 + $0x28] sm:$0xf]
      %v3925 = vld [vmem:[%s3913 + $0x2c] sm:$0xf]
      %v3926 = vld [vmem:[%s3913 + $0x30] sm:$0xf]
      %v3927 = vld [vmem:[%s3913 + $0x34] sm:$0xf]
      %v3928 = vld [vmem:[%s3913 + $0x38] sm:$0xf]
      %v3929 = vld [vmem:[%s3913 + $0x3c] sm:$0xf]
      %v3938 = vunpack.c.l.b16 %v3880
      %v3939 = vunpack.c.l.b16 %v3881
      %v3940 = vunpack.c.l.b16 %v3882
      %v3941 = vunpack.c.l.b16 %v3883
      %v3942 = vunpack.c.l.b16 %v3884
      %v3943 = vunpack.c.l.b16 %v3885
      %v3944 = vunpack.c.l.b16 %v3886
      %v3945 = vunpack.c.l.b16 %v3887
      %v3946 = vpack.c.b16 %v3939, %v3938
      %v3947 = vpack.c.b16 %v3941, %v3940
      %v3948 = vpack.c.b16 %v3943, %v3942
      %v3949 = vpack.c.b16 %v3945, %v3944
      %v3970 = vunpack.c.l.b16 %v3914
      %v3971 = vunpack.c.l.b16 %v3915
      %v3972 = vunpack.c.l.b16 %v3916
      %v3973 = vunpack.c.l.b16 %v3917
      %v3974 = vunpack.c.l.b16 %v3918
      %v3975 = vunpack.c.l.b16 %v3919
      %v3976 = vunpack.c.l.b16 %v3920
      %v3977 = vunpack.c.l.b16 %v3921
      %v3978 = vunpack.c.l.b16 %v3922
      %v3979 = vunpack.c.l.b16 %v3923
      %v3980 = vunpack.c.l.b16 %v3924
      %v3981 = vunpack.c.l.b16 %v3925
      %v3982 = vunpack.c.l.b16 %v3926
      %v3983 = vunpack.c.l.b16 %v3927
      %v3984 = vunpack.c.l.b16 %v3928
      %v3985 = vunpack.c.l.b16 %v3929
      %v3986 = vpack.c.b16 %v3971, %v3970
      %v3987 = vpack.c.b16 %v3973, %v3972
      %v3988 = vpack.c.b16 %v3975, %v3974
      %v3989 = vpack.c.b16 %v3977, %v3976
      %v3990 = vpack.c.b16 %v3979, %v3978
      %v3991 = vpack.c.b16 %v3981, %v3980
      %v3992 = vpack.c.b16 %v3983, %v3982
      %v3993 = vpack.c.b16 %v3985, %v3984
      %4002 = vmatprep.subr.bf16.mxu0 0
      %4003 = vmatpush1.bf16.msra.mxu0 %v3993
      %4004 = vmatprep.subr.bf16.mxu0 0
      %4005 = vmatpush1.bf16.msra.mxu0 %v3992
      %4006 = vmatprep.subr.bf16.mxu0 0
      %4007 = vmatpush1.bf16.msra.mxu0 %v3991
      %4008 = vmatprep.subr.bf16.mxu0 0
      %4009 = vmatpush1.bf16.msra.mxu0 %v3990
      %4010 = vmatprep.subr.bf16.mxu0 0
      %4011 = vmatpush1.bf16.msra.mxu0 %v3989
      %4012 = vmatprep.subr.bf16.mxu0 0
      %4013 = vmatpush1.bf16.msra.mxu0 %v3988
      %4014 = vmatprep.subr.bf16.mxu0 0
      %4015 = vmatpush1.bf16.msra.mxu0 %v3987
      %4016 = vmatprep.subr.bf16.mxu0 0
      %4017 = vmatpush1.bf16.msra.mxu0 %v3986
      %4018 = vmatprep.subr.bf16.mxu0 0
      %4019 = vmatpush2.bf16.msra.mxu0 0
      %4020 = vmatprep.subr.bf16.mxu0 0
      %4021 = vmatpush2.bf16.msra.mxu0 0
      %4022 = vmatprep.subr.bf16.mxu0 0
      %4023 = vmatpush2.bf16.msra.mxu0 0
      %4024 = vmatprep.subr.bf16.mxu0 0
      %4025 = vmatpush2.bf16.msra.mxu0 0
      %4026 = vmatprep.subr.bf16.mxu0 0
      %4027 = vmatpush2.bf16.msra.mxu0 0
      %4028 = vmatprep.subr.bf16.mxu0 0
      %4029 = vmatpush2.bf16.msra.mxu0 0
      %4030 = vmatprep.subr.bf16.mxu0 0
      %4031 = vmatpush2.bf16.msra.mxu0 0
      %4032 = vmatprep.subr.bf16.mxu0 0
      %4033 = vmatpush2.bf16.msra.mxu0 0
      %4034 = vmatprep.mubr.bf16.mxu0 0
      %4035 = vmatmul.mubr.bf16.gmra.mxu0 %v3946
      %v4036 = vpop.f32.mrf.mxu0
      %v4037 = vadd.f32 0.0, %v4036
      %v4038 = vpop.f32.mrf.mxu0
      %v4039 = vpop.f32.mrf.mxu0
      %v4040 = vadd.f32 0.0, %v4039
      %v4041 = vpop.f32.mrf.mxu0
      %4042 = vmatprep.mubr.bf16.mxu0 0
      %4043 = vmatmul.mubr.bf16.gmra.mxu0 %v3947
      %v4044 = vpop.f32.mrf.mxu0
      %v4045 = vadd.f32 0.0, %v4044
      %v4046 = vpop.f32.mrf.mxu0
      %v4047 = vpop.f32.mrf.mxu0
      %v4048 = vadd.f32 0.0, %v4047
      %v4049 = vpop.f32.mrf.mxu0
      %4050 = vmatprep.mubr.bf16.mxu0 0
      %4051 = vmatmul.mubr.bf16.gmra.mxu0 %v3948
      %v4052 = vpop.f32.mrf.mxu0
      %v4053 = vadd.f32 0.0, %v4052
      %v4054 = vpop.f32.mrf.mxu0
      %v4055 = vpop.f32.mrf.mxu0
      %v4056 = vadd.f32 0.0, %v4055
      %v4057 = vpop.f32.mrf.mxu0
      %4058 = vmatprep.mubr.bf16.mxu0 0
      %4059 = vmatmul.mubr.bf16.gmra.mxu0 %v3949
      %v4060 = vpop.f32.mrf.mxu0
      %v4061 = vadd.f32 0.0, %v4060
      %v4062 = vpop.f32.mrf.mxu0
      %v4063 = vpop.f32.mrf.mxu0
      %v4064 = vadd.f32 0.0, %v4063
      %v4065 = vpop.f32.mrf.mxu0
      %4066 = vdwg.mxu0
      %v4076 = vunpack.c.l.b16 %v3888
      %v4077 = vunpack.c.l.b16 %v3889
      %v4078 = vunpack.c.l.b16 %v3890
      %v4079 = vunpack.c.l.b16 %v3891
      %v4080 = vunpack.c.l.b16 %v3892
      %v4081 = vunpack.c.l.b16 %v3893
      %v4082 = vunpack.c.l.b16 %v3894
      %v4083 = vunpack.c.l.b16 %v3895
      %v4084 = vunpack.c.l.b16 %v3896
      %v4085 = vpack.c.b16 %v4077, %v4076
      %v4086 = vpack.c.b16 %v4079, %v4078
      %v4087 = vpack.c.b16 %v4081, %v4080
      %v4088 = vpack.c.b16 %v4083, %v4082
      %v4089 = vpack.c.b16 %v4084, %v4084
      %v4091 = vshrl.u32 %v4085, 16
      %v4093 = vrot.slane %v4091, 3
      %v4094 = vshll.u32 %v4085, 16
      %v4096 = vrot.slane %v4094, 4
      %v4097 = vor.u32 %v4093, %v4096
      %v4099 = vshrl.u32 %v4086, 16
      %v4101 = vrot.slane %v4099, 3
      %v4102 = vshll.u32 %v4086, 16
      %v4104 = vrot.slane %v4102, 4
      %v4105 = vor.u32 %v4101, %v4104
      %v4106 = vsel %vm1227, %v4097, %v4105
      %v4108 = vshrl.u32 %v4087, 16
      %v4110 = vrot.slane %v4108, 3
      %v4111 = vshll.u32 %v4087, 16
      %v4113 = vrot.slane %v4111, 4
      %v4114 = vor.u32 %v4110, %v4113
      %v4115 = vsel %vm1227, %v4105, %v4114
      %v4117 = vshrl.u32 %v4088, 16
      %v4119 = vrot.slane %v4117, 3
      %v4120 = vshll.u32 %v4088, 16
      %v4122 = vrot.slane %v4120, 4
      %v4123 = vor.u32 %v4119, %v4122
      %v4124 = vsel %vm1227, %v4114, %v4123
      %v4126 = vshrl.u32 %v4089, 16
      %v4128 = vrot.slane %v4126, 3
      %v4129 = vshll.u32 %v4089, 16
      %v4131 = vrot.slane %v4129, 4
      %v4132 = vor.u32 %v4128, %v4131
      %v4133 = vsel %vm1227, %v4123, %v4132
      %v4154 = vunpack.c.l.b16 %v3897
      %v4155 = vunpack.c.l.b16 %v3898
      %v4156 = vunpack.c.l.b16 %v3899
      %v4157 = vunpack.c.l.b16 %v3900
      %v4158 = vunpack.c.l.b16 %v3901
      %v4159 = vunpack.c.l.b16 %v3902
      %v4160 = vunpack.c.l.b16 %v3903
      %v4161 = vunpack.c.l.b16 %v3904
      %v4162 = vunpack.c.l.b16 %v3905
      %v4163 = vunpack.c.l.b16 %v3906
      %v4164 = vunpack.c.l.b16 %v3907
      %v4165 = vunpack.c.l.b16 %v3908
      %v4166 = vunpack.c.l.b16 %v3909
      %v4167 = vunpack.c.l.b16 %v3910
      %v4168 = vunpack.c.l.b16 %v3911
      %v4169 = vunpack.c.l.b16 %v3912
      %v4170 = vpack.c.b16 %v4155, %v4154
      %v4171 = vpack.c.b16 %v4157, %v4156
      %v4172 = vpack.c.b16 %v4159, %v4158
      %v4173 = vpack.c.b16 %v4161, %v4160
      %v4174 = vpack.c.b16 %v4163, %v4162
      %v4175 = vpack.c.b16 %v4165, %v4164
      %v4176 = vpack.c.b16 %v4167, %v4166
      %v4177 = vpack.c.b16 %v4169, %v4168
      %4186 = vmatprep.subr.bf16.mxu0 0
      %4187 = vmatpush1.bf16.msra.mxu0 %v4177
      %4188 = vmatprep.subr.bf16.mxu0 0
      %4189 = vmatpush1.bf16.msra.mxu0 %v4176
      %4190 = vmatprep.subr.bf16.mxu0 0
      %4191 = vmatpush1.bf16.msra.mxu0 %v4175
      %4192 = vmatprep.subr.bf16.mxu0 0
      %4193 = vmatpush1.bf16.msra.mxu0 %v4174
      %4194 = vmatprep.subr.bf16.mxu0 0
      %4195 = vmatpush1.bf16.msra.mxu0 %v4173
      %4196 = vmatprep.subr.bf16.mxu0 0
      %4197 = vmatpush1.bf16.msra.mxu0 %v4172
      %4198 = vmatprep.subr.bf16.mxu0 0
      %4199 = vmatpush1.bf16.msra.mxu0 %v4171
      %4200 = vmatprep.subr.bf16.mxu0 0
      %4201 = vmatpush1.bf16.msra.mxu0 %v4170
      %4202 = vmatprep.subr.bf16.mxu0 0
      %4203 = vmatpush2.bf16.msra.mxu0 0
      %4204 = vmatprep.subr.bf16.mxu0 0
      %4205 = vmatpush2.bf16.msra.mxu0 0
      %4206 = vmatprep.subr.bf16.mxu0 0
      %4207 = vmatpush2.bf16.msra.mxu0 0
      %4208 = vmatprep.subr.bf16.mxu0 0
      %4209 = vmatpush2.bf16.msra.mxu0 0
      %4210 = vmatprep.subr.bf16.mxu0 0
      %4211 = vmatpush2.bf16.msra.mxu0 0
      %4212 = vmatprep.subr.bf16.mxu0 0
      %4213 = vmatpush2.bf16.msra.mxu0 0
      %4214 = vmatprep.subr.bf16.mxu0 0
      %4215 = vmatpush2.bf16.msra.mxu0 0
      %4216 = vmatprep.subr.bf16.mxu0 0
      %4217 = vmatpush2.bf16.msra.mxu0 0
      %4218 = vmatprep.mubr.bf16.mxu0 0
      %4219 = vmatmul.mubr.bf16.gmra.mxu0 %v4106
      %v4220 = vpop.f32.mrf.mxu0
      %v4221 = vadd.f32 %v4037, %v4220
      %v4222 = vpop.f32.mrf.mxu0
      %v4223 = vpop.f32.mrf.mxu0
      %v4224 = vadd.f32 %v4040, %v4223
      %v4225 = vpop.f32.mrf.mxu0
      %4226 = vmatprep.mubr.bf16.mxu0 0
      %4227 = vmatmul.mubr.bf16.gmra.mxu0 %v4115
      %v4228 = vpop.f32.mrf.mxu0
      %v4229 = vadd.f32 %v4045, %v4228
      %v4230 = vpop.f32.mrf.mxu0
      %v4231 = vpop.f32.mrf.mxu0
      %v4232 = vadd.f32 %v4048, %v4231
      %v4233 = vpop.f32.mrf.mxu0
      %4234 = vmatprep.mubr.bf16.mxu0 0
      %4235 = vmatmul.mubr.bf16.gmra.mxu0 %v4124
      %v4236 = vpop.f32.mrf.mxu0
      %v4237 = vadd.f32 %v4053, %v4236
      %v4238 = vpop.f32.mrf.mxu0
      %v4239 = vpop.f32.mrf.mxu0
      %v4240 = vadd.f32 %v4056, %v4239
      %v4241 = vpop.f32.mrf.mxu0
      %4242 = vmatprep.mubr.bf16.mxu0 0
      %4243 = vmatmul.mubr.bf16.gmra.mxu0 %v4133
      %v4244 = vpop.f32.mrf.mxu0
      %v4245 = vadd.f32 %v4061, %v4244
      %v4246 = vpop.f32.mrf.mxu0
      %v4247 = vpop.f32.mrf.mxu0
      %v4248 = vadd.f32 %v4064, %v4247
      %v4249 = vpop.f32.mrf.mxu0
      %4250 = vdwg.mxu0
      %v4251 = vld [vmem:[#allocation3 + $0x4] sm:$0xf]
      %v4252 = vld [vmem:[#allocation3 + $0x8] sm:$0xf]
      %v4253 = vld [vmem:[#allocation3 + $0xc] sm:$0xf]
      %v4254 = vld [vmem:[#allocation3 + $0x10] sm:$0xf]
      %v4255 = vld [vmem:[#allocation3 + $0x14] sm:$0xf]
      %v4256 = vld [vmem:[#allocation3 + $0x18] sm:$0xf]
      %v4257 = vld [vmem:[#allocation3 + $0x1c] sm:$0xf]
      %v4258 = vld [vmem:[#allocation3 + $0x20] sm:$0xf]
      %v4259 = vld [vmem:[#allocation3 + $0x24] sm:$0x1]
      %v4260 = vmul.bf16 %v4251, %v1563
      %v4261 = vmul.bf16 %v4252, %v1572
      %v4262 = vmul.bf16 %v4253, %v1581
      %v4263 = vmul.bf16 %v4254, %v1590
      %v4264 = vmul.bf16 %v4255, %v1599
      %v4265 = vmul.bf16 %v4256, %v1608
      %v4266 = vmul.bf16 %v4257, %v1617
      %v4267 = vmul.bf16 %v4258, %v1626
      %v4268 = vmul.bf16 %v4259, %v1627
      %s4269 = scalar_lea.vmem %s6, 128
      %v4270 = vld [vmem:[%s4269] sm:$0xf]
      %v4271 = vld [vmem:[%s4269 + $0x4] sm:$0xf]
      %v4272 = vld [vmem:[%s4269 + $0x8] sm:$0xf]
      %v4273 = vld [vmem:[%s4269 + $0xc] sm:$0xf]
      %v4274 = vld [vmem:[%s4269 + $0x10] sm:$0xf]
      %v4275 = vld [vmem:[%s4269 + $0x14] sm:$0xf]
      %v4276 = vld [vmem:[%s4269 + $0x18] sm:$0xf]
      %v4277 = vld [vmem:[%s4269 + $0x1c] sm:$0xf]
      %v4278 = vld [vmem:[%s4269 + $0x20] sm:$0xf]
      %v4279 = vld [vmem:[%s4269 + $0x24] sm:$0xf]
      %v4280 = vld [vmem:[%s4269 + $0x28] sm:$0xf]
      %v4281 = vld [vmem:[%s4269 + $0x2c] sm:$0xf]
      %v4282 = vld [vmem:[%s4269 + $0x30] sm:$0xf]
      %v4283 = vld [vmem:[%s4269 + $0x34] sm:$0xf]
      %v4284 = vld [vmem:[%s4269 + $0x38] sm:$0xf]
      %v4285 = vld [vmem:[%s4269 + $0x3c] sm:$0xf]
      %v4295 = vunpack.c.l.b16 %v4260
      %v4296 = vunpack.c.l.b16 %v4261
      %v4297 = vunpack.c.l.b16 %v4262
      %v4298 = vunpack.c.l.b16 %v4263
      %v4299 = vunpack.c.l.b16 %v4264
      %v4300 = vunpack.c.l.b16 %v4265
      %v4301 = vunpack.c.l.b16 %v4266
      %v4302 = vunpack.c.l.b16 %v4267
      %v4303 = vunpack.c.l.b16 %v4268
      %v4304 = vpack.c.b16 %v4296, %v4295
      %v4305 = vpack.c.b16 %v4298, %v4297
      %v4306 = vpack.c.b16 %v4300, %v4299
      %v4307 = vpack.c.b16 %v4302, %v4301
      %v4308 = vpack.c.b16 %v4303, %v4303
      %v4310 = vshrl.u32 %v4304, 16
      %v4312 = vshll.u32 %v4304, 16
      %v4314 = vrot.slane %v4312, 1
      %v4315 = vor.u32 %v4310, %v4314
      %v4317 = vshll.u32 %v4305, 16
      %v4319 = vrot.slane %v4317, 1
      %v4320 = vsel %vm1716, %v4315, %v4319
      %v4321 = vshrl.u32 %v4305, 16
      %v4323 = vor.u32 %v4321, %v4319
      %v4325 = vshll.u32 %v4306, 16
      %v4327 = vrot.slane %v4325, 1
      %v4328 = vsel %vm1716, %v4323, %v4327
      %v4329 = vshrl.u32 %v4306, 16
      %v4331 = vor.u32 %v4329, %v4327
      %v4333 = vshll.u32 %v4307, 16
      %v4335 = vrot.slane %v4333, 1
      %v4336 = vsel %vm1716, %v4331, %v4335
      %v4337 = vshrl.u32 %v4307, 16
      %v4339 = vor.u32 %v4337, %v4335
      %v4341 = vshll.u32 %v4308, 16
      %v4343 = vrot.slane %v4341, 1
      %v4344 = vsel %vm1716, %v4339, %v4343
      %v4365 = vunpack.c.l.b16 %v4270
      %v4366 = vunpack.c.l.b16 %v4271
      %v4367 = vunpack.c.l.b16 %v4272
      %v4368 = vunpack.c.l.b16 %v4273
      %v4369 = vunpack.c.l.b16 %v4274
      %v4370 = vunpack.c.l.b16 %v4275
      %v4371 = vunpack.c.l.b16 %v4276
      %v4372 = vunpack.c.l.b16 %v4277
      %v4373 = vunpack.c.l.b16 %v4278
      %v4374 = vunpack.c.l.b16 %v4279
      %v4375 = vunpack.c.l.b16 %v4280
      %v4376 = vunpack.c.l.b16 %v4281
      %v4377 = vunpack.c.l.b16 %v4282
      %v4378 = vunpack.c.l.b16 %v4283
      %v4379 = vunpack.c.l.b16 %v4284
      %v4380 = vunpack.c.l.b16 %v4285
      %v4381 = vpack.c.b16 %v4366, %v4365
      %v4382 = vpack.c.b16 %v4368, %v4367
      %v4383 = vpack.c.b16 %v4370, %v4369
      %v4384 = vpack.c.b16 %v4372, %v4371
      %v4385 = vpack.c.b16 %v4374, %v4373
      %v4386 = vpack.c.b16 %v4376, %v4375
      %v4387 = vpack.c.b16 %v4378, %v4377
      %v4388 = vpack.c.b16 %v4380, %v4379
      %4397 = vmatprep.subr.bf16.mxu0 0
      %4398 = vmatpush1.bf16.msra.mxu0 %v4388
      %4399 = vmatprep.subr.bf16.mxu0 0
      %4400 = vmatpush1.bf16.msra.mxu0 %v4387
      %4401 = vmatprep.subr.bf16.mxu0 0
      %4402 = vmatpush1.bf16.msra.mxu0 %v4386
      %4403 = vmatprep.subr.bf16.mxu0 0
      %4404 = vmatpush1.bf16.msra.mxu0 %v4385
      %4405 = vmatprep.subr.bf16.mxu0 0
      %4406 = vmatpush1.bf16.msra.mxu0 %v4384
      %4407 = vmatprep.subr.bf16.mxu0 0
      %4408 = vmatpush1.bf16.msra.mxu0 %v4383
      %4409 = vmatprep.subr.bf16.mxu0 0
      %4410 = vmatpush1.bf16.msra.mxu0 %v4382
      %4411 = vmatprep.subr.bf16.mxu0 0
      %4412 = vmatpush1.bf16.msra.mxu0 %v4381
      %4413 = vmatprep.subr.bf16.mxu0 0
      %4414 = vmatpush2.bf16.msra.mxu0 0
      %4415 = vmatprep.subr.bf16.mxu0 0
      %4416 = vmatpush2.bf16.msra.mxu0 0
      %4417 = vmatprep.subr.bf16.mxu0 0
      %4418 = vmatpush2.bf16.msra.mxu0 0
      %4419 = vmatprep.subr.bf16.mxu0 0
      %4420 = vmatpush2.bf16.msra.mxu0 0
      %4421 = vmatprep.subr.bf16.mxu0 0
      %4422 = vmatpush2.bf16.msra.mxu0 0
      %4423 = vmatprep.subr.bf16.mxu0 0
      %4424 = vmatpush2.bf16.msra.mxu0 0
      %4425 = vmatprep.subr.bf16.mxu0 0
      %4426 = vmatpush2.bf16.msra.mxu0 0
      %4427 = vmatprep.subr.bf16.mxu0 0
      %4428 = vmatpush2.bf16.msra.mxu0 0
      %4429 = vmatprep.mubr.bf16.mxu0 0
      %4430 = vmatmul.mubr.bf16.gmra.mxu0 %v4320
      %v4431 = vpop.f32.mrf.mxu0
      %v4432 = vadd.f32 0.0, %v4431
      %v4433 = vpop.f32.mrf.mxu0
      %v4434 = vpop.f32.mrf.mxu0
      %v4435 = vadd.f32 0.0, %v4434
      %v4436 = vpop.f32.mrf.mxu0
      %4437 = vmatprep.mubr.bf16.mxu0 0
      %4438 = vmatmul.mubr.bf16.gmra.mxu0 %v4328
      %v4439 = vpop.f32.mrf.mxu0
      %v4440 = vadd.f32 0.0, %v4439
      %v4441 = vpop.f32.mrf.mxu0
      %v4442 = vpop.f32.mrf.mxu0
      %v4443 = vadd.f32 0.0, %v4442
      %v4444 = vpop.f32.mrf.mxu0
      %4445 = vmatprep.mubr.bf16.mxu0 0
      %4446 = vmatmul.mubr.bf16.gmra.mxu0 %v4336
      %v4447 = vpop.f32.mrf.mxu0
      %v4448 = vadd.f32 0.0, %v4447
      %v4449 = vpop.f32.mrf.mxu0
      %v4450 = vpop.f32.mrf.mxu0
      %v4451 = vadd.f32 0.0, %v4450
      %v4452 = vpop.f32.mrf.mxu0
      %4453 = vmatprep.mubr.bf16.mxu0 0
      %4454 = vmatmul.mubr.bf16.gmra.mxu0 %v4344
      %v4455 = vpop.f32.mrf.mxu0
      %v4456 = vadd.f32 0.0, %v4455
      %v4457 = vpop.f32.mrf.mxu0
      %v4458 = vpop.f32.mrf.mxu0
      %v4459 = vadd.f32 0.0, %v4458
      %v4460 = vpop.f32.mrf.mxu0
      %4461 = vdwg.mxu0
      %v4462 = vadd.f32 %v4221, %v4432
      %v4463 = vadd.f32 %v4224, %v4435
      %v4464 = vadd.f32 %v4229, %v4440
      %v4465 = vadd.f32 %v4232, %v4443
      %v4466 = vadd.f32 %v4237, %v4448
      %v4467 = vadd.f32 %v4240, %v4451
      %v4468 = vadd.f32 %v4245, %v4456
      %v4469 = vadd.f32 %v4248, %v4459
      %v4470 = vld [vmem:[#allocation3 + $0x4] sm:$0x8]
      %v4471 = vld [vmem:[#allocation3 + $0x24] sm:$0xf]
      %v4472 = vmul.bf16 %v4470, %v830
      %v4473 = vmul.bf16 %v4252, %v840
      %v4474 = vmul.bf16 %v4253, %v850
      %v4475 = vmul.bf16 %v4254, %v860
      %v4476 = vmul.bf16 %v4255, %v870
      %v4477 = vmul.bf16 %v4256, %v880
      %v4478 = vmul.bf16 %v4257, %v890
      %v4479 = vmul.bf16 %v4258, %v900
      %v4480 = vmul.bf16 %v4471, %v905
      %s4481 = scalar_lea.vmem %s6, 192
      %v4482 = vld [vmem:[%s4481] sm:$0xf]
      %v4483 = vld [vmem:[%s4481 + $0x4] sm:$0xf]
      %v4484 = vld [vmem:[%s4481 + $0x8] sm:$0xf]
      %v4485 = vld [vmem:[%s4481 + $0xc] sm:$0xf]
      %v4486 = vld [vmem:[%s4481 + $0x10] sm:$0xf]
      %v4487 = vld [vmem:[%s4481 + $0x14] sm:$0xf]
      %v4488 = vld [vmem:[%s4481 + $0x18] sm:$0xf]
      %v4489 = vld [vmem:[%s4481 + $0x1c] sm:$0xf]
      %v4490 = vld [vmem:[%s4481 + $0x20] sm:$0xf]
      %v4491 = vld [vmem:[%s4481 + $0x24] sm:$0xf]
      %v4492 = vld [vmem:[%s4481 + $0x28] sm:$0xf]
      %v4493 = vld [vmem:[%s4481 + $0x2c] sm:$0xf]
      %v4494 = vld [vmem:[%s4481 + $0x30] sm:$0xf]
      %v4495 = vld [vmem:[%s4481 + $0x34] sm:$0xf]
      %v4496 = vld [vmem:[%s4481 + $0x38] sm:$0xf]
      %v4497 = vld [vmem:[%s4481 + $0x3c] sm:$0xf]
      %v4507 = vunpack.c.l.b16 %v4472
      %v4508 = vunpack.c.l.b16 %v4473
      %v4509 = vunpack.c.l.b16 %v4474
      %v4510 = vunpack.c.l.b16 %v4475
      %v4511 = vunpack.c.l.b16 %v4476
      %v4512 = vunpack.c.l.b16 %v4477
      %v4513 = vunpack.c.l.b16 %v4478
      %v4514 = vunpack.c.l.b16 %v4479
      %v4515 = vunpack.c.l.b16 %v4480
      %v4516 = vpack.c.b16 %v4508, %v4507
      %v4517 = vpack.c.b16 %v4510, %v4509
      %v4518 = vpack.c.b16 %v4512, %v4511
      %v4519 = vpack.c.b16 %v4514, %v4513
      %v4520 = vpack.c.b16 %v4515, %v4515
      %v4522 = vshrl.u32 %v4516, 16
      %v4524 = vrot.slane %v4522, 3
      %v4525 = vshll.u32 %v4516, 16
      %v4527 = vrot.slane %v4525, 4
      %v4528 = vor.u32 %v4524, %v4527
      %v4530 = vshrl.u32 %v4517, 16
      %v4532 = vrot.slane %v4530, 3
      %v4533 = vshll.u32 %v4517, 16
      %v4535 = vrot.slane %v4533, 4
      %v4536 = vor.u32 %v4532, %v4535
      %v4537 = vsel %vm1227, %v4528, %v4536
      %v4539 = vshrl.u32 %v4518, 16
      %v4541 = vrot.slane %v4539, 3
      %v4542 = vshll.u32 %v4518, 16
      %v4544 = vrot.slane %v4542, 4
      %v4545 = vor.u32 %v4541, %v4544
      %v4546 = vsel %vm1227, %v4536, %v4545
      %v4548 = vshrl.u32 %v4519, 16
      %v4550 = vrot.slane %v4548, 3
      %v4551 = vshll.u32 %v4519, 16
      %v4553 = vrot.slane %v4551, 4
      %v4554 = vor.u32 %v4550, %v4553
      %v4555 = vsel %vm1227, %v4545, %v4554
      %v4557 = vshrl.u32 %v4520, 16
      %v4559 = vrot.slane %v4557, 3
      %v4560 = vshll.u32 %v4520, 16
      %v4562 = vrot.slane %v4560, 4
      %v4563 = vor.u32 %v4559, %v4562
      %v4564 = vsel %vm1227, %v4554, %v4563
      %v4585 = vunpack.c.l.b16 %v4482
      %v4586 = vunpack.c.l.b16 %v4483
      %v4587 = vunpack.c.l.b16 %v4484
      %v4588 = vunpack.c.l.b16 %v4485
      %v4589 = vunpack.c.l.b16 %v4486
      %v4590 = vunpack.c.l.b16 %v4487
      %v4591 = vunpack.c.l.b16 %v4488
      %v4592 = vunpack.c.l.b16 %v4489
      %v4593 = vunpack.c.l.b16 %v4490
      %v4594 = vunpack.c.l.b16 %v4491
      %v4595 = vunpack.c.l.b16 %v4492
      %v4596 = vunpack.c.l.b16 %v4493
      %v4597 = vunpack.c.l.b16 %v4494
      %v4598 = vunpack.c.l.b16 %v4495
      %v4599 = vunpack.c.l.b16 %v4496
      %v4600 = vunpack.c.l.b16 %v4497
      %v4601 = vpack.c.b16 %v4586, %v4585
      %v4602 = vpack.c.b16 %v4588, %v4587
      %v4603 = vpack.c.b16 %v4590, %v4589
      %v4604 = vpack.c.b16 %v4592, %v4591
      %v4605 = vpack.c.b16 %v4594, %v4593
      %v4606 = vpack.c.b16 %v4596, %v4595
      %v4607 = vpack.c.b16 %v4598, %v4597
      %v4608 = vpack.c.b16 %v4600, %v4599
      %4617 = vmatprep.subr.bf16.mxu0 0
      %4618 = vmatpush1.bf16.msra.mxu0 %v4608
      %4619 = vmatprep.subr.bf16.mxu0 0
      %4620 = vmatpush1.bf16.msra.mxu0 %v4607
      %4621 = vmatprep.subr.bf16.mxu0 0
      %4622 = vmatpush1.bf16.msra.mxu0 %v4606
      %4623 = vmatprep.subr.bf16.mxu0 0
      %4624 = vmatpush1.bf16.msra.mxu0 %v4605
      %4625 = vmatprep.subr.bf16.mxu0 0
      %4626 = vmatpush1.bf16.msra.mxu0 %v4604
      %4627 = vmatprep.subr.bf16.mxu0 0
      %4628 = vmatpush1.bf16.msra.mxu0 %v4603
      %4629 = vmatprep.subr.bf16.mxu0 0
      %4630 = vmatpush1.bf16.msra.mxu0 %v4602
      %4631 = vmatprep.subr.bf16.mxu0 0
      %4632 = vmatpush1.bf16.msra.mxu0 %v4601
      %4633 = vmatprep.subr.bf16.mxu0 0
      %4634 = vmatpush2.bf16.msra.mxu0 0
      %4635 = vmatprep.subr.bf16.mxu0 0
      %4636 = vmatpush2.bf16.msra.mxu0 0
      %4637 = vmatprep.subr.bf16.mxu0 0
      %4638 = vmatpush2.bf16.msra.mxu0 0
      %4639 = vmatprep.subr.bf16.mxu0 0
      %4640 = vmatpush2.bf16.msra.mxu0 0
      %4641 = vmatprep.subr.bf16.mxu0 0
      %4642 = vmatpush2.bf16.msra.mxu0 0
      %4643 = vmatprep.subr.bf16.mxu0 0
      %4644 = vmatpush2.bf16.msra.mxu0 0
      %4645 = vmatprep.subr.bf16.mxu0 0
      %4646 = vmatpush2.bf16.msra.mxu0 0
      %4647 = vmatprep.subr.bf16.mxu0 0
      %4648 = vmatpush2.bf16.msra.mxu0 0
      %4649 = vmatprep.mubr.bf16.mxu0 0
      %4650 = vmatmul.mubr.bf16.gmra.mxu0 %v4537
      %v4651 = vpop.f32.mrf.mxu0
      %v4652 = vadd.f32 0.0, %v4651
      %v4653 = vpop.f32.mrf.mxu0
      %v4654 = vpop.f32.mrf.mxu0
      %v4655 = vadd.f32 0.0, %v4654
      %v4656 = vpop.f32.mrf.mxu0
      %4657 = vmatprep.mubr.bf16.mxu0 0
      %4658 = vmatmul.mubr.bf16.gmra.mxu0 %v4546
      %v4659 = vpop.f32.mrf.mxu0
      %v4660 = vadd.f32 0.0, %v4659
      %v4661 = vpop.f32.mrf.mxu0
      %v4662 = vpop.f32.mrf.mxu0
      %v4663 = vadd.f32 0.0, %v4662
      %v4664 = vpop.f32.mrf.mxu0
      %4665 = vmatprep.mubr.bf16.mxu0 0
      %4666 = vmatmul.mubr.bf16.gmra.mxu0 %v4555
      %v4667 = vpop.f32.mrf.mxu0
      %v4668 = vadd.f32 0.0, %v4667
      %v4669 = vpop.f32.mrf.mxu0
      %v4670 = vpop.f32.mrf.mxu0
      %v4671 = vadd.f32 0.0, %v4670
      %v4672 = vpop.f32.mrf.mxu0
      %4673 = vmatprep.mubr.bf16.mxu0 0
      %4674 = vmatmul.mubr.bf16.gmra.mxu0 %v4564
      %v4675 = vpop.f32.mrf.mxu0
      %v4676 = vadd.f32 0.0, %v4675
      %v4677 = vpop.f32.mrf.mxu0
      %v4678 = vpop.f32.mrf.mxu0
      %v4679 = vadd.f32 0.0, %v4678
      %v4680 = vpop.f32.mrf.mxu0
      %4681 = vdwg.mxu0
      %v4682 = vadd.f32 %v4462, %v4652
      %v4683 = vadd.f32 %v4463, %v4655
      %v4684 = vadd.f32 %v4464, %v4660
      %v4685 = vadd.f32 %v4465, %v4663
      %v4686 = vadd.f32 %v4466, %v4668
      %v4687 = vadd.f32 %v4467, %v4671
      %v4688 = vadd.f32 %v4468, %v4676
      %v4689 = vadd.f32 %v4469, %v4679
      %s4690 = scalar_lea.vmem %s6, 256
      %v4691 = vld [vmem:[%s4690] sm:$0xf]
      %v4692 = vld [vmem:[%s4690 + $0x4] sm:$0xf]
      %v4693 = vld [vmem:[%s4690 + $0x8] sm:$0xf]
      %v4694 = vld [vmem:[%s4690 + $0xc] sm:$0xf]
      %v4695 = vld [vmem:[%s4690 + $0x10] sm:$0xf]
      %v4696 = vld [vmem:[%s4690 + $0x14] sm:$0xf]
      %v4697 = vld [vmem:[%s4690 + $0x18] sm:$0xf]
      %v4698 = vld [vmem:[%s4690 + $0x1c] sm:$0xf]
      %v4699 = vld [vmem:[%s4690 + $0x20] sm:$0xf]
      %v4700 = vld [vmem:[%s4690 + $0x24] sm:$0xf]
      %v4701 = vld [vmem:[%s4690 + $0x28] sm:$0xf]
      %v4702 = vld [vmem:[%s4690 + $0x2c] sm:$0xf]
      %v4703 = vld [vmem:[%s4690 + $0x30] sm:$0xf]
      %v4704 = vld [vmem:[%s4690 + $0x34] sm:$0xf]
      %v4705 = vld [vmem:[%s4690 + $0x38] sm:$0xf]
      %v4706 = vld [vmem:[%s4690 + $0x3c] sm:$0xf]
      %v4715 = vunpack.c.l.b16 %v4252
      %v4716 = vunpack.c.l.b16 %v4253
      %v4717 = vunpack.c.l.b16 %v4254
      %v4718 = vunpack.c.l.b16 %v4255
      %v4719 = vunpack.c.l.b16 %v4256
      %v4720 = vunpack.c.l.b16 %v4257
      %v4721 = vunpack.c.l.b16 %v4258
      %v4722 = vunpack.c.l.b16 %v4471
      %v4723 = vpack.c.b16 %v4716, %v4715
      %v4724 = vpack.c.b16 %v4718, %v4717
      %v4725 = vpack.c.b16 %v4720, %v4719
      %v4726 = vpack.c.b16 %v4722, %v4721
      %v4747 = vunpack.c.l.b16 %v4691
      %v4748 = vunpack.c.l.b16 %v4692
      %v4749 = vunpack.c.l.b16 %v4693
      %v4750 = vunpack.c.l.b16 %v4694
      %v4751 = vunpack.c.l.b16 %v4695
      %v4752 = vunpack.c.l.b16 %v4696
      %v4753 = vunpack.c.l.b16 %v4697
      %v4754 = vunpack.c.l.b16 %v4698
      %v4755 = vunpack.c.l.b16 %v4699
      %v4756 = vunpack.c.l.b16 %v4700
      %v4757 = vunpack.c.l.b16 %v4701
      %v4758 = vunpack.c.l.b16 %v4702
      %v4759 = vunpack.c.l.b16 %v4703
      %v4760 = vunpack.c.l.b16 %v4704
      %v4761 = vunpack.c.l.b16 %v4705
      %v4762 = vunpack.c.l.b16 %v4706
      %v4763 = vpack.c.b16 %v4748, %v4747
      %v4764 = vpack.c.b16 %v4750, %v4749
      %v4765 = vpack.c.b16 %v4752, %v4751
      %v4766 = vpack.c.b16 %v4754, %v4753
      %v4767 = vpack.c.b16 %v4756, %v4755
      %v4768 = vpack.c.b16 %v4758, %v4757
      %v4769 = vpack.c.b16 %v4760, %v4759
      %v4770 = vpack.c.b16 %v4762, %v4761
      %4779 = vmatprep.subr.bf16.mxu0 0
      %4780 = vmatpush1.bf16.msra.mxu0 %v4770
      %4781 = vmatprep.subr.bf16.mxu0 0
      %4782 = vmatpush1.bf16.msra.mxu0 %v4769
      %4783 = vmatprep.subr.bf16.mxu0 0
      %4784 = vmatpush1.bf16.msra.mxu0 %v4768
      %4785 = vmatprep.subr.bf16.mxu0 0
      %4786 = vmatpush1.bf16.msra.mxu0 %v4767
      %4787 = vmatprep.subr.bf16.mxu0 0
      %4788 = vmatpush1.bf16.msra.mxu0 %v4766
      %4789 = vmatprep.subr.bf16.mxu0 0
      %4790 = vmatpush1.bf16.msra.mxu0 %v4765
      %4791 = vmatprep.subr.bf16.mxu0 0
      %4792 = vmatpush1.bf16.msra.mxu0 %v4764
      %4793 = vmatprep.subr.bf16.mxu0 0
      %4794 = vmatpush1.bf16.msra.mxu0 %v4763
      %4795 = vmatprep.subr.bf16.mxu0 0
      %4796 = vmatpush2.bf16.msra.mxu0 0
      %4797 = vmatprep.subr.bf16.mxu0 0
      %4798 = vmatpush2.bf16.msra.mxu0 0
      %4799 = vmatprep.subr.bf16.mxu0 0
      %4800 = vmatpush2.bf16.msra.mxu0 0
      %4801 = vmatprep.subr.bf16.mxu0 0
      %4802 = vmatpush2.bf16.msra.mxu0 0
      %4803 = vmatprep.subr.bf16.mxu0 0
      %4804 = vmatpush2.bf16.msra.mxu0 0
      %4805 = vmatprep.subr.bf16.mxu0 0
      %4806 = vmatpush2.bf16.msra.mxu0 0
      %4807 = vmatprep.subr.bf16.mxu0 0
      %4808 = vmatpush2.bf16.msra.mxu0 0
      %4809 = vmatprep.subr.bf16.mxu0 0
      %4810 = vmatpush2.bf16.msra.mxu0 0
      %4811 = vmatprep.mubr.bf16.mxu0 0
      %4812 = vmatmul.mubr.bf16.gmra.mxu0 %v4723
      %v4813 = vpop.f32.mrf.mxu0
      %v4814 = vadd.f32 0.0, %v4813
      %v4815 = vpop.f32.mrf.mxu0
      %v4816 = vpop.f32.mrf.mxu0
      %v4817 = vadd.f32 0.0, %v4816
      %v4818 = vpop.f32.mrf.mxu0
      %4819 = vmatprep.mubr.bf16.mxu0 0
      %4820 = vmatmul.mubr.bf16.gmra.mxu0 %v4724
      %v4821 = vpop.f32.mrf.mxu0
      %v4822 = vadd.f32 0.0, %v4821
      %v4823 = vpop.f32.mrf.mxu0
      %v4824 = vpop.f32.mrf.mxu0
      %v4825 = vadd.f32 0.0, %v4824
      %v4826 = vpop.f32.mrf.mxu0
      %4827 = vmatprep.mubr.bf16.mxu0 0
      %4828 = vmatmul.mubr.bf16.gmra.mxu0 %v4725
      %v4829 = vpop.f32.mrf.mxu0
      %v4830 = vadd.f32 0.0, %v4829
      %v4831 = vpop.f32.mrf.mxu0
      %v4832 = vpop.f32.mrf.mxu0
      %v4833 = vadd.f32 0.0, %v4832
      %v4834 = vpop.f32.mrf.mxu0
      %4835 = vmatprep.mubr.bf16.mxu0 0
      %4836 = vmatmul.mubr.bf16.gmra.mxu0 %v4726
      %v4837 = vpop.f32.mrf.mxu0
      %v4838 = vadd.f32 0.0, %v4837
      %v4839 = vpop.f32.mrf.mxu0
      %v4840 = vpop.f32.mrf.mxu0
      %v4841 = vadd.f32 0.0, %v4840
      %v4842 = vpop.f32.mrf.mxu0
      %4843 = vdwg.mxu0
      %v4844 = vadd.f32 %v4682, %v4814
      %v4845 = vadd.f32 %v4683, %v4817
      %v4846 = vadd.f32 %v4684, %v4822
      %v4847 = vadd.f32 %v4685, %v4825
      %v4848 = vadd.f32 %v4686, %v4830
      %v4849 = vadd.f32 %v4687, %v4833
      %v4850 = vadd.f32 %v4688, %v4838
      %v4851 = vadd.f32 %v4689, %v4841
      %v4852 = vld [vmem:[#allocation3 + $0x8] sm:$0xf]
      %v4853 = vld [vmem:[#allocation3 + $0xc] sm:$0xf]
      %v4854 = vld [vmem:[#allocation3 + $0x10] sm:$0xf]
      %v4855 = vld [vmem:[#allocation3 + $0x14] sm:$0xf]
      %v4856 = vld [vmem:[#allocation3 + $0x18] sm:$0xf]
      %v4857 = vld [vmem:[#allocation3 + $0x1c] sm:$0xf]
      %v4858 = vld [vmem:[#allocation3 + $0x20] sm:$0xf]
      %v4859 = vld [vmem:[#allocation3 + $0x24] sm:$0xf]
      %v4860 = vld [vmem:[#allocation3 + $0x28] sm:$0x1]
      %v4861 = vmul.bf16 %v4852, %v1563
      %v4862 = vmul.bf16 %v4853, %v1572
      %v4863 = vmul.bf16 %v4854, %v1581
      %v4864 = vmul.bf16 %v4855, %v1590
      %v4865 = vmul.bf16 %v4856, %v1599
      %v4866 = vmul.bf16 %v4857, %v1608
      %v4867 = vmul.bf16 %v4858, %v1617
      %v4868 = vmul.bf16 %v4859, %v1626
      %v4869 = vmul.bf16 %v4860, %v1627
      %s4870 = scalar_lea.vmem %s6, 320
      %v4871 = vld [vmem:[%s4870] sm:$0xf]
      %v4872 = vld [vmem:[%s4870 + $0x4] sm:$0xf]
      %v4873 = vld [vmem:[%s4870 + $0x8] sm:$0xf]
      %v4874 = vld [vmem:[%s4870 + $0xc] sm:$0xf]
      %v4875 = vld [vmem:[%s4870 + $0x10] sm:$0xf]
      %v4876 = vld [vmem:[%s4870 + $0x14] sm:$0xf]
      %v4877 = vld [vmem:[%s4870 + $0x18] sm:$0xf]
      %v4878 = vld [vmem:[%s4870 + $0x1c] sm:$0xf]
      %v4879 = vld [vmem:[%s4870 + $0x20] sm:$0xf]
      %v4880 = vld [vmem:[%s4870 + $0x24] sm:$0xf]
      %v4881 = vld [vmem:[%s4870 + $0x28] sm:$0xf]
      %v4882 = vld [vmem:[%s4870 + $0x2c] sm:$0xf]
      %v4883 = vld [vmem:[%s4870 + $0x30] sm:$0xf]
      %v4884 = vld [vmem:[%s4870 + $0x34] sm:$0xf]
      %v4885 = vld [vmem:[%s4870 + $0x38] sm:$0xf]
      %v4886 = vld [vmem:[%s4870 + $0x3c] sm:$0xf]
      %v4896 = vunpack.c.l.b16 %v4861
      %v4897 = vunpack.c.l.b16 %v4862
      %v4898 = vunpack.c.l.b16 %v4863
      %v4899 = vunpack.c.l.b16 %v4864
      %v4900 = vunpack.c.l.b16 %v4865
      %v4901 = vunpack.c.l.b16 %v4866
      %v4902 = vunpack.c.l.b16 %v4867
      %v4903 = vunpack.c.l.b16 %v4868
      %v4904 = vunpack.c.l.b16 %v4869
      %v4905 = vpack.c.b16 %v4897, %v4896
      %v4906 = vpack.c.b16 %v4899, %v4898
      %v4907 = vpack.c.b16 %v4901, %v4900
      %v4908 = vpack.c.b16 %v4903, %v4902
      %v4909 = vpack.c.b16 %v4904, %v4904
      %v4911 = vshrl.u32 %v4905, 16
      %v4913 = vshll.u32 %v4905, 16
      %v4915 = vrot.slane %v4913, 1
      %v4916 = vor.u32 %v4911, %v4915
      %v4918 = vshll.u32 %v4906, 16
      %v4920 = vrot.slane %v4918, 1
      %v4921 = vsel %vm1716, %v4916, %v4920
      %v4922 = vshrl.u32 %v4906, 16
      %v4924 = vor.u32 %v4922, %v4920
      %v4926 = vshll.u32 %v4907, 16
      %v4928 = vrot.slane %v4926, 1
      %v4929 = vsel %vm1716, %v4924, %v4928
      %v4930 = vshrl.u32 %v4907, 16
      %v4932 = vor.u32 %v4930, %v4928
      %v4934 = vshll.u32 %v4908, 16
      %v4936 = vrot.slane %v4934, 1
      %v4937 = vsel %vm1716, %v4932, %v4936
      %v4938 = vshrl.u32 %v4908, 16
      %v4940 = vor.u32 %v4938, %v4936
      %v4942 = vshll.u32 %v4909, 16
      %v4944 = vrot.slane %v4942, 1
      %v4945 = vsel %vm1716, %v4940, %v4944
      %v4966 = vunpack.c.l.b16 %v4871
      %v4967 = vunpack.c.l.b16 %v4872
      %v4968 = vunpack.c.l.b16 %v4873
      %v4969 = vunpack.c.l.b16 %v4874
      %v4970 = vunpack.c.l.b16 %v4875
      %v4971 = vunpack.c.l.b16 %v4876
      %v4972 = vunpack.c.l.b16 %v4877
      %v4973 = vunpack.c.l.b16 %v4878
      %v4974 = vunpack.c.l.b16 %v4879
      %v4975 = vunpack.c.l.b16 %v4880
      %v4976 = vunpack.c.l.b16 %v4881
      %v4977 = vunpack.c.l.b16 %v4882
      %v4978 = vunpack.c.l.b16 %v4883
      %v4979 = vunpack.c.l.b16 %v4884
      %v4980 = vunpack.c.l.b16 %v4885
      %v4981 = vunpack.c.l.b16 %v4886
      %v4982 = vpack.c.b16 %v4967, %v4966
      %v4983 = vpack.c.b16 %v4969, %v4968
      %v4984 = vpack.c.b16 %v4971, %v4970
      %v4985 = vpack.c.b16 %v4973, %v4972
      %v4986 = vpack.c.b16 %v4975, %v4974
      %v4987 = vpack.c.b16 %v4977, %v4976
      %v4988 = vpack.c.b16 %v4979, %v4978
      %v4989 = vpack.c.b16 %v4981, %v4980
      %4998 = vmatprep.subr.bf16.mxu0 0
      %4999 = vmatpush1.bf16.msra.mxu0 %v4989
      %5000 = vmatprep.subr.bf16.mxu0 0
      %5001 = vmatpush1.bf16.msra.mxu0 %v4988
      %5002 = vmatprep.subr.bf16.mxu0 0
      %5003 = vmatpush1.bf16.msra.mxu0 %v4987
      %5004 = vmatprep.subr.bf16.mxu0 0
      %5005 = vmatpush1.bf16.msra.mxu0 %v4986
      %5006 = vmatprep.subr.bf16.mxu0 0
      %5007 = vmatpush1.bf16.msra.mxu0 %v4985
      %5008 = vmatprep.subr.bf16.mxu0 0
      %5009 = vmatpush1.bf16.msra.mxu0 %v4984
      %5010 = vmatprep.subr.bf16.mxu0 0
      %5011 = vmatpush1.bf16.msra.mxu0 %v4983
      %5012 = vmatprep.subr.bf16.mxu0 0
      %5013 = vmatpush1.bf16.msra.mxu0 %v4982
      %5014 = vmatprep.subr.bf16.mxu0 0
      %5015 = vmatpush2.bf16.msra.mxu0 0
      %5016 = vmatprep.subr.bf16.mxu0 0
      %5017 = vmatpush2.bf16.msra.mxu0 0
      %5018 = vmatprep.subr.bf16.mxu0 0
      %5019 = vmatpush2.bf16.msra.mxu0 0
      %5020 = vmatprep.subr.bf16.mxu0 0
      %5021 = vmatpush2.bf16.msra.mxu0 0
      %5022 = vmatprep.subr.bf16.mxu0 0
      %5023 = vmatpush2.bf16.msra.mxu0 0
      %5024 = vmatprep.subr.bf16.mxu0 0
      %5025 = vmatpush2.bf16.msra.mxu0 0
      %5026 = vmatprep.subr.bf16.mxu0 0
      %5027 = vmatpush2.bf16.msra.mxu0 0
      %5028 = vmatprep.subr.bf16.mxu0 0
      %5029 = vmatpush2.bf16.msra.mxu0 0
      %5030 = vmatprep.mubr.bf16.mxu0 0
      %5031 = vmatmul.mubr.bf16.gmra.mxu0 %v4921
      %v5032 = vpop.f32.mrf.mxu0
      %v5033 = vadd.f32 0.0, %v5032
      %v5034 = vpop.f32.mrf.mxu0
      %v5035 = vpop.f32.mrf.mxu0
      %v5036 = vadd.f32 0.0, %v5035
      %v5037 = vpop.f32.mrf.mxu0
      %5038 = vmatprep.mubr.bf16.mxu0 0
      %5039 = vmatmul.mubr.bf16.gmra.mxu0 %v4929
      %v5040 = vpop.f32.mrf.mxu0
      %v5041 = vadd.f32 0.0, %v5040
      %v5042 = vpop.f32.mrf.mxu0
      %v5043 = vpop.f32.mrf.mxu0
      %v5044 = vadd.f32 0.0, %v5043
      %v5045 = vpop.f32.mrf.mxu0
      %5046 = vmatprep.mubr.bf16.mxu0 0
      %5047 = vmatmul.mubr.bf16.gmra.mxu0 %v4937
      %v5048 = vpop.f32.mrf.mxu0
      %v5049 = vadd.f32 0.0, %v5048
      %v5050 = vpop.f32.mrf.mxu0
      %v5051 = vpop.f32.mrf.mxu0
      %v5052 = vadd.f32 0.0, %v5051
      %v5053 = vpop.f32.mrf.mxu0
      %5054 = vmatprep.mubr.bf16.mxu0 0
      %5055 = vmatmul.mubr.bf16.gmra.mxu0 %v4945
      %v5056 = vpop.f32.mrf.mxu0
      %v5057 = vadd.f32 0.0, %v5056
      %v5058 = vpop.f32.mrf.mxu0
      %v5059 = vpop.f32.mrf.mxu0
      %v5060 = vadd.f32 0.0, %v5059
      %v5061 = vpop.f32.mrf.mxu0
      %5062 = vdwg.mxu0
      %v5063 = vadd.f32 %v4844, %v5033
      %v5064 = vadd.f32 %v4845, %v5036
      %v5065 = vadd.f32 %v4846, %v5041
      %v5066 = vadd.f32 %v4847, %v5044
      %v5067 = vadd.f32 %v4848, %v5049
      %v5068 = vadd.f32 %v4849, %v5052
      %v5069 = vadd.f32 %v4850, %v5057
      %v5070 = vadd.f32 %v4851, %v5060
      %v5071 = vld [vmem:[#allocation3 + $0x8] sm:$0x8]
      %v5072 = vld [vmem:[#allocation3 + $0x28] sm:$0xf]
      %v5073 = vmul.bf16 %v5071, %v830
      %v5074 = vmul.bf16 %v4853, %v840
      %v5075 = vmul.bf16 %v4854, %v850
      %v5076 = vmul.bf16 %v4855, %v860
      %v5077 = vmul.bf16 %v4856, %v870
      %v5078 = vmul.bf16 %v4857, %v880
      %v5079 = vmul.bf16 %v4858, %v890
      %v5080 = vmul.bf16 %v4859, %v900
      %v5081 = vmul.bf16 %v5072, %v905
      %s5082 = scalar_lea.vmem %s6, 384
      %v5083 = vld [vmem:[%s5082] sm:$0xf]
      %v5084 = vld [vmem:[%s5082 + $0x4] sm:$0xf]
      %v5085 = vld [vmem:[%s5082 + $0x8] sm:$0xf]
      %v5086 = vld [vmem:[%s5082 + $0xc] sm:$0xf]
      %v5087 = vld [vmem:[%s5082 + $0x10] sm:$0xf]
      %v5088 = vld [vmem:[%s5082 + $0x14] sm:$0xf]
      %v5089 = vld [vmem:[%s5082 + $0x18] sm:$0xf]
      %v5090 = vld [vmem:[%s5082 + $0x1c] sm:$0xf]
      %v5091 = vld [vmem:[%s5082 + $0x20] sm:$0xf]
      %v5092 = vld [vmem:[%s5082 + $0x24] sm:$0xf]
      %v5093 = vld [vmem:[%s5082 + $0x28] sm:$0xf]
      %v5094 = vld [vmem:[%s5082 + $0x2c] sm:$0xf]
      %v5095 = vld [vmem:[%s5082 + $0x30] sm:$0xf]
      %v5096 = vld [vmem:[%s5082 + $0x34] sm:$0xf]
      %v5097 = vld [vmem:[%s5082 + $0x38] sm:$0xf]
      %v5098 = vld [vmem:[%s5082 + $0x3c] sm:$0xf]
      %v5108 = vunpack.c.l.b16 %v5073
      %v5109 = vunpack.c.l.b16 %v5074
      %v5110 = vunpack.c.l.b16 %v5075
      %v5111 = vunpack.c.l.b16 %v5076
      %v5112 = vunpack.c.l.b16 %v5077
      %v5113 = vunpack.c.l.b16 %v5078
      %v5114 = vunpack.c.l.b16 %v5079
      %v5115 = vunpack.c.l.b16 %v5080
      %v5116 = vunpack.c.l.b16 %v5081
      %v5117 = vpack.c.b16 %v5109, %v5108
      %v5118 = vpack.c.b16 %v5111, %v5110
      %v5119 = vpack.c.b16 %v5113, %v5112
      %v5120 = vpack.c.b16 %v5115, %v5114
      %v5121 = vpack.c.b16 %v5116, %v5116
      %v5123 = vshrl.u32 %v5117, 16
      %v5125 = vrot.slane %v5123, 3
      %v5126 = vshll.u32 %v5117, 16
      %v5128 = vrot.slane %v5126, 4
      %v5129 = vor.u32 %v5125, %v5128
      %v5131 = vshrl.u32 %v5118, 16
      %v5133 = vrot.slane %v5131, 3
      %v5134 = vshll.u32 %v5118, 16
      %v5136 = vrot.slane %v5134, 4
      %v5137 = vor.u32 %v5133, %v5136
      %v5138 = vsel %vm1227, %v5129, %v5137
      %v5140 = vshrl.u32 %v5119, 16
      %v5142 = vrot.slane %v5140, 3
      %v5143 = vshll.u32 %v5119, 16
      %v5145 = vrot.slane %v5143, 4
      %v5146 = vor.u32 %v5142, %v5145
      %v5147 = vsel %vm1227, %v5137, %v5146
      %v5149 = vshrl.u32 %v5120, 16
      %v5151 = vrot.slane %v5149, 3
      %v5152 = vshll.u32 %v5120, 16
      %v5154 = vrot.slane %v5152, 4
      %v5155 = vor.u32 %v5151, %v5154
      %v5156 = vsel %vm1227, %v5146, %v5155
      %v5158 = vshrl.u32 %v5121, 16
      %v5160 = vrot.slane %v5158, 3
      %v5161 = vshll.u32 %v5121, 16
      %v5163 = vrot.slane %v5161, 4
      %v5164 = vor.u32 %v5160, %v5163
      %v5165 = vsel %vm1227, %v5155, %v5164
      %v5186 = vunpack.c.l.b16 %v5083
      %v5187 = vunpack.c.l.b16 %v5084
      %v5188 = vunpack.c.l.b16 %v5085
      %v5189 = vunpack.c.l.b16 %v5086
      %v5190 = vunpack.c.l.b16 %v5087
      %v5191 = vunpack.c.l.b16 %v5088
      %v5192 = vunpack.c.l.b16 %v5089
      %v5193 = vunpack.c.l.b16 %v5090
      %v5194 = vunpack.c.l.b16 %v5091
      %v5195 = vunpack.c.l.b16 %v5092
      %v5196 = vunpack.c.l.b16 %v5093
      %v5197 = vunpack.c.l.b16 %v5094
      %v5198 = vunpack.c.l.b16 %v5095
      %v5199 = vunpack.c.l.b16 %v5096
      %v5200 = vunpack.c.l.b16 %v5097
      %v5201 = vunpack.c.l.b16 %v5098
      %v5202 = vpack.c.b16 %v5187, %v5186
      %v5203 = vpack.c.b16 %v5189, %v5188
      %v5204 = vpack.c.b16 %v5191, %v5190
      %v5205 = vpack.c.b16 %v5193, %v5192
      %v5206 = vpack.c.b16 %v5195, %v5194
      %v5207 = vpack.c.b16 %v5197, %v5196
      %v5208 = vpack.c.b16 %v5199, %v5198
      %v5209 = vpack.c.b16 %v5201, %v5200
      %5218 = vmatprep.subr.bf16.mxu0 0
      %5219 = vmatpush1.bf16.msra.mxu0 %v5209
      %5220 = vmatprep.subr.bf16.mxu0 0
      %5221 = vmatpush1.bf16.msra.mxu0 %v5208
      %5222 = vmatprep.subr.bf16.mxu0 0
      %5223 = vmatpush1.bf16.msra.mxu0 %v5207
      %5224 = vmatprep.subr.bf16.mxu0 0
      %5225 = vmatpush1.bf16.msra.mxu0 %v5206
      %5226 = vmatprep.subr.bf16.mxu0 0
      %5227 = vmatpush1.bf16.msra.mxu0 %v5205
      %5228 = vmatprep.subr.bf16.mxu0 0
      %5229 = vmatpush1.bf16.msra.mxu0 %v5204
      %5230 = vmatprep.subr.bf16.mxu0 0
      %5231 = vmatpush1.bf16.msra.mxu0 %v5203
      %5232 = vmatprep.subr.bf16.mxu0 0
      %5233 = vmatpush1.bf16.msra.mxu0 %v5202
      %5234 = vmatprep.subr.bf16.mxu0 0
      %5235 = vmatpush2.bf16.msra.mxu0 0
      %5236 = vmatprep.subr.bf16.mxu0 0
      %5237 = vmatpush2.bf16.msra.mxu0 0
      %5238 = vmatprep.subr.bf16.mxu0 0
      %5239 = vmatpush2.bf16.msra.mxu0 0
      %5240 = vmatprep.subr.bf16.mxu0 0
      %5241 = vmatpush2.bf16.msra.mxu0 0
      %5242 = vmatprep.subr.bf16.mxu0 0
      %5243 = vmatpush2.bf16.msra.mxu0 0
      %5244 = vmatprep.subr.bf16.mxu0 0
      %5245 = vmatpush2.bf16.msra.mxu0 0
      %5246 = vmatprep.subr.bf16.mxu0 0
      %5247 = vmatpush2.bf16.msra.mxu0 0
      %5248 = vmatprep.subr.bf16.mxu0 0
      %5249 = vmatpush2.bf16.msra.mxu0 0
      %5250 = vmatprep.mubr.bf16.mxu0 0
      %5251 = vmatmul.mubr.bf16.gmra.mxu0 %v5138
      %v5252 = vpop.f32.mrf.mxu0
      %v5253 = vadd.f32 0.0, %v5252
      %v5254 = vpop.f32.mrf.mxu0
      %v5255 = vpop.f32.mrf.mxu0
      %v5256 = vadd.f32 0.0, %v5255
      %v5257 = vpop.f32.mrf.mxu0
      %5258 = vmatprep.mubr.bf16.mxu0 0
      %5259 = vmatmul.mubr.bf16.gmra.mxu0 %v5147
      %v5260 = vpop.f32.mrf.mxu0
      %v5261 = vadd.f32 0.0, %v5260
      %v5262 = vpop.f32.mrf.mxu0
      %v5263 = vpop.f32.mrf.mxu0
      %v5264 = vadd.f32 0.0, %v5263
      %v5265 = vpop.f32.mrf.mxu0
      %5266 = vmatprep.mubr.bf16.mxu0 0
      %5267 = vmatmul.mubr.bf16.gmra.mxu0 %v5156
      %v5268 = vpop.f32.mrf.mxu0
      %v5269 = vadd.f32 0.0, %v5268
      %v5270 = vpop.f32.mrf.mxu0
      %v5271 = vpop.f32.mrf.mxu0
      %v5272 = vadd.f32 0.0, %v5271
      %v5273 = vpop.f32.mrf.mxu0
      %5274 = vmatprep.mubr.bf16.mxu0 0
      %5275 = vmatmul.mubr.bf16.gmra.mxu0 %v5165
      %v5276 = vpop.f32.mrf.mxu0
      %v5277 = vadd.f32 0.0, %v5276
      %v5278 = vpop.f32.mrf.mxu0
      %v5279 = vpop.f32.mrf.mxu0
      %v5280 = vadd.f32 0.0, %v5279
      %v5281 = vpop.f32.mrf.mxu0
      %5282 = vdwg.mxu0
      %v5283 = vadd.f32 %v5063, %v5253
      %v5284 = vadd.f32 %v5064, %v5256
      %v5285 = vadd.f32 %v5065, %v5261
      %v5286 = vadd.f32 %v5066, %v5264
      %v5287 = vadd.f32 %v5067, %v5269
      %v5288 = vadd.f32 %v5068, %v5272
      %v5289 = vadd.f32 %v5069, %v5277
      %v5290 = vadd.f32 %v5070, %v5280
      %s5291 = scalar_lea.vmem %s6, 448
      %v5292 = vld [vmem:[%s5291] sm:$0xf]
      %v5293 = vld [vmem:[%s5291 + $0x4] sm:$0xf]
      %v5294 = vld [vmem:[%s5291 + $0x8] sm:$0xf]
      %v5295 = vld [vmem:[%s5291 + $0xc] sm:$0xf]
      %v5296 = vld [vmem:[%s5291 + $0x10] sm:$0xf]
      %v5297 = vld [vmem:[%s5291 + $0x14] sm:$0xf]
      %v5298 = vld [vmem:[%s5291 + $0x18] sm:$0xf]
      %v5299 = vld [vmem:[%s5291 + $0x1c] sm:$0xf]
      %v5300 = vld [vmem:[%s5291 + $0x20] sm:$0xf]
      %v5301 = vld [vmem:[%s5291 + $0x24] sm:$0xf]
      %v5302 = vld [vmem:[%s5291 + $0x28] sm:$0xf]
      %v5303 = vld [vmem:[%s5291 + $0x2c] sm:$0xf]
      %v5304 = vld [vmem:[%s5291 + $0x30] sm:$0xf]
      %v5305 = vld [vmem:[%s5291 + $0x34] sm:$0xf]
      %v5306 = vld [vmem:[%s5291 + $0x38] sm:$0xf]
      %v5307 = vld [vmem:[%s5291 + $0x3c] sm:$0xf]
      %v5316 = vunpack.c.l.b16 %v4853
      %v5317 = vunpack.c.l.b16 %v4854
      %v5318 = vunpack.c.l.b16 %v4855
      %v5319 = vunpack.c.l.b16 %v4856
      %v5320 = vunpack.c.l.b16 %v4857
      %v5321 = vunpack.c.l.b16 %v4858
      %v5322 = vunpack.c.l.b16 %v4859
      %v5323 = vunpack.c.l.b16 %v5072
      %v5324 = vpack.c.b16 %v5317, %v5316
      %v5325 = vpack.c.b16 %v5319, %v5318
      %v5326 = vpack.c.b16 %v5321, %v5320
      %v5327 = vpack.c.b16 %v5323, %v5322
      %v5348 = vunpack.c.l.b16 %v5292
      %v5349 = vunpack.c.l.b16 %v5293
      %v5350 = vunpack.c.l.b16 %v5294
      %v5351 = vunpack.c.l.b16 %v5295
      %v5352 = vunpack.c.l.b16 %v5296
      %v5353 = vunpack.c.l.b16 %v5297
      %v5354 = vunpack.c.l.b16 %v5298
      %v5355 = vunpack.c.l.b16 %v5299
      %v5356 = vunpack.c.l.b16 %v5300
      %v5357 = vunpack.c.l.b16 %v5301
      %v5358 = vunpack.c.l.b16 %v5302
      %v5359 = vunpack.c.l.b16 %v5303
      %v5360 = vunpack.c.l.b16 %v5304
      %v5361 = vunpack.c.l.b16 %v5305
      %v5362 = vunpack.c.l.b16 %v5306
      %v5363 = vunpack.c.l.b16 %v5307
      %v5364 = vpack.c.b16 %v5349, %v5348
      %v5365 = vpack.c.b16 %v5351, %v5350
      %v5366 = vpack.c.b16 %v5353, %v5352
      %v5367 = vpack.c.b16 %v5355, %v5354
      %v5368 = vpack.c.b16 %v5357, %v5356
      %v5369 = vpack.c.b16 %v5359, %v5358
      %v5370 = vpack.c.b16 %v5361, %v5360
      %v5371 = vpack.c.b16 %v5363, %v5362
      %5380 = vmatprep.subr.bf16.mxu0 0
      %5381 = vmatpush1.bf16.msra.mxu0 %v5371
      %5382 = vmatprep.subr.bf16.mxu0 0
      %5383 = vmatpush1.bf16.msra.mxu0 %v5370
      %5384 = vmatprep.subr.bf16.mxu0 0
      %5385 = vmatpush1.bf16.msra.mxu0 %v5369
      %5386 = vmatprep.subr.bf16.mxu0 0
      %5387 = vmatpush1.bf16.msra.mxu0 %v5368
      %5388 = vmatprep.subr.bf16.mxu0 0
      %5389 = vmatpush1.bf16.msra.mxu0 %v5367
      %5390 = vmatprep.subr.bf16.mxu0 0
      %5391 = vmatpush1.bf16.msra.mxu0 %v5366
      %5392 = vmatprep.subr.bf16.mxu0 0
      %5393 = vmatpush1.bf16.msra.mxu0 %v5365
      %5394 = vmatprep.subr.bf16.mxu0 0
      %5395 = vmatpush1.bf16.msra.mxu0 %v5364
      %5396 = vmatprep.subr.bf16.mxu0 0
      %5397 = vmatpush2.bf16.msra.mxu0 0
      %5398 = vmatprep.subr.bf16.mxu0 0
      %5399 = vmatpush2.bf16.msra.mxu0 0
      %5400 = vmatprep.subr.bf16.mxu0 0
      %5401 = vmatpush2.bf16.msra.mxu0 0
      %5402 = vmatprep.subr.bf16.mxu0 0
      %5403 = vmatpush2.bf16.msra.mxu0 0
      %5404 = vmatprep.subr.bf16.mxu0 0
      %5405 = vmatpush2.bf16.msra.mxu0 0
      %5406 = vmatprep.subr.bf16.mxu0 0
      %5407 = vmatpush2.bf16.msra.mxu0 0
      %5408 = vmatprep.subr.bf16.mxu0 0
      %5409 = vmatpush2.bf16.msra.mxu0 0
      %5410 = vmatprep.subr.bf16.mxu0 0
      %5411 = vmatpush2.bf16.msra.mxu0 0
      %5412 = vmatprep.mubr.bf16.mxu0 0
      %5413 = vmatmul.mubr.bf16.gmra.mxu0 %v5324
      %v5414 = vpop.f32.mrf.mxu0
      %v5415 = vadd.f32 0.0, %v5414
      %v5416 = vpop.f32.mrf.mxu0
      %v5417 = vpop.f32.mrf.mxu0
      %v5418 = vadd.f32 0.0, %v5417
      %v5419 = vpop.f32.mrf.mxu0
      %5420 = vmatprep.mubr.bf16.mxu0 0
      %5421 = vmatmul.mubr.bf16.gmra.mxu0 %v5325
      %v5422 = vpop.f32.mrf.mxu0
      %v5423 = vadd.f32 0.0, %v5422
      %v5424 = vpop.f32.mrf.mxu0
      %v5425 = vpop.f32.mrf.mxu0
      %v5426 = vadd.f32 0.0, %v5425
      %v5427 = vpop.f32.mrf.mxu0
      %5428 = vmatprep.mubr.bf16.mxu0 0
      %5429 = vmatmul.mubr.bf16.gmra.mxu0 %v5326
      %v5430 = vpop.f32.mrf.mxu0
      %v5431 = vadd.f32 0.0, %v5430
      %v5432 = vpop.f32.mrf.mxu0
      %v5433 = vpop.f32.mrf.mxu0
      %v5434 = vadd.f32 0.0, %v5433
      %v5435 = vpop.f32.mrf.mxu0
      %5436 = vmatprep.mubr.bf16.mxu0 0
      %5437 = vmatmul.mubr.bf16.gmra.mxu0 %v5327
      %v5438 = vpop.f32.mrf.mxu0
      %v5439 = vadd.f32 0.0, %v5438
      %v5440 = vpop.f32.mrf.mxu0
      %v5441 = vpop.f32.mrf.mxu0
      %v5442 = vadd.f32 0.0, %v5441
      %v5443 = vpop.f32.mrf.mxu0
      %5444 = vdwg.mxu0
      %v5445 = vadd.f32 %v5283, %v5415
      %v5446 = vadd.f32 %v5284, %v5418
      %v5447 = vadd.f32 %v5285, %v5423
      %v5448 = vadd.f32 %v5286, %v5426
      %v5449 = vadd.f32 %v5287, %v5431
      %v5450 = vadd.f32 %v5288, %v5434
      %v5451 = vadd.f32 %v5289, %v5439
      %v5452 = vadd.f32 %v5290, %v5442
      %v5453 = vld [vmem:[#allocation3 + $0xc] sm:$0xf]
      %v5454 = vld [vmem:[#allocation3 + $0x10] sm:$0xf]
      %v5455 = vld [vmem:[#allocation3 + $0x14] sm:$0xf]
      %v5456 = vld [vmem:[#allocation3 + $0x18] sm:$0xf]
      %v5457 = vld [vmem:[#allocation3 + $0x1c] sm:$0xf]
      %v5458 = vld [vmem:[#allocation3 + $0x20] sm:$0xf]
      %v5459 = vld [vmem:[#allocation3 + $0x24] sm:$0xf]
      %v5460 = vld [vmem:[#allocation3 + $0x28] sm:$0xf]
      %v5461 = vld [vmem:[#allocation3 + $0x2c] sm:$0x1]
      %v5462 = vmul.bf16 %v5453, %v1563
      %v5463 = vmul.bf16 %v5454, %v1572
      %v5464 = vmul.bf16 %v5455, %v1581
      %v5465 = vmul.bf16 %v5456, %v1590
      %v5466 = vmul.bf16 %v5457, %v1599
      %v5467 = vmul.bf16 %v5458, %v1608
      %v5468 = vmul.bf16 %v5459, %v1617
      %v5469 = vmul.bf16 %v5460, %v1626
      %v5470 = vmul.bf16 %v5461, %v1627
      %s5471 = scalar_lea.vmem %s6, 512
      %v5472 = vld [vmem:[%s5471] sm:$0xf]
      %v5473 = vld [vmem:[%s5471 + $0x4] sm:$0xf]
      %v5474 = vld [vmem:[%s5471 + $0x8] sm:$0xf]
      %v5475 = vld [vmem:[%s5471 + $0xc] sm:$0xf]
      %v5476 = vld [vmem:[%s5471 + $0x10] sm:$0xf]
      %v5477 = vld [vmem:[%s5471 + $0x14] sm:$0xf]
      %v5478 = vld [vmem:[%s5471 + $0x18] sm:$0xf]
      %v5479 = vld [vmem:[%s5471 + $0x1c] sm:$0xf]
      %v5480 = vld [vmem:[%s5471 + $0x20] sm:$0xf]
      %v5481 = vld [vmem:[%s5471 + $0x24] sm:$0xf]
      %v5482 = vld [vmem:[%s5471 + $0x28] sm:$0xf]
      %v5483 = vld [vmem:[%s5471 + $0x2c] sm:$0xf]
      %v5484 = vld [vmem:[%s5471 + $0x30] sm:$0xf]
      %v5485 = vld [vmem:[%s5471 + $0x34] sm:$0xf]
      %v5486 = vld [vmem:[%s5471 + $0x38] sm:$0xf]
      %v5487 = vld [vmem:[%s5471 + $0x3c] sm:$0xf]
      %v5497 = vunpack.c.l.b16 %v5462
      %v5498 = vunpack.c.l.b16 %v5463
      %v5499 = vunpack.c.l.b16 %v5464
      %v5500 = vunpack.c.l.b16 %v5465
      %v5501 = vunpack.c.l.b16 %v5466
      %v5502 = vunpack.c.l.b16 %v5467
      %v5503 = vunpack.c.l.b16 %v5468
      %v5504 = vunpack.c.l.b16 %v5469
      %v5505 = vunpack.c.l.b16 %v5470
      %v5506 = vpack.c.b16 %v5498, %v5497
      %v5507 = vpack.c.b16 %v5500, %v5499
      %v5508 = vpack.c.b16 %v5502, %v5501
      %v5509 = vpack.c.b16 %v5504, %v5503
      %v5510 = vpack.c.b16 %v5505, %v5505
      %v5512 = vshrl.u32 %v5506, 16
      %v5514 = vshll.u32 %v5506, 16
      %v5516 = vrot.slane %v5514, 1
      %v5517 = vor.u32 %v5512, %v5516
      %v5519 = vshll.u32 %v5507, 16
      %v5521 = vrot.slane %v5519, 1
      %v5522 = vsel %vm1716, %v5517, %v5521
      %v5523 = vshrl.u32 %v5507, 16
      %v5525 = vor.u32 %v5523, %v5521
      %v5527 = vshll.u32 %v5508, 16
      %v5529 = vrot.slane %v5527, 1
      %v5530 = vsel %vm1716, %v5525, %v5529
      %v5531 = vshrl.u32 %v5508, 16
      %v5533 = vor.u32 %v5531, %v5529
      %v5535 = vshll.u32 %v5509, 16
      %v5537 = vrot.slane %v5535, 1
      %v5538 = vsel %vm1716, %v5533, %v5537
      %v5539 = vshrl.u32 %v5509, 16
      %v5541 = vor.u32 %v5539, %v5537
      %v5543 = vshll.u32 %v5510, 16
      %v5545 = vrot.slane %v5543, 1
      %v5546 = vsel %vm1716, %v5541, %v5545
      %v5567 = vunpack.c.l.b16 %v5472
      %v5568 = vunpack.c.l.b16 %v5473
      %v5569 = vunpack.c.l.b16 %v5474
      %v5570 = vunpack.c.l.b16 %v5475
      %v5571 = vunpack.c.l.b16 %v5476
      %v5572 = vunpack.c.l.b16 %v5477
      %v5573 = vunpack.c.l.b16 %v5478
      %v5574 = vunpack.c.l.b16 %v5479
      %v5575 = vunpack.c.l.b16 %v5480
      %v5576 = vunpack.c.l.b16 %v5481
      %v5577 = vunpack.c.l.b16 %v5482
      %v5578 = vunpack.c.l.b16 %v5483
      %v5579 = vunpack.c.l.b16 %v5484
      %v5580 = vunpack.c.l.b16 %v5485
      %v5581 = vunpack.c.l.b16 %v5486
      %v5582 = vunpack.c.l.b16 %v5487
      %v5583 = vpack.c.b16 %v5568, %v5567
      %v5584 = vpack.c.b16 %v5570, %v5569
      %v5585 = vpack.c.b16 %v5572, %v5571
      %v5586 = vpack.c.b16 %v5574, %v5573
      %v5587 = vpack.c.b16 %v5576, %v5575
      %v5588 = vpack.c.b16 %v5578, %v5577
      %v5589 = vpack.c.b16 %v5580, %v5579
      %v5590 = vpack.c.b16 %v5582, %v5581
      %5599 = vmatprep.subr.bf16.mxu0 0
      %5600 = vmatpush1.bf16.msra.mxu0 %v5590
      %5601 = vmatprep.subr.bf16.mxu0 0
      %5602 = vmatpush1.bf16.msra.mxu0 %v5589
      %5603 = vmatprep.subr.bf16.mxu0 0
      %5604 = vmatpush1.bf16.msra.mxu0 %v5588
      %5605 = vmatprep.subr.bf16.mxu0 0
      %5606 = vmatpush1.bf16.msra.mxu0 %v5587
      %5607 = vmatprep.subr.bf16.mxu0 0
      %5608 = vmatpush1.bf16.msra.mxu0 %v5586
      %5609 = vmatprep.subr.bf16.mxu0 0
      %5610 = vmatpush1.bf16.msra.mxu0 %v5585
      %5611 = vmatprep.subr.bf16.mxu0 0
      %5612 = vmatpush1.bf16.msra.mxu0 %v5584
      %5613 = vmatprep.subr.bf16.mxu0 0
      %5614 = vmatpush1.bf16.msra.mxu0 %v5583
      %5615 = vmatprep.subr.bf16.mxu0 0
      %5616 = vmatpush2.bf16.msra.mxu0 0
      %5617 = vmatprep.subr.bf16.mxu0 0
      %5618 = vmatpush2.bf16.msra.mxu0 0
      %5619 = vmatprep.subr.bf16.mxu0 0
      %5620 = vmatpush2.bf16.msra.mxu0 0
      %5621 = vmatprep.subr.bf16.mxu0 0
      %5622 = vmatpush2.bf16.msra.mxu0 0
      %5623 = vmatprep.subr.bf16.mxu0 0
      %5624 = vmatpush2.bf16.msra.mxu0 0
      %5625 = vmatprep.subr.bf16.mxu0 0
      %5626 = vmatpush2.bf16.msra.mxu0 0
      %5627 = vmatprep.subr.bf16.mxu0 0
      %5628 = vmatpush2.bf16.msra.mxu0 0
      %5629 = vmatprep.subr.bf16.mxu0 0
      %5630 = vmatpush2.bf16.msra.mxu0 0
      %5631 = vmatprep.mubr.bf16.mxu0 0
      %5632 = vmatmul.mubr.bf16.gmra.mxu0 %v5522
      %v5633 = vpop.f32.mrf.mxu0
      %v5634 = vadd.f32 0.0, %v5633
      %v5635 = vpop.f32.mrf.mxu0
      %v5636 = vpop.f32.mrf.mxu0
      %v5637 = vadd.f32 0.0, %v5636
      %v5638 = vpop.f32.mrf.mxu0
      %5639 = vmatprep.mubr.bf16.mxu0 0
      %5640 = vmatmul.mubr.bf16.gmra.mxu0 %v5530
      %v5641 = vpop.f32.mrf.mxu0
      %v5642 = vadd.f32 0.0, %v5641
      %v5643 = vpop.f32.mrf.mxu0
      %v5644 = vpop.f32.mrf.mxu0
      %v5645 = vadd.f32 0.0, %v5644
      %v5646 = vpop.f32.mrf.mxu0
      %5647 = vmatprep.mubr.bf16.mxu0 0
      %5648 = vmatmul.mubr.bf16.gmra.mxu0 %v5538
      %v5649 = vpop.f32.mrf.mxu0
      %v5650 = vadd.f32 0.0, %v5649
      %v5651 = vpop.f32.mrf.mxu0
      %v5652 = vpop.f32.mrf.mxu0
      %v5653 = vadd.f32 0.0, %v5652
      %v5654 = vpop.f32.mrf.mxu0
      %5655 = vmatprep.mubr.bf16.mxu0 0
      %5656 = vmatmul.mubr.bf16.gmra.mxu0 %v5546
      %v5657 = vpop.f32.mrf.mxu0
      %v5658 = vadd.f32 0.0, %v5657
      %v5659 = vpop.f32.mrf.mxu0
      %v5660 = vpop.f32.mrf.mxu0
      %v5661 = vadd.f32 0.0, %v5660
      %v5662 = vpop.f32.mrf.mxu0
      %5663 = vdwg.mxu0
      %v5664 = vadd.f32 %v5445, %v5634
      %v5665 = vadd.f32 %v5446, %v5637
      %v5666 = vadd.f32 %v5447, %v5642
      %v5667 = vadd.f32 %v5448, %v5645
      %v5668 = vadd.f32 %v5449, %v5650
      %v5669 = vadd.f32 %v5450, %v5653
      %v5670 = vadd.f32 %v5451, %v5658
      %v5671 = vadd.f32 %v5452, %v5661
      %v5672 = vld [vmem:[%s7] sm:$0x1]
      %v5674 = vlaneseq
      %v5675 = vshrl.u32 %v5674, 7
      %v5676 = vsub.s32 0, %v5675
      %v5677 = vrot.slane %v5672, %v5676
      %v5679 = vadd.f32 %v5664, %v5677
      %v5680 = vadd.f32 %v5665, %v5677
      %v5681 = vadd.f32 %v5666, %v5677
      %v5682 = vadd.f32 %v5667, %v5677
      %v5683 = vadd.f32 %v5668, %v5677
      %v5684 = vadd.f32 %v5669, %v5677
      %v5685 = vadd.f32 %v5670, %v5677
      %v5686 = vadd.f32 %v5671, %v5677
      %v5687 = vmax.f32 %v5679, 0.0
      %v5688 = vmax.f32 %v5680, 0.0
      %v5689 = vmax.f32 %v5681, 0.0
      %v5690 = vmax.f32 %v5682, 0.0
      %v5691 = vmax.f32 %v5683, 0.0
      %v5692 = vmax.f32 %v5684, 0.0
      %v5693 = vmax.f32 %v5685, 0.0
      %v5694 = vmax.f32 %v5686, 0.0
      %v5695 = vadd.f32 %v5687, %v5688
      %v5696 = vadd.f32 %v5695, %v5689
      %v5697 = vadd.f32 %v5696, %v5690
      %v5698 = vadd.f32 %v5697, %v5691
      %v5699 = vadd.f32 %v5698, %v5692
      %v5700 = vadd.f32 %v5699, %v5693
      %v5701 = vadd.f32 %v5700, %v5694
      %v5702 = vrot.slane %v5701, 4
      %v5703 = vadd.f32 %v5701, %v5702
      %v5704 = vrot.slane %v5703, 2
      %v5705 = vadd.f32 %v5703, %v5704
      %v5706 = vrot.slane %v5705, 1
      %v5707 = vadd.f32 %v5705, %v5706
      %5709 = vrot.lane.b32.xlu0 %v5707, 96
      %v5710 = vpop.permute.xlu0 %5709
      %v5712 = vadd.f32 %v5707, %v5710
      %5713 = vrot.lane.b32.xlu0 %v5707, 64
      %v5714 = vpop.permute.xlu0 %5713
      %v5716 = vadd.f32 %v5712, %v5714
      %5717 = vrot.lane.b32.xlu0 %v5707, 32
      %v5718 = vpop.permute.xlu0 %5717
      %v5720 = vadd.f32 %v5716, %v5718
      %v5721 = vmul.f32 %v5720, 0.00390625
      %v5722 = vpack.c.bf16 %v5721, %v5721
      %v5723 = vld [vmem:[%s8] sm:$0xf]
      %v5724 = vld [vmem:[%s8 + $0x4] sm:$0xf]
      %v5725 = vld [vmem:[%s8 + $0x8] sm:$0xf]
      %v5726 = vld [vmem:[%s8 + $0xc] sm:$0xf]
      %v5731 = vunpack.c.l.b16 %v5723
      %v5732 = vunpack.c.l.b16 %v5724
      %v5733 = vunpack.c.l.b16 %v5725
      %v5734 = vunpack.c.l.b16 %v5726
      %v5735 = vpack.c.b16 %v5732, %v5731
      %v5736 = vpack.c.b16 %v5734, %v5733
      %vm5739 = vcmask 261120
      %v5741 = vsel %vm5739, %v5722, 0
      %5743 = vmatprep.subr.bf16.mxu0 0
      %5744 = vmatpush1.bf16.msra.mxu0 0
      %5745 = vmatprep.subr.bf16.mxu0 0
      %5746 = vmatpush1.bf16.msra.mxu0 0
      %5747 = vmatprep.subr.bf16.mxu0 0
      %5748 = vmatpush1.bf16.msra.mxu0 0
      %5749 = vmatprep.subr.bf16.mxu0 0
      %5750 = vmatpush1.bf16.msra.mxu0 0
      %5751 = vmatprep.subr.bf16.mxu0 0
      %5752 = vmatpush1.bf16.msra.mxu0 0
      %5753 = vmatprep.subr.bf16.mxu0 0
      %5754 = vmatpush1.bf16.msra.mxu0 0
      %5755 = vmatprep.subr.bf16.mxu0 0
      %5756 = vmatpush1.bf16.msra.mxu0 %v5736
      %5757 = vmatprep.subr.bf16.mxu0 0
      %5758 = vmatpush1.bf16.msra.mxu0 %v5735
      %5759 = vmatprep.subr.bf16.mxu0 0
      %5760 = vmatpush2.bf16.msra.mxu0 0
      %5761 = vmatprep.subr.bf16.mxu0 0
      %5762 = vmatpush2.bf16.msra.mxu0 0
      %5763 = vmatprep.subr.bf16.mxu0 0
      %5764 = vmatpush2.bf16.msra.mxu0 0
      %5765 = vmatprep.subr.bf16.mxu0 0
      %5766 = vmatpush2.bf16.msra.mxu0 0
      %5767 = vmatprep.subr.bf16.mxu0 0
      %5768 = vmatpush2.bf16.msra.mxu0 0
      %5769 = vmatprep.subr.bf16.mxu0 0
      %5770 = vmatpush2.bf16.msra.mxu0 0
      %5771 = vmatprep.subr.bf16.mxu0 0
      %5772 = vmatpush2.bf16.msra.mxu0 0
      %5773 = vmatprep.subr.bf16.mxu0 0
      %5774 = vmatpush2.bf16.msra.mxu0 0
      %5775 = vmatprep.mubr.bf16.mxu0 0
      %5776 = vmatmul.mubr.bf16.gmra.mxu0 %v5741
      %v5777 = vpop.f32.mrf.mxu0
      %v5778 = vadd.f32 0.0, %v5777
      %v5779 = vpop.f32.mrf.mxu0
      %v5780 = vpop.f32.mrf.mxu0
      %v5781 = vpop.f32.mrf.mxu0
      %5782 = vdwg.mxu0
      %v5783 = vmax.f32 %v5778, 0.0
      %v5784 = vpack.c.bf16 %v5783, %v5783
      %v5785 = vld [vmem:[%s9] sm:$0x1]
      %vm5786 = vcmask 15360
      %v5788 = vsel %vm5786, %v5784, 0
      %vm5790 = vcmask 1040384
      %v5792 = vsel %vm5790, %v5785, 0
      %5794 = vmatprep.subr.bf16.mxu0 0
      %5795 = vmatpush1.bf16.msra.mxu0 0
      %5796 = vmatprep.subr.bf16.mxu0 0
      %5797 = vmatpush1.bf16.msra.mxu0 0
      %5798 = vmatprep.subr.bf16.mxu0 0
      %5799 = vmatpush1.bf16.msra.mxu0 0
      %5800 = vmatprep.subr.bf16.mxu0 0
      %5801 = vmatpush1.bf16.msra.mxu0 0
      %5802 = vmatprep.subr.bf16.mxu0 0
      %5803 = vmatpush1.bf16.msra.mxu0 0
      %5804 = vmatprep.subr.bf16.mxu0 0
      %5805 = vmatpush1.bf16.msra.mxu0 0
      %5806 = vmatprep.subr.bf16.mxu0 0
      %5807 = vmatpush1.bf16.msra.mxu0 0
      %5808 = vmatprep.subr.bf16.mxu0 0
      %5809 = vmatpush1.bf16.msra.mxu0 %v5792
      %5810 = vmatprep.subr.bf16.mxu0 0
      %5811 = vmatpush2.bf16.msra.mxu0 0
      %5812 = vmatprep.subr.bf16.mxu0 0
      %5813 = vmatpush2.bf16.msra.mxu0 0
      %5814 = vmatprep.subr.bf16.mxu0 0
      %5815 = vmatpush2.bf16.msra.mxu0 0
      %5816 = vmatprep.subr.bf16.mxu0 0
      %5817 = vmatpush2.bf16.msra.mxu0 0
      %5818 = vmatprep.subr.bf16.mxu0 0
      %5819 = vmatpush2.bf16.msra.mxu0 0
      %5820 = vmatprep.subr.bf16.mxu0 0
      %5821 = vmatpush2.bf16.msra.mxu0 0
      %5822 = vmatprep.subr.bf16.mxu0 0
      %5823 = vmatpush2.bf16.msra.mxu0 0
      %5824 = vmatprep.subr.bf16.mxu0 0
      %5825 = vmatpush2.bf16.msra.mxu0 0
      %5826 = vmatprep.mubr.bf16.mxu0 0
      %5827 = vmatmul.mubr.bf16.gmra.mxu0 %v5788
      %v5828 = vpop.f32.mrf.mxu0
      %v5829 = vadd.f32 0.0, %v5828
      %v5830 = vpop.f32.mrf.mxu0
      %v5831 = vpop.f32.mrf.mxu0
      %v5832 = vpop.f32.mrf.mxu0
      %5833 = vdwg.mxu0
      %v5834 = vxor.u32 %v5829, 2147483648
      %v5835 = vmul.f32 %v5834, 1.442695
      %v5836 = vpow.pop %v5835
      %v5837 = vadd.f32 %v5836, 1.0
      %v5838 = vrcp.pop %v5837
      %v5839 = vmul.f32 1.0, %v5838
      %5841 = vrot.lane.b32.xlu0 %v5839, 32
      %v5842 = vpop.permute.xlu0 %5841
      %5844 = vrot.lane.b32.xlu0 %v5839, 64
      %v5845 = vpop.permute.xlu0 %5844
      %5847 = vrot.lane.b32.xlu0 %v5839, 96
      %v5848 = vpop.permute.xlu0 %5847
      %v5850 = vsel %vm5739, %v5839, %v5842
      %v5851 = vsel %vm460, %v5850, %v5845
      %vm5852 = vcmask 785408
      %v5853 = vsel %vm5852, %v5851, %v5848
      %v5854 = vlaneseq
      %v5855 = vshrl.u32 %v5854, 7
      %v5856 = vsub.s32 0, %v5855
      %v5857 = vrot.slane %v5853, %v5856
      %v5858 = vmul.f32 %v5687, %v5857
      %v5859 = vmul.f32 %v5688, %v5857
      %v5860 = vmul.f32 %v5689, %v5857
      %v5861 = vmul.f32 %v5690, %v5857
      %v5862 = vmul.f32 %v5691, %v5857
      %v5863 = vmul.f32 %v5692, %v5857
      %v5864 = vmul.f32 %v5693, %v5857
      %v5865 = vmul.f32 %v5694, %v5857
      %5866 = vst [vmem:[%s379] sm:$0xff] %v5858
      %5867 = vst [vmem:[%s379 + $0x8] sm:$0xff] %v5859
      %5868 = vst [vmem:[%s379 + $0x10] sm:$0xff] %v5860
      %5869 = vst [vmem:[%s379 + $0x18] sm:$0xff] %v5861
      %5870 = vst [vmem:[%s379 + $0x20] sm:$0xff] %v5862
      %5871 = vst [vmem:[%s379 + $0x28] sm:$0xff] %v5863
      %5872 = vst [vmem:[%s379 + $0x30] sm:$0xff] %v5864
      %5873 = vst [vmem:[%s379 + $0x38] sm:$0xff] %v5865
      %p5874 = scmp.lt.s32.totalorder %s21, 1
      %s5875 = scalar_select %p5874, %s21, 1
      %s5876 = smul.addr %s5875, 8
      %s5877 = smul.addr %s5876, 8
      %s5878 = scalar_lea.vmem %s10, %s5877
      // Predicated region
      $region65: #{decoder_block_forward.1} parent=59 // pred_check
        %p5879 = pneg %p259
      $region66: #{decoder_block_forward.1} parent=59 // pred_check_branch
        %5881 = sbr.rel (%p5879) target = $region68
      $region67: #{decoder_block_forward.1} parent=59 // pred_region
        _
      $region68: #{decoder_block_forward.1} parent=59 // pred_fallthru
        _
    $region60: #{decoder_block_forward.1} parent=5 // pred_fallthru
      _
    %p5882 = scmp.le.s32.totalorder 2, %s16
    // Predicated region
    $region69: #{decoder_block_forward.1} parent=5 // pred_check
      %p5883 = pneg %p5882
    $region70: #{decoder_block_forward.1} parent=5 // pred_check_branch
      %5885 = sbr.rel (%p5883) target = $region72
    $region71: #{decoder_block_forward.1} parent=5 // pred_region
      %s5886 = ssub.s32 %s16, 2
      // Predicated region
      $region73: #{decoder_block_forward.1} parent=71 // pred_check
        %p5887 = pneg %p265
      $region74: #{decoder_block_forward.1} parent=71 // pred_check_branch
        %5889 = sbr.rel (%p5887) target = $region76
      $region75: #{decoder_block_forward.1} parent=71 // pred_region
        %p5890 = scmp.lt.s32.totalorder %s22, 1
        %s5891 = scalar_select %p5890, %s22, 1
        %s5892 = smul.addr %s5891, 8
        %s5893 = smul.addr %s5892, 8
        %s5894 = scalar_lea.vmem %s10, %s5893
      $region76: #{decoder_block_forward.1} parent=71 // pred_fallthru
        _
    $region72: #{decoder_block_forward.1} parent=5 // pred_fallthru
      _
  $region6: #{decoder_block_forward.1} parent=0 // loop_footer
    %s20 = sadd.s32 1, %s16
  $region7: #{decoder_block_forward.1} parent=0 // loop_footer_branch
    %15 = sbr.rel target = $region3
  $region8: #{decoder_block_forward.1} parent=0 // loop_exit
    _

</llo_original>
